<compile_context>
chip_gen: v7x
topology: tpu7x:2x2x1
jax: 0.10.0
libtpu: 0.0.40
codegen_flags: <defaults>
</compile_context>

<pallas_src>
import functools

import jax
import jax.numpy as jnp
import numpy as np
from jax.experimental import pallas as pl
from jax.experimental.pallas import tpu as pltpu

LANE = 128
SUBLANE = 8


def _round_up(x, m):
    return (x + m - 1) // m * m


# ----------------------------------------------------------------------------
# Pallas kernel: fused 3x3 / stride-2 conv = 9 shifted-row GEMMs + bias + ReLU
# ----------------------------------------------------------------------------
def _conv3x3_s2_kernel(a_ref, w_ref, b_ref, o_ref, *, wo, po):
    """One image (grid axis 0) x one Cout tile (grid axis 1).

    a_ref : [1, 4, Pa, Cp]  bf16  parity planes (even/odd row x col) of the
                                  spatially padded input, flattened over the
                                  padded (Ho+1, Wo+1) output grid.
    w_ref : [9, Cp, tn]     bf16  per-tap weight matrices (tap = ki*3 + kj).
    b_ref : [1, tn]         f32   bias.
    o_ref : [1, Po, tn]     bf16  conv output on the padded output grid.
    """
    acc = None
    for ki in range(3):
        for kj in range(3):
            pi, di = ki % 2, ki // 2
            pj, dj = kj % 2, kj // 2
            plane = 2 * pi + pj
            shift = di * (wo + 1) + dj
            a_tap = a_ref[0, plane, pl.ds(shift, po), :]   # [Po, Cp] bf16
            w_tap = w_ref[ki * 3 + kj]                     # [Cp, tn] bf16
            part = jnp.dot(a_tap, w_tap, preferred_element_type=jnp.float32)
            acc = part if acc is None else acc + part
    out = jnp.maximum(acc + b_ref[...], 0.0)               # f32 epilogue (VPU)
    o_ref[0] = out.astype(o_ref.dtype)


def conv3x3_s2_relu(x, w_taps, bias):
    """x: [N, H, W, Cp] bf16 (H, W even; Cp multiple of 128).
    w_taps: [9, Cp, Coutp] bf16.  bias: [1, Coutp] f32.
    Returns [N, Ho, Wo, Coutp] bf16 (channel-padded)."""
    n, h, w, cp = x.shape
    ho, wo = h // 2, w // 2
    _, _, coutp = w_taps.shape

    # Spatial pad (=1) + parity space-to-depth: a stride-2 3x3 tap becomes a
    # constant row shift of a flattened [P, Cp] matrix (P = (Ho+1)*(Wo+1)).
    xp = jnp.pad(x, ((0, 0), (1, 1), (1, 1), (0, 0)))
    xr = xp.reshape(n, ho + 1, 2, wo + 1, 2, cp).transpose(0, 2, 4, 1, 3, 5)
    p = (ho + 1) * (wo + 1)
    po = _round_up(p, SUBLANE)                       # rows the kernel computes
    pa = po + _round_up(wo + 2, SUBLANE)             # + room for max tap shift
    a = xr.reshape(n, 4, p, cp)
    a = jnp.pad(a, ((0, 0), (0, 0), (0, pa - p), (0, 0)))

    tn = LANE
    grid = (n, coutp // tn)

    flops = 2 * n * po * (9 * cp) * coutp
    bytes_accessed = (a.size * a.dtype.itemsize
                      + w_taps.size * w_taps.dtype.itemsize
                      + bias.size * bias.dtype.itemsize
                      + n * po * coutp * 2)

    kernel = functools.partial(_conv3x3_s2_kernel, wo=wo, po=po)
    out = pl.pallas_call(
        kernel,
        out_shape=jax.ShapeDtypeStruct((n, po, coutp), jnp.bfloat16),
        grid_spec=pltpu.PrefetchScalarGridSpec(
            num_scalar_prefetch=0,
            grid=grid,
            in_specs=[
                pl.BlockSpec((1, 4, pa, cp), lambda i, j: (i, 0, 0, 0)),
                pl.BlockSpec((9, cp, tn), lambda i, j: (0, 0, j)),
                pl.BlockSpec((1, tn), lambda i, j: (0, j)),
            ],
            out_specs=pl.BlockSpec((1, po, tn), lambda i, j: (i, 0, j)),
        ),
        compiler_params=pltpu.CompilerParams(
            dimension_semantics=("parallel", "parallel"),
            vmem_limit_bytes=48 * 1024 * 1024,
        ),
        cost_estimate=pl.CostEstimate(
            flops=flops, transcendentals=0, bytes_accessed=bytes_accessed),
    )(a, w_taps, bias)

    # Drop the padded-grid junk rows/cols, back to spatial layout.
    y = out[:, :p, :].reshape(n, ho + 1, wo + 1, coutp)[:, :ho, :wo, :]
    return y


# ----------------------------------------------------------------------------
# Synthetic "Backboned" model (features_only=True semantics)
# ----------------------------------------------------------------------------
def init_backbone_params(key, in_chans=3, widths=(16, 32, 64)):
    raw = []
    cin = in_chans
    for idx, cout in enumerate(widths):
        wk, bk = jax.random.split(jax.random.fold_in(key, idx))
        fan_in = 3 * 3 * cin
        wgt = jax.random.normal(wk, (3, 3, cin, cout), jnp.float32)
        wgt = wgt * (2.0 / fan_in) ** 0.5                 # kaiming-ish
        b = 0.01 * jax.random.normal(bk, (cout,), jnp.float32)
        raw.append((wgt, b))
        cin = cout
    return raw


def pack_params(raw_params, in_chans=3):
    """Pad channels to 128-lane layout and cast to bf16 once, outside jit."""
    packed = []
    cin = in_chans
    for wgt, b in raw_params:
        _, _, _, cout = wgt.shape
        cp = _round_up(cin, LANE)
        coutp = _round_up(cout, LANE)
        wp = jnp.pad(wgt, ((0, 0), (0, 0), (0, cp - cin), (0, coutp - cout)))
        w_taps = wp.reshape(9, cp, coutp).astype(jnp.bfloat16)
        bp = jnp.pad(b, ((0, coutp - cout),)).reshape(1, coutp).astype(jnp.float32)
        packed.append((w_taps, bp))
        cin = cout
    return tuple(packed)


@functools.partial(jax.jit, static_argnums=(2,))
def backboned_forward(x_nchw, packed_params, couts):
    """Mirrors Backboned.forward: returns a tuple of NCHW multi-scale features."""
    n, cin, h, w = x_nchw.shape
    cp = _round_up(cin, LANE)
    x = jnp.transpose(x_nchw, (0, 2, 3, 1))                       # NHWC
    x = jnp.pad(x, ((0, 0), (0, 0), (0, 0), (0, cp - cin)))
    x = x.astype(jnp.bfloat16)                                    # bf16 activations
    feats = []
    for (w_taps, b), cout in zip(packed_params, couts):
        x = conv3x3_s2_relu(x, w_taps, b)                         # [N,Ho,Wo,Coutp] bf16
        f = x[..., :cout].astype(jnp.float32)                     # unpad at API boundary
        feats.append(jnp.transpose(f, (0, 3, 1, 2)))              # NCHW
    return tuple(feats)


# ----------------------------------------------------------------------------
# Pure-JAX reference (matches the kernel's bf16 activation/weight rounding)
# ----------------------------------------------------------------------------
def _reference_forward(x_nchw, raw_params):
    x = jnp.transpose(x_nchw, (0, 2, 3, 1))
    x = x.astype(jnp.bfloat16).astype(jnp.float32)
    feats = []
    for wgt, b in raw_params:
        wq = wgt.astype(jnp.bfloat16).astype(jnp.float32)
        y = jax.lax.conv_general_dilated(
            x, wq, window_strides=(2, 2), padding=((1, 1), (1, 1)),
            dimension_numbers=("NHWC", "HWIO", "NHWC"))
        y = jnp.maximum(y + b, 0.0)
        yq = y.astype(jnp.bfloat16).astype(jnp.float32)
        feats.append(jnp.transpose(yq, (0, 3, 1, 2)))
        x = yq
    return tuple(feats)


if __name__ == "__main__":
    key = jax.random.PRNGKey(0)
    pkey, xkey = jax.random.split(key)

    in_chans = 3
    widths = (16, 32, 64)
    raw_params = init_backbone_params(pkey, in_chans=in_chans, widths=widths)
    packed = pack_params(raw_params, in_chans=in_chans)

    # Small image batch consistent with an ImageNet-style backbone (3 chans).
    x = jax.random.normal(xkey, (2, 3, 16, 16), jnp.float32)

    feats = backboned_forward(x, packed, widths)
    feats = jax.block_until_ready(feats)

    # features_only backbones return multi-scale maps: strides 2, 4, 8.
    expected = [(2, 16, 8, 8), (2, 32, 4, 4), (2, 64, 2, 2)]
    got = [tuple(f.shape) for f in feats]
    assert got == expected, got
    assert all(bool(jnp.all(jnp.isfinite(f))) for f in feats)
    assert all(bool(jnp.all(f >= 0.0)) for f in feats)       # ReLU outputs

    refs = _reference_forward(x, raw_params)
    for f, r in zip(feats, refs):
        np.testing.assert_allclose(np.asarray(f), np.asarray(r),
                                   atol=1e-1, rtol=1e-1)

    print("KERNEL_OK")
</pallas_src>

<mosaic_0001>
module attributes {stable_mosaic.version = 11 : i64} {
  func.func @_conv3x3_s2_kernel(%arg0: i32, %arg1: i32, %arg2: memref<1x4x104x128xbf16, #tpu.memory_space<vmem>>, %arg3: memref<9x128x128xbf16, #tpu.memory_space<vmem>>, %arg4: memref<1x128xf32, #tpu.memory_space<vmem>>, %arg5: memref<1x88x128xbf16, #tpu.memory_space<vmem>>) attributes {dimension_semantics = [#tpu.dimension_semantics<parallel>, #tpu.dimension_semantics<parallel>], iteration_bounds = array<i64: 2, 1>, scalar_prefetch = 0 : i64, scratch_operands = 0 : i64, tpu.core_type = #tpu.core_type<tc>, window_params = [{transform_indices = @transform_0, window_bounds = array<i64: 1, 4, 104, 128>}, {transform_indices = @transform_1, window_bounds = array<i64: 9, 128, 128>}, {transform_indices = @transform_2, window_bounds = array<i64: 1, 128>}, {transform_indices = @transform_3, window_bounds = array<i64: 1, 88, 128>}]} {
    %c0 = arith.constant 0 : index
    %c0_0 = arith.constant 0 : index
    %c0_1 = arith.constant 0 : index
    %c0_2 = arith.constant 0 : index
    %0 = vector.load %arg2[%c0, %c0_0, %c0_1, %c0_2] : memref<1x4x104x128xbf16, #tpu.memory_space<vmem>>, vector<1x1x88x128xbf16>
    %1 = vector.shape_cast %0 : vector<1x1x88x128xbf16> to vector<88x128xbf16>
    %c0_3 = arith.constant 0 : index
    %c0_4 = arith.constant 0 : index
    %c0_5 = arith.constant 0 : index
    %2 = vector.load %arg3[%c0_3, %c0_4, %c0_5] : memref<9x128x128xbf16, #tpu.memory_space<vmem>>, vector<1x128x128xbf16>
    %3 = vector.shape_cast %2 : vector<1x128x128xbf16> to vector<128x128xbf16>
    %cst = arith.constant dense<0.000000e+00> : vector<88x128xf32>
    %4 = tpu.matmul %1, %3, %cst {dimension_numbers = #tpu.dot_dimension_numbers<[1], [0], [0], [1], [0, 0, 1, 1], [], []>} : vector<88x128xbf16>, vector<128x128xbf16>, vector<88x128xf32> -> vector<88x128xf32>
    %c0_6 = arith.constant 0 : index
    %c1 = arith.constant 1 : index
    %c0_7 = arith.constant 0 : index
    %c0_8 = arith.constant 0 : index
    %5 = vector.load %arg2[%c0_6, %c1, %c0_7, %c0_8] : memref<1x4x104x128xbf16, #tpu.memory_space<vmem>>, vector<1x1x88x128xbf16>
    %6 = vector.shape_cast %5 : vector<1x1x88x128xbf16> to vector<88x128xbf16>
    %c1_9 = arith.constant 1 : index
    %c0_10 = arith.constant 0 : index
    %c0_11 = arith.constant 0 : index
    %7 = vector.load %arg3[%c1_9, %c0_10, %c0_11] : memref<9x128x128xbf16, #tpu.memory_space<vmem>>, vector<1x128x128xbf16>
    %8 = vector.shape_cast %7 : vector<1x128x128xbf16> to vector<128x128xbf16>
    %cst_12 = arith.constant dense<0.000000e+00> : vector<88x128xf32>
    %9 = tpu.matmul %6, %8, %cst_12 {dimension_numbers = #tpu.dot_dimension_numbers<[1], [0], [0], [1], [0, 0, 1, 1], [], []>} : vector<88x128xbf16>, vector<128x128xbf16>, vector<88x128xf32> -> vector<88x128xf32>
    %10 = arith.addf %4, %9 : vector<88x128xf32>
    %c0_13 = arith.constant 0 : index
    %c0_14 = arith.constant 0 : index
    %c1_15 = arith.constant 1 : index
    %c0_16 = arith.constant 0 : index
    %11 = vector.load %arg2[%c0_13, %c0_14, %c1_15, %c0_16] : memref<1x4x104x128xbf16, #tpu.memory_space<vmem>>, vector<1x1x88x128xbf16>
    %12 = vector.shape_cast %11 : vector<1x1x88x128xbf16> to vector<88x128xbf16>
    %c2 = arith.constant 2 : index
    %c0_17 = arith.constant 0 : index
    %c0_18 = arith.constant 0 : index
    %13 = vector.load %arg3[%c2, %c0_17, %c0_18] : memref<9x128x128xbf16, #tpu.memory_space<vmem>>, vector<1x128x128xbf16>
    %14 = vector.shape_cast %13 : vector<1x128x128xbf16> to vector<128x128xbf16>
    %cst_19 = arith.constant dense<0.000000e+00> : vector<88x128xf32>
    %15 = tpu.matmul %12, %14, %cst_19 {dimension_numbers = #tpu.dot_dimension_numbers<[1], [0], [0], [1], [0, 0, 1, 1], [], []>} : vector<88x128xbf16>, vector<128x128xbf16>, vector<88x128xf32> -> vector<88x128xf32>
    %16 = arith.addf %10, %15 : vector<88x128xf32>
    %c0_20 = arith.constant 0 : index
    %c2_21 = arith.constant 2 : index
    %c0_22 = arith.constant 0 : index
    %c0_23 = arith.constant 0 : index
    %17 = vector.load %arg2[%c0_20, %c2_21, %c0_22, %c0_23] : memref<1x4x104x128xbf16, #tpu.memory_space<vmem>>, vector<1x1x88x128xbf16>
    %18 = vector.shape_cast %17 : vector<1x1x88x128xbf16> to vector<88x128xbf16>
    %c3 = arith.constant 3 : index
    %c0_24 = arith.constant 0 : index
    %c0_25 = arith.constant 0 : index
    %19 = vector.load %arg3[%c3, %c0_24, %c0_25] : memref<9x128x128xbf16, #tpu.memory_space<vmem>>, vector<1x128x128xbf16>
    %20 = vector.shape_cast %19 : vector<1x128x128xbf16> to vector<128x128xbf16>
    %cst_26 = arith.constant dense<0.000000e+00> : vector<88x128xf32>
    %21 = tpu.matmul %18, %20, %cst_26 {dimension_numbers = #tpu.dot_dimension_numbers<[1], [0], [0], [1], [0, 0, 1, 1], [], []>} : vector<88x128xbf16>, vector<128x128xbf16>, vector<88x128xf32> -> vector<88x128xf32>
    %22 = arith.addf %16, %21 : vector<88x128xf32>
    %c0_27 = arith.constant 0 : index
    %c3_28 = arith.constant 3 : index
    %c0_29 = arith.constant 0 : index
    %c0_30 = arith.constant 0 : index
    %23 = vector.load %arg2[%c0_27, %c3_28, %c0_29, %c0_30] : memref<1x4x104x128xbf16, #tpu.memory_space<vmem>>, vector<1x1x88x128xbf16>
    %24 = vector.shape_cast %23 : vector<1x1x88x128xbf16> to vector<88x128xbf16>
    %c4 = arith.constant 4 : index
    %c0_31 = arith.constant 0 : index
    %c0_32 = arith.constant 0 : index
    %25 = vector.load %arg3[%c4, %c0_31, %c0_32] : memref<9x128x128xbf16, #tpu.memory_space<vmem>>, vector<1x128x128xbf16>
    %26 = vector.shape_cast %25 : vector<1x128x128xbf16> to vector<128x128xbf16>
    %cst_33 = arith.constant dense<0.000000e+00> : vector<88x128xf32>
    %27 = tpu.matmul %24, %26, %cst_33 {dimension_numbers = #tpu.dot_dimension_numbers<[1], [0], [0], [1], [0, 0, 1, 1], [], []>} : vector<88x128xbf16>, vector<128x128xbf16>, vector<88x128xf32> -> vector<88x128xf32>
    %28 = arith.addf %22, %27 : vector<88x128xf32>
    %c0_34 = arith.constant 0 : index
    %c2_35 = arith.constant 2 : index
    %c1_36 = arith.constant 1 : index
    %c0_37 = arith.constant 0 : index
    %29 = vector.load %arg2[%c0_34, %c2_35, %c1_36, %c0_37] : memref<1x4x104x128xbf16, #tpu.memory_space<vmem>>, vector<1x1x88x128xbf16>
    %30 = vector.shape_cast %29 : vector<1x1x88x128xbf16> to vector<88x128xbf16>
    %c5 = arith.constant 5 : index
    %c0_38 = arith.constant 0 : index
    %c0_39 = arith.constant 0 : index
    %31 = vector.load %arg3[%c5, %c0_38, %c0_39] : memref<9x128x128xbf16, #tpu.memory_space<vmem>>, vector<1x128x128xbf16>
    %32 = vector.shape_cast %31 : vector<1x128x128xbf16> to vector<128x128xbf16>
    %cst_40 = arith.constant dense<0.000000e+00> : vector<88x128xf32>
    %33 = tpu.matmul %30, %32, %cst_40 {dimension_numbers = #tpu.dot_dimension_numbers<[1], [0], [0], [1], [0, 0, 1, 1], [], []>} : vector<88x128xbf16>, vector<128x128xbf16>, vector<88x128xf32> -> vector<88x128xf32>
    %34 = arith.addf %28, %33 : vector<88x128xf32>
    %c0_41 = arith.constant 0 : index
    %c0_42 = arith.constant 0 : index
    %c9 = arith.constant 9 : index
    %c0_43 = arith.constant 0 : index
    %35 = vector.load %arg2[%c0_41, %c0_42, %c9, %c0_43] : memref<1x4x104x128xbf16, #tpu.memory_space<vmem>>, vector<1x1x88x128xbf16>
    %36 = vector.shape_cast %35 : vector<1x1x88x128xbf16> to vector<88x128xbf16>
    %c6 = arith.constant 6 : index
    %c0_44 = arith.constant 0 : index
    %c0_45 = arith.constant 0 : index
    %37 = vector.load %arg3[%c6, %c0_44, %c0_45] : memref<9x128x128xbf16, #tpu.memory_space<vmem>>, vector<1x128x128xbf16>
    %38 = vector.shape_cast %37 : vector<1x128x128xbf16> to vector<128x128xbf16>
    %cst_46 = arith.constant dense<0.000000e+00> : vector<88x128xf32>
    %39 = tpu.matmul %36, %38, %cst_46 {dimension_numbers = #tpu.dot_dimension_numbers<[1], [0], [0], [1], [0, 0, 1, 1], [], []>} : vector<88x128xbf16>, vector<128x128xbf16>, vector<88x128xf32> -> vector<88x128xf32>
    %40 = arith.addf %34, %39 : vector<88x128xf32>
    %c0_47 = arith.constant 0 : index
    %c1_48 = arith.constant 1 : index
    %c9_49 = arith.constant 9 : index
    %c0_50 = arith.constant 0 : index
    %41 = vector.load %arg2[%c0_47, %c1_48, %c9_49, %c0_50] : memref<1x4x104x128xbf16, #tpu.memory_space<vmem>>, vector<1x1x88x128xbf16>
    %42 = vector.shape_cast %41 : vector<1x1x88x128xbf16> to vector<88x128xbf16>
    %c7 = arith.constant 7 : index
    %c0_51 = arith.constant 0 : index
    %c0_52 = arith.constant 0 : index
    %43 = vector.load %arg3[%c7, %c0_51, %c0_52] : memref<9x128x128xbf16, #tpu.memory_space<vmem>>, vector<1x128x128xbf16>
    %44 = vector.shape_cast %43 : vector<1x128x128xbf16> to vector<128x128xbf16>
    %cst_53 = arith.constant dense<0.000000e+00> : vector<88x128xf32>
    %45 = tpu.matmul %42, %44, %cst_53 {dimension_numbers = #tpu.dot_dimension_numbers<[1], [0], [0], [1], [0, 0, 1, 1], [], []>} : vector<88x128xbf16>, vector<128x128xbf16>, vector<88x128xf32> -> vector<88x128xf32>
    %46 = arith.addf %40, %45 : vector<88x128xf32>
    %c0_54 = arith.constant 0 : index
    %c0_55 = arith.constant 0 : index
    %c10 = arith.constant 10 : index
    %c0_56 = arith.constant 0 : index
    %47 = vector.load %arg2[%c0_54, %c0_55, %c10, %c0_56] : memref<1x4x104x128xbf16, #tpu.memory_space<vmem>>, vector<1x1x88x128xbf16>
    %48 = vector.shape_cast %47 : vector<1x1x88x128xbf16> to vector<88x128xbf16>
    %c8 = arith.constant 8 : index
    %c0_57 = arith.constant 0 : index
    %c0_58 = arith.constant 0 : index
    %49 = vector.load %arg3[%c8, %c0_57, %c0_58] : memref<9x128x128xbf16, #tpu.memory_space<vmem>>, vector<1x128x128xbf16>
    %50 = vector.shape_cast %49 : vector<1x128x128xbf16> to vector<128x128xbf16>
    %cst_59 = arith.constant dense<0.000000e+00> : vector<88x128xf32>
    %51 = tpu.matmul %48, %50, %cst_59 {dimension_numbers = #tpu.dot_dimension_numbers<[1], [0], [0], [1], [0, 0, 1, 1], [], []>} : vector<88x128xbf16>, vector<128x128xbf16>, vector<88x128xf32> -> vector<88x128xf32>
    %52 = arith.addf %46, %51 : vector<88x128xf32>
    %c0_60 = arith.constant 0 : index
    %c0_61 = arith.constant 0 : index
    %53 = vector.load %arg4[%c0_60, %c0_61] : memref<1x128xf32, #tpu.memory_space<vmem>>, vector<1x128xf32>
    %54 = vector.broadcast %53 : vector<1x128xf32> to vector<88x128xf32>
    %55 = arith.addf %52, %54 : vector<88x128xf32>
    %cst_62 = arith.constant 0.000000e+00 : f32
    %56 = vector.broadcast %cst_62 : f32 to vector<88x128xf32>
    %57 = arith.maximumf %55, %56 : vector<88x128xf32>
    %58 = arith.truncf %57 : vector<88x128xf32> to vector<88x128xbf16>
    %c0_63 = arith.constant 0 : index
    %c0_64 = arith.constant 0 : index
    %c0_65 = arith.constant 0 : index
    %59 = vector.load %arg5[%c0_63, %c0_64, %c0_65] : memref<1x88x128xbf16, #tpu.memory_space<vmem>>, vector<1x88x128xbf16>
    %60 = vector.shape_cast %59 : vector<1x88x128xbf16> to vector<88x128xbf16>
    %61 = vector.shape_cast %58 : vector<88x128xbf16> to vector<1x88x128xbf16>
    tpu.vector_store %arg5[%c0_63, %c0_64, %c0_65], %61 {strides = array<i32>} : memref<1x88x128xbf16, #tpu.memory_space<vmem>>, vector<1x88x128xbf16>,
    return
  }
  func.func @transform_0(%arg0: i32, %arg1: i32) -> (i32, i32, i32, i32) {
    %c0_i32 = arith.constant 0 : i32
    %c0_i32_0 = arith.constant 0 : i32
    %c0_i32_1 = arith.constant 0 : i32
    %c0_i32_2 = arith.constant 0 : i32
    return %arg0, %c0_i32, %c0_i32_0, %c0_i32_1 : i32, i32, i32, i32
  }
  func.func @transform_1(%arg0: i32, %arg1: i32) -> (i32, i32, i32) {
    %c0_i32 = arith.constant 0 : i32
    %c0_i32_0 = arith.constant 0 : i32
    %c0_i32_1 = arith.constant 0 : i32
    return %c0_i32, %c0_i32_0, %arg1 : i32, i32, i32
  }
  func.func @transform_2(%arg0: i32, %arg1: i32) -> (i32, i32) {
    %c0_i32 = arith.constant 0 : i32
    %c0_i32_0 = arith.constant 0 : i32
    return %c0_i32, %arg1 : i32, i32
  }
  func.func @transform_3(%arg0: i32, %arg1: i32) -> (i32, i32, i32) {
    %c0_i32 = arith.constant 0 : i32
    %c0_i32_0 = arith.constant 0 : i32
    return %arg0, %c0_i32, %arg1 : i32, i32, i32
  }
}

module attributes {stable_mosaic.version = 11 : i64} {
  func.func @_conv3x3_s2_kernel(%arg0: i32, %arg1: i32, %arg2: memref<1x4x40x128xbf16, #tpu.memory_space<vmem>>, %arg3: memref<9x128x128xbf16, #tpu.memory_space<vmem>>, %arg4: memref<1x128xf32, #tpu.memory_space<vmem>>, %arg5: memref<1x32x128xbf16, #tpu.memory_space<vmem>>) attributes {dimension_semantics = [#tpu.dimension_semantics<parallel>, #tpu.dimension_semantics<parallel>], iteration_bounds = array<i64: 2, 1>, scalar_prefetch = 0 : i64, scratch_operands = 0 : i64, tpu.core_type = #tpu.core_type<tc>, window_params = [{transform_indices = @transform_0, window_bounds = array<i64: 1, 4, 40, 128>}, {transform_indices = @transform_1, window_bounds = array<i64: 9, 128, 128>}, {transform_indices = @transform_2, window_bounds = array<i64: 1, 128>}, {transform_indices = @transform_3, window_bounds = array<i64: 1, 32, 128>}]} {
    %c0 = arith.constant 0 : index
    %c0_0 = arith.constant 0 : index
    %c0_1 = arith.constant 0 : index
    %c0_2 = arith.constant 0 : index
    %0 = vector.load %arg2[%c0, %c0_0, %c0_1, %c0_2] : memref<1x4x40x128xbf16, #tpu.memory_space<vmem>>, vector<1x1x32x128xbf16>
    %1 = vector.shape_cast %0 : vector<1x1x32x128xbf16> to vector<32x128xbf16>
    %c0_3 = arith.constant 0 : index
    %c0_4 = arith.constant 0 : index
    %c0_5 = arith.constant 0 : index
    %2 = vector.load %arg3[%c0_3, %c0_4, %c0_5] : memref<9x128x128xbf16, #tpu.memory_space<vmem>>, vector<1x128x128xbf16>
    %3 = vector.shape_cast %2 : vector<1x128x128xbf16> to vector<128x128xbf16>
    %cst = arith.constant dense<0.000000e+00> : vector<32x128xf32>
    %4 = tpu.matmul %1, %3, %cst {dimension_numbers = #tpu.dot_dimension_numbers<[1], [0], [0], [1], [0, 0, 1, 1], [], []>} : vector<32x128xbf16>, vector<128x128xbf16>, vector<32x128xf32> -> vector<32x128xf32>
    %c0_6 = arith.constant 0 : index
    %c1 = arith.constant 1 : index
    %c0_7 = arith.constant 0 : index
    %c0_8 = arith.constant 0 : index
    %5 = vector.load %arg2[%c0_6, %c1, %c0_7, %c0_8] : memref<1x4x40x128xbf16, #tpu.memory_space<vmem>>, vector<1x1x32x128xbf16>
    %6 = vector.shape_cast %5 : vector<1x1x32x128xbf16> to vector<32x128xbf16>
    %c1_9 = arith.constant 1 : index
    %c0_10 = arith.constant 0 : index
    %c0_11 = arith.constant 0 : index
    %7 = vector.load %arg3[%c1_9, %c0_10, %c0_11] : memref<9x128x128xbf16, #tpu.memory_space<vmem>>, vector<1x128x128xbf16>
    %8 = vector.shape_cast %7 : vector<1x128x128xbf16> to vector<128x128xbf16>
    %cst_12 = arith.constant dense<0.000000e+00> : vector<32x128xf32>
    %9 = tpu.matmul %6, %8, %cst_12 {dimension_numbers = #tpu.dot_dimension_numbers<[1], [0], [0], [1], [0, 0, 1, 1], [], []>} : vector<32x128xbf16>, vector<128x128xbf16>, vector<32x128xf32> -> vector<32x128xf32>
    %10 = arith.addf %4, %9 : vector<32x128xf32>
    %c0_13 = arith.constant 0 : index
    %c0_14 = arith.constant 0 : index
    %c1_15 = arith.constant 1 : index
    %c0_16 = arith.constant 0 : index
    %11 = vector.load %arg2[%c0_13, %c0_14, %c1_15, %c0_16] : memref<1x4x40x128xbf16, #tpu.memory_space<vmem>>, vector<1x1x32x128xbf16>
    %12 = vector.shape_cast %11 : vector<1x1x32x128xbf16> to vector<32x128xbf16>
    %c2 = arith.constant 2 : index
    %c0_17 = arith.constant 0 : index
    %c0_18 = arith.constant 0 : index
    %13 = vector.load %arg3[%c2, %c0_17, %c0_18] : memref<9x128x128xbf16, #tpu.memory_space<vmem>>, vector<1x128x128xbf16>
    %14 = vector.shape_cast %13 : vector<1x128x128xbf16> to vector<128x128xbf16>
    %cst_19 = arith.constant dense<0.000000e+00> : vector<32x128xf32>
    %15 = tpu.matmul %12, %14, %cst_19 {dimension_numbers = #tpu.dot_dimension_numbers<[1], [0], [0], [1], [0, 0, 1, 1], [], []>} : vector<32x128xbf16>, vector<128x128xbf16>, vector<32x128xf32> -> vector<32x128xf32>
    %16 = arith.addf %10, %15 : vector<32x128xf32>
    %c0_20 = arith.constant 0 : index
    %c2_21 = arith.constant 2 : index
    %c0_22 = arith.constant 0 : index
    %c0_23 = arith.constant 0 : index
    %17 = vector.load %arg2[%c0_20, %c2_21, %c0_22, %c0_23] : memref<1x4x40x128xbf16, #tpu.memory_space<vmem>>, vector<1x1x32x128xbf16>
    %18 = vector.shape_cast %17 : vector<1x1x32x128xbf16> to vector<32x128xbf16>
    %c3 = arith.constant 3 : index
    %c0_24 = arith.constant 0 : index
    %c0_25 = arith.constant 0 : index
    %19 = vector.load %arg3[%c3, %c0_24, %c0_25] : memref<9x128x128xbf16, #tpu.memory_space<vmem>>, vector<1x128x128xbf16>
    %20 = vector.shape_cast %19 : vector<1x128x128xbf16> to vector<128x128xbf16>
    %cst_26 = arith.constant dense<0.000000e+00> : vector<32x128xf32>
    %21 = tpu.matmul %18, %20, %cst_26 {dimension_numbers = #tpu.dot_dimension_numbers<[1], [0], [0], [1], [0, 0, 1, 1], [], []>} : vector<32x128xbf16>, vector<128x128xbf16>, vector<32x128xf32> -> vector<32x128xf32>
    %22 = arith.addf %16, %21 : vector<32x128xf32>
    %c0_27 = arith.constant 0 : index
    %c3_28 = arith.constant 3 : index
    %c0_29 = arith.constant 0 : index
    %c0_30 = arith.constant 0 : index
    %23 = vector.load %arg2[%c0_27, %c3_28, %c0_29, %c0_30] : memref<1x4x40x128xbf16, #tpu.memory_space<vmem>>, vector<1x1x32x128xbf16>
    %24 = vector.shape_cast %23 : vector<1x1x32x128xbf16> to vector<32x128xbf16>
    %c4 = arith.constant 4 : index
    %c0_31 = arith.constant 0 : index
    %c0_32 = arith.constant 0 : index
    %25 = vector.load %arg3[%c4, %c0_31, %c0_32] : memref<9x128x128xbf16, #tpu.memory_space<vmem>>, vector<1x128x128xbf16>
    %26 = vector.shape_cast %25 : vector<1x128x128xbf16> to vector<128x128xbf16>
    %cst_33 = arith.constant dense<0.000000e+00> : vector<32x128xf32>
    %27 = tpu.matmul %24, %26, %cst_33 {dimension_numbers = #tpu.dot_dimension_numbers<[1], [0], [0], [1], [0, 0, 1, 1], [], []>} : vector<32x128xbf16>, vector<128x128xbf16>, vector<32x128xf32> -> vector<32x128xf32>
    %28 = arith.addf %22, %27 : vector<32x128xf32>
    %c0_34 = arith.constant 0 : index
    %c2_35 = arith.constant 2 : index
    %c1_36 = arith.constant 1 : index
    %c0_37 = arith.constant 0 : index
    %29 = vector.load %arg2[%c0_34, %c2_35, %c1_36, %c0_37] : memref<1x4x40x128xbf16, #tpu.memory_space<vmem>>, vector<1x1x32x128xbf16>
    %30 = vector.shape_cast %29 : vector<1x1x32x128xbf16> to vector<32x128xbf16>
    %c5 = arith.constant 5 : index
    %c0_38 = arith.constant 0 : index
    %c0_39 = arith.constant 0 : index
    %31 = vector.load %arg3[%c5, %c0_38, %c0_39] : memref<9x128x128xbf16, #tpu.memory_space<vmem>>, vector<1x128x128xbf16>
    %32 = vector.shape_cast %31 : vector<1x128x128xbf16> to vector<128x128xbf16>
    %cst_40 = arith.constant dense<0.000000e+00> : vector<32x128xf32>
    %33 = tpu.matmul %30, %32, %cst_40 {dimension_numbers = #tpu.dot_dimension_numbers<[1], [0], [0], [1], [0, 0, 1, 1], [], []>} : vector<32x128xbf16>, vector<128x128xbf16>, vector<32x128xf32> -> vector<32x128xf32>
    %34 = arith.addf %28, %33 : vector<32x128xf32>
    %c0_41 = arith.constant 0 : index
    %c0_42 = arith.constant 0 : index
    %c5_43 = arith.constant 5 : index
    %c0_44 = arith.constant 0 : index
    %35 = vector.load %arg2[%c0_41, %c0_42, %c5_43, %c0_44] : memref<1x4x40x128xbf16, #tpu.memory_space<vmem>>, vector<1x1x32x128xbf16>
    %36 = vector.shape_cast %35 : vector<1x1x32x128xbf16> to vector<32x128xbf16>
    %c6 = arith.constant 6 : index
    %c0_45 = arith.constant 0 : index
    %c0_46 = arith.constant 0 : index
    %37 = vector.load %arg3[%c6, %c0_45, %c0_46] : memref<9x128x128xbf16, #tpu.memory_space<vmem>>, vector<1x128x128xbf16>
    %38 = vector.shape_cast %37 : vector<1x128x128xbf16> to vector<128x128xbf16>
    %cst_47 = arith.constant dense<0.000000e+00> : vector<32x128xf32>
    %39 = tpu.matmul %36, %38, %cst_47 {dimension_numbers = #tpu.dot_dimension_numbers<[1], [0], [0], [1], [0, 0, 1, 1], [], []>} : vector<32x128xbf16>, vector<128x128xbf16>, vector<32x128xf32> -> vector<32x128xf32>
    %40 = arith.addf %34, %39 : vector<32x128xf32>
    %c0_48 = arith.constant 0 : index
    %c1_49 = arith.constant 1 : index
    %c5_50 = arith.constant 5 : index
    %c0_51 = arith.constant 0 : index
    %41 = vector.load %arg2[%c0_48, %c1_49, %c5_50, %c0_51] : memref<1x4x40x128xbf16, #tpu.memory_space<vmem>>, vector<1x1x32x128xbf16>
    %42 = vector.shape_cast %41 : vector<1x1x32x128xbf16> to vector<32x128xbf16>
    %c7 = arith.constant 7 : index
    %c0_52 = arith.constant 0 : index
    %c0_53 = arith.constant 0 : index
    %43 = vector.load %arg3[%c7, %c0_52, %c0_53] : memref<9x128x128xbf16, #tpu.memory_space<vmem>>, vector<1x128x128xbf16>
    %44 = vector.shape_cast %43 : vector<1x128x128xbf16> to vector<128x128xbf16>
    %cst_54 = arith.constant dense<0.000000e+00> : vector<32x128xf32>
    %45 = tpu.matmul %42, %44, %cst_54 {dimension_numbers = #tpu.dot_dimension_numbers<[1], [0], [0], [1], [0, 0, 1, 1], [], []>} : vector<32x128xbf16>, vector<128x128xbf16>, vector<32x128xf32> -> vector<32x128xf32>
    %46 = arith.addf %40, %45 : vector<32x128xf32>
    %c0_55 = arith.constant 0 : index
    %c0_56 = arith.constant 0 : index
    %c6_57 = arith.constant 6 : index
    %c0_58 = arith.constant 0 : index
    %47 = vector.load %arg2[%c0_55, %c0_56, %c6_57, %c0_58] : memref<1x4x40x128xbf16, #tpu.memory_space<vmem>>, vector<1x1x32x128xbf16>
    %48 = vector.shape_cast %47 : vector<1x1x32x128xbf16> to vector<32x128xbf16>
    %c8 = arith.constant 8 : index
    %c0_59 = arith.constant 0 : index
    %c0_60 = arith.constant 0 : index
    %49 = vector.load %arg3[%c8, %c0_59, %c0_60] : memref<9x128x128xbf16, #tpu.memory_space<vmem>>, vector<1x128x128xbf16>
    %50 = vector.shape_cast %49 : vector<1x128x128xbf16> to vector<128x128xbf16>
    %cst_61 = arith.constant dense<0.000000e+00> : vector<32x128xf32>
    %51 = tpu.matmul %48, %50, %cst_61 {dimension_numbers = #tpu.dot_dimension_numbers<[1], [0], [0], [1], [0, 0, 1, 1], [], []>} : vector<32x128xbf16>, vector<128x128xbf16>, vector<32x128xf32> -> vector<32x128xf32>
    %52 = arith.addf %46, %51 : vector<32x128xf32>
    %c0_62 = arith.constant 0 : index
    %c0_63 = arith.constant 0 : index
    %53 = vector.load %arg4[%c0_62, %c0_63] : memref<1x128xf32, #tpu.memory_space<vmem>>, vector<1x128xf32>
    %54 = vector.broadcast %53 : vector<1x128xf32> to vector<32x128xf32>
    %55 = arith.addf %52, %54 : vector<32x128xf32>
    %cst_64 = arith.constant 0.000000e+00 : f32
    %56 = vector.broadcast %cst_64 : f32 to vector<32x128xf32>
    %57 = arith.maximumf %55, %56 : vector<32x128xf32>
    %58 = arith.truncf %57 : vector<32x128xf32> to vector<32x128xbf16>
    %c0_65 = arith.constant 0 : index
    %c0_66 = arith.constant 0 : index
    %c0_67 = arith.constant 0 : index
    %59 = vector.load %arg5[%c0_65, %c0_66, %c0_67] : memref<1x32x128xbf16, #tpu.memory_space<vmem>>, vector<1x32x128xbf16>
    %60 = vector.shape_cast %59 : vector<1x32x128xbf16> to vector<32x128xbf16>
    %61 = vector.shape_cast %58 : vector<32x128xbf16> to vector<1x32x128xbf16>
    tpu.vector_store %arg5[%c0_65, %c0_66, %c0_67], %61 {strides = array<i32>} : memref<1x32x128xbf16, #tpu.memory_space<vmem>>, vector<1x32x128xbf16>,
    return
  }
  func.func @transform_0(%arg0: i32, %arg1: i32) -> (i32, i32, i32, i32) {
    %c0_i32 = arith.constant 0 : i32
    %c0_i32_0 = arith.constant 0 : i32
    %c0_i32_1 = arith.constant 0 : i32
    %c0_i32_2 = arith.constant 0 : i32
    return %arg0, %c0_i32, %c0_i32_0, %c0_i32_1 : i32, i32, i32, i32
  }
  func.func @transform_1(%arg0: i32, %arg1: i32) -> (i32, i32, i32) {
    %c0_i32 = arith.constant 0 : i32
    %c0_i32_0 = arith.constant 0 : i32
    %c0_i32_1 = arith.constant 0 : i32
    return %c0_i32, %c0_i32_0, %arg1 : i32, i32, i32
  }
  func.func @transform_2(%arg0: i32, %arg1: i32) -> (i32, i32) {
    %c0_i32 = arith.constant 0 : i32
    %c0_i32_0 = arith.constant 0 : i32
    return %c0_i32, %arg1 : i32, i32
  }
  func.func @transform_3(%arg0: i32, %arg1: i32) -> (i32, i32, i32) {
    %c0_i32 = arith.constant 0 : i32
    %c0_i32_0 = arith.constant 0 : i32
    return %arg0, %c0_i32, %arg1 : i32, i32, i32
  }
}

module attributes {stable_mosaic.version = 11 : i64} {
  func.func @_conv3x3_s2_kernel(%arg0: i32, %arg1: i32, %arg2: memref<1x4x24x128xbf16, #tpu.memory_space<vmem>>, %arg3: memref<9x128x128xbf16, #tpu.memory_space<vmem>>, %arg4: memref<1x128xf32, #tpu.memory_space<vmem>>, %arg5: memref<1x16x128xbf16, #tpu.memory_space<vmem>>) attributes {dimension_semantics = [#tpu.dimension_semantics<parallel>, #tpu.dimension_semantics<parallel>], iteration_bounds = array<i64: 2, 1>, scalar_prefetch = 0 : i64, scratch_operands = 0 : i64, tpu.core_type = #tpu.core_type<tc>, window_params = [{transform_indices = @transform_0, window_bounds = array<i64: 1, 4, 24, 128>}, {transform_indices = @transform_1, window_bounds = array<i64: 9, 128, 128>}, {transform_indices = @transform_2, window_bounds = array<i64: 1, 128>}, {transform_indices = @transform_3, window_bounds = array<i64: 1, 16, 128>}]} {
    %c0 = arith.constant 0 : index
    %c0_0 = arith.constant 0 : index
    %c0_1 = arith.constant 0 : index
    %c0_2 = arith.constant 0 : index
    %0 = vector.load %arg2[%c0, %c0_0, %c0_1, %c0_2] : memref<1x4x24x128xbf16, #tpu.memory_space<vmem>>, vector<1x1x16x128xbf16>
    %1 = vector.shape_cast %0 : vector<1x1x16x128xbf16> to vector<16x128xbf16>
    %c0_3 = arith.constant 0 : index
    %c0_4 = arith.constant 0 : index
    %c0_5 = arith.constant 0 : index
    %2 = vector.load %arg3[%c0_3, %c0_4, %c0_5] : memref<9x128x128xbf16, #tpu.memory_space<vmem>>, vector<1x128x128xbf16>
    %3 = vector.shape_cast %2 : vector<1x128x128xbf16> to vector<128x128xbf16>
    %cst = arith.constant dense<0.000000e+00> : vector<16x128xf32>
    %4 = tpu.matmul %1, %3, %cst {dimension_numbers = #tpu.dot_dimension_numbers<[1], [0], [0], [1], [0, 0, 1, 1], [], []>} : vector<16x128xbf16>, vector<128x128xbf16>, vector<16x128xf32> -> vector<16x128xf32>
    %c0_6 = arith.constant 0 : index
    %c1 = arith.constant 1 : index
    %c0_7 = arith.constant 0 : index
    %c0_8 = arith.constant 0 : index
    %5 = vector.load %arg2[%c0_6, %c1, %c0_7, %c0_8] : memref<1x4x24x128xbf16, #tpu.memory_space<vmem>>, vector<1x1x16x128xbf16>
    %6 = vector.shape_cast %5 : vector<1x1x16x128xbf16> to vector<16x128xbf16>
    %c1_9 = arith.constant 1 : index
    %c0_10 = arith.constant 0 : index
    %c0_11 = arith.constant 0 : index
    %7 = vector.load %arg3[%c1_9, %c0_10, %c0_11] : memref<9x128x128xbf16, #tpu.memory_space<vmem>>, vector<1x128x128xbf16>
    %8 = vector.shape_cast %7 : vector<1x128x128xbf16> to vector<128x128xbf16>
    %cst_12 = arith.constant dense<0.000000e+00> : vector<16x128xf32>
    %9 = tpu.matmul %6, %8, %cst_12 {dimension_numbers = #tpu.dot_dimension_numbers<[1], [0], [0], [1], [0, 0, 1, 1], [], []>} : vector<16x128xbf16>, vector<128x128xbf16>, vector<16x128xf32> -> vector<16x128xf32>
    %10 = arith.addf %4, %9 : vector<16x128xf32>
    %c0_13 = arith.constant 0 : index
    %c0_14 = arith.constant 0 : index
    %c1_15 = arith.constant 1 : index
    %c0_16 = arith.constant 0 : index
    %11 = vector.load %arg2[%c0_13, %c0_14, %c1_15, %c0_16] : memref<1x4x24x128xbf16, #tpu.memory_space<vmem>>, vector<1x1x16x128xbf16>
    %12 = vector.shape_cast %11 : vector<1x1x16x128xbf16> to vector<16x128xbf16>
    %c2 = arith.constant 2 : index
    %c0_17 = arith.constant 0 : index
    %c0_18 = arith.constant 0 : index
    %13 = vector.load %arg3[%c2, %c0_17, %c0_18] : memref<9x128x128xbf16, #tpu.memory_space<vmem>>, vector<1x128x128xbf16>
    %14 = vector.shape_cast %13 : vector<1x128x128xbf16> to vector<128x128xbf16>
    %cst_19 = arith.constant dense<0.000000e+00> : vector<16x128xf32>
    %15 = tpu.matmul %12, %14, %cst_19 {dimension_numbers = #tpu.dot_dimension_numbers<[1], [0], [0], [1], [0, 0, 1, 1], [], []>} : vector<16x128xbf16>, vector<128x128xbf16>, vector<16x128xf32> -> vector<16x128xf32>
    %16 = arith.addf %10, %15 : vector<16x128xf32>
    %c0_20 = arith.constant 0 : index
    %c2_21 = arith.constant 2 : index
    %c0_22 = arith.constant 0 : index
    %c0_23 = arith.constant 0 : index
    %17 = vector.load %arg2[%c0_20, %c2_21, %c0_22, %c0_23] : memref<1x4x24x128xbf16, #tpu.memory_space<vmem>>, vector<1x1x16x128xbf16>
    %18 = vector.shape_cast %17 : vector<1x1x16x128xbf16> to vector<16x128xbf16>
    %c3 = arith.constant 3 : index
    %c0_24 = arith.constant 0 : index
    %c0_25 = arith.constant 0 : index
    %19 = vector.load %arg3[%c3, %c0_24, %c0_25] : memref<9x128x128xbf16, #tpu.memory_space<vmem>>, vector<1x128x128xbf16>
    %20 = vector.shape_cast %19 : vector<1x128x128xbf16> to vector<128x128xbf16>
    %cst_26 = arith.constant dense<0.000000e+00> : vector<16x128xf32>
    %21 = tpu.matmul %18, %20, %cst_26 {dimension_numbers = #tpu.dot_dimension_numbers<[1], [0], [0], [1], [0, 0, 1, 1], [], []>} : vector<16x128xbf16>, vector<128x128xbf16>, vector<16x128xf32> -> vector<16x128xf32>
    %22 = arith.addf %16, %21 : vector<16x128xf32>
    %c0_27 = arith.constant 0 : index
    %c3_28 = arith.constant 3 : index
    %c0_29 = arith.constant 0 : index
    %c0_30 = arith.constant 0 : index
    %23 = vector.load %arg2[%c0_27, %c3_28, %c0_29, %c0_30] : memref<1x4x24x128xbf16, #tpu.memory_space<vmem>>, vector<1x1x16x128xbf16>
    %24 = vector.shape_cast %23 : vector<1x1x16x128xbf16> to vector<16x128xbf16>
    %c4 = arith.constant 4 : index
    %c0_31 = arith.constant 0 : index
    %c0_32 = arith.constant 0 : index
    %25 = vector.load %arg3[%c4, %c0_31, %c0_32] : memref<9x128x128xbf16, #tpu.memory_space<vmem>>, vector<1x128x128xbf16>
    %26 = vector.shape_cast %25 : vector<1x128x128xbf16> to vector<128x128xbf16>
    %cst_33 = arith.constant dense<0.000000e+00> : vector<16x128xf32>
    %27 = tpu.matmul %24, %26, %cst_33 {dimension_numbers = #tpu.dot_dimension_numbers<[1], [0], [0], [1], [0, 0, 1, 1], [], []>} : vector<16x128xbf16>, vector<128x128xbf16>, vector<16x128xf32> -> vector<16x128xf32>
    %28 = arith.addf %22, %27 : vector<16x128xf32>
    %c0_34 = arith.constant 0 : index
    %c2_35 = arith.constant 2 : index
    %c1_36 = arith.constant 1 : index
    %c0_37 = arith.constant 0 : index
    %29 = vector.load %arg2[%c0_34, %c2_35, %c1_36, %c0_37] : memref<1x4x24x128xbf16, #tpu.memory_space<vmem>>, vector<1x1x16x128xbf16>
    %30 = vector.shape_cast %29 : vector<1x1x16x128xbf16> to vector<16x128xbf16>
    %c5 = arith.constant 5 : index
    %c0_38 = arith.constant 0 : index
    %c0_39 = arith.constant 0 : index
    %31 = vector.load %arg3[%c5, %c0_38, %c0_39] : memref<9x128x128xbf16, #tpu.memory_space<vmem>>, vector<1x128x128xbf16>
    %32 = vector.shape_cast %31 : vector<1x128x128xbf16> to vector<128x128xbf16>
    %cst_40 = arith.constant dense<0.000000e+00> : vector<16x128xf32>
    %33 = tpu.matmul %30, %32, %cst_40 {dimension_numbers = #tpu.dot_dimension_numbers<[1], [0], [0], [1], [0, 0, 1, 1], [], []>} : vector<16x128xbf16>, vector<128x128xbf16>, vector<16x128xf32> -> vector<16x128xf32>
    %34 = arith.addf %28, %33 : vector<16x128xf32>
    %c0_41 = arith.constant 0 : index
    %c0_42 = arith.constant 0 : index
    %c3_43 = arith.constant 3 : index
    %c0_44 = arith.constant 0 : index
    %35 = vector.load %arg2[%c0_41, %c0_42, %c3_43, %c0_44] : memref<1x4x24x128xbf16, #tpu.memory_space<vmem>>, vector<1x1x16x128xbf16>
    %36 = vector.shape_cast %35 : vector<1x1x16x128xbf16> to vector<16x128xbf16>
    %c6 = arith.constant 6 : index
    %c0_45 = arith.constant 0 : index
    %c0_46 = arith.constant 0 : index
    %37 = vector.load %arg3[%c6, %c0_45, %c0_46] : memref<9x128x128xbf16, #tpu.memory_space<vmem>>, vector<1x128x128xbf16>
    %38 = vector.shape_cast %37 : vector<1x128x128xbf16> to vector<128x128xbf16>
    %cst_47 = arith.constant dense<0.000000e+00> : vector<16x128xf32>
    %39 = tpu.matmul %36, %38, %cst_47 {dimension_numbers = #tpu.dot_dimension_numbers<[1], [0], [0], [1], [0, 0, 1, 1], [], []>} : vector<16x128xbf16>, vector<128x128xbf16>, vector<16x128xf32> -> vector<16x128xf32>
    %40 = arith.addf %34, %39 : vector<16x128xf32>
    %c0_48 = arith.constant 0 : index
    %c1_49 = arith.constant 1 : index
    %c3_50 = arith.constant 3 : index
    %c0_51 = arith.constant 0 : index
    %41 = vector.load %arg2[%c0_48, %c1_49, %c3_50, %c0_51] : memref<1x4x24x128xbf16, #tpu.memory_space<vmem>>, vector<1x1x16x128xbf16>
    %42 = vector.shape_cast %41 : vector<1x1x16x128xbf16> to vector<16x128xbf16>
    %c7 = arith.constant 7 : index
    %c0_52 = arith.constant 0 : index
    %c0_53 = arith.constant 0 : index
    %43 = vector.load %arg3[%c7, %c0_52, %c0_53] : memref<9x128x128xbf16, #tpu.memory_space<vmem>>, vector<1x128x128xbf16>
    %44 = vector.shape_cast %43 : vector<1x128x128xbf16> to vector<128x128xbf16>
    %cst_54 = arith.constant dense<0.000000e+00> : vector<16x128xf32>
    %45 = tpu.matmul %42, %44, %cst_54 {dimension_numbers = #tpu.dot_dimension_numbers<[1], [0], [0], [1], [0, 0, 1, 1], [], []>} : vector<16x128xbf16>, vector<128x128xbf16>, vector<16x128xf32> -> vector<16x128xf32>
    %46 = arith.addf %40, %45 : vector<16x128xf32>
    %c0_55 = arith.constant 0 : index
    %c0_56 = arith.constant 0 : index
    %c4_57 = arith.constant 4 : index
    %c0_58 = arith.constant 0 : index
    %47 = vector.load %arg2[%c0_55, %c0_56, %c4_57, %c0_58] : memref<1x4x24x128xbf16, #tpu.memory_space<vmem>>, vector<1x1x16x128xbf16>
    %48 = vector.shape_cast %47 : vector<1x1x16x128xbf16> to vector<16x128xbf16>
    %c8 = arith.constant 8 : index
    %c0_59 = arith.constant 0 : index
    %c0_60 = arith.constant 0 : index
    %49 = vector.load %arg3[%c8, %c0_59, %c0_60] : memref<9x128x128xbf16, #tpu.memory_space<vmem>>, vector<1x128x128xbf16>
    %50 = vector.shape_cast %49 : vector<1x128x128xbf16> to vector<128x128xbf16>
    %cst_61 = arith.constant dense<0.000000e+00> : vector<16x128xf32>
    %51 = tpu.matmul %48, %50, %cst_61 {dimension_numbers = #tpu.dot_dimension_numbers<[1], [0], [0], [1], [0, 0, 1, 1], [], []>} : vector<16x128xbf16>, vector<128x128xbf16>, vector<16x128xf32> -> vector<16x128xf32>
    %52 = arith.addf %46, %51 : vector<16x128xf32>
    %c0_62 = arith.constant 0 : index
    %c0_63 = arith.constant 0 : index
    %53 = vector.load %arg4[%c0_62, %c0_63] : memref<1x128xf32, #tpu.memory_space<vmem>>, vector<1x128xf32>
    %54 = vector.broadcast %53 : vector<1x128xf32> to vector<16x128xf32>
    %55 = arith.addf %52, %54 : vector<16x128xf32>
    %cst_64 = arith.constant 0.000000e+00 : f32
    %56 = vector.broadcast %cst_64 : f32 to vector<16x128xf32>
    %57 = arith.maximumf %55, %56 : vector<16x128xf32>
    %58 = arith.truncf %57 : vector<16x128xf32> to vector<16x128xbf16>
    %c0_65 = arith.constant 0 : index
    %c0_66 = arith.constant 0 : index
    %c0_67 = arith.constant 0 : index
    %59 = vector.load %arg5[%c0_65, %c0_66, %c0_67] : memref<1x16x128xbf16, #tpu.memory_space<vmem>>, vector<1x16x128xbf16>
    %60 = vector.shape_cast %59 : vector<1x16x128xbf16> to vector<16x128xbf16>
    %61 = vector.shape_cast %58 : vector<16x128xbf16> to vector<1x16x128xbf16>
    tpu.vector_store %arg5[%c0_65, %c0_66, %c0_67], %61 {strides = array<i32>} : memref<1x16x128xbf16, #tpu.memory_space<vmem>>, vector<1x16x128xbf16>,
    return
  }
  func.func @transform_0(%arg0: i32, %arg1: i32) -> (i32, i32, i32, i32) {
    %c0_i32 = arith.constant 0 : i32
    %c0_i32_0 = arith.constant 0 : i32
    %c0_i32_1 = arith.constant 0 : i32
    %c0_i32_2 = arith.constant 0 : i32
    return %arg0, %c0_i32, %c0_i32_0, %c0_i32_1 : i32, i32, i32, i32
  }
  func.func @transform_1(%arg0: i32, %arg1: i32) -> (i32, i32, i32) {
    %c0_i32 = arith.constant 0 : i32
    %c0_i32_0 = arith.constant 0 : i32
    %c0_i32_1 = arith.constant 0 : i32
    return %c0_i32, %c0_i32_0, %arg1 : i32, i32, i32
  }
  func.func @transform_2(%arg0: i32, %arg1: i32) -> (i32, i32) {
    %c0_i32 = arith.constant 0 : i32
    %c0_i32_0 = arith.constant 0 : i32
    return %c0_i32, %arg1 : i32, i32
  }
  func.func @transform_3(%arg0: i32, %arg1: i32) -> (i32, i32, i32) {
    %c0_i32 = arith.constant 0 : i32
    %c0_i32_0 = arith.constant 0 : i32
    return %arg0, %c0_i32, %arg1 : i32, i32, i32
  }
}

</mosaic_0001>

<llo_original>
// kernel: backboned_forward.4
$region0: #{backboned_forward.4}
  #allocation0 [shape = 'u32[]', space=smem, size = 0x4, offset = 0x4, fixed_abs, tag = 'smem constant byte address 0x4 - core index']
  #allocation1 [shape = 'u32[144,128]{1,0:T(1,128)}', space=vmem, size = 0x12000, scoped, tag = 'internal scratch']
  %s0 = inlined_call_operand.vmem [shape: bf16[2,4,40,128], index: 0, kind: input, shape index: {}]
  %s1 = inlined_call_operand.vmem [shape: bf16[9,128,128], index: 1, kind: input, shape index: {}]
  %s2 = inlined_call_operand.vmem [shape: f32[1,128], index: 2, kind: input, shape index: {}]
  %s3 = inlined_call_operand.vmem [shape: bf16[2,32,128], index: 3, kind: output, shape index: {}]
  %s4 = sld [smem:[#allocation0]]
  $region45: #{backboned_forward.4} parent=0
    _
  %s6 = ssub.s32 1, %s4
  %s7 = scalar_select 0, %s6, %s4
  loop: start=0, step=1, limit=4
  $region2: #{backboned_forward.4} parent=0 // loop_pre_header
    _
  $region3: #{backboned_forward.4} parent=0 // loop_header
    %s9 = sphi 0, %s13
    %p10 = scmp.ge.s32.totalorder %s9, 4
    %s16 = sphi 0, %s28
    %s17 = sphi 0, %s24
    %s18 = sphi 0, %s16
    %s19 = sphi 0, %s17
    %s20 = sphi 0, %s18
    %s21 = sphi 0, %s19
    %s31 = sphi 0, %s33
    %s34 = sphi 0, %s31
    %s35 = sphi 0, %s34
    %s51 = sphi 0, %s35
    %s57 = sphi 0, %s59
    %s60 = sphi 0, %s57
    %s61 = sphi 0, %s60
    %s77 = sphi 0, %s61
    %s83 = sphi 0, %s85
    %s86 = sphi 0, %s83
    %s87 = sphi 0, %s86
    %s103 = sphi 0, %s87
    %s111 = sphi 0, %s113
    %s114 = sphi 0, %s111
    %s115 = sphi 0, %s114
    %s131 = sphi 0, %s115
  $region4: #{backboned_forward.4} parent=0 // loop_header_branch
    %12 = sbr.rel (%p10) target = $region8
  $region5: #{backboned_forward.4} parent=0 // loop_body
    %s14 = ssub.s32 %s9, 1
    %s15 = ssub.s32 %s9, 2
    %s22 = sadd.s32 1, %s17
    %p23 = scmp.ge.s32.totalorder %s22, 1
    %s24 = scalar_select %p23, 0, %s22
    %s25 = sadd.s32 1, %s16
    %s26 = scalar_select %p23, %s25, %s16
    %p27 = scmp.ge.s32.totalorder %s26, 2
    %s28 = scalar_select %p27, 0, %s26
    %s29 = ssub.s32 %s16, %s28
    %p30 = scmp.eq.s32.totalorder %s29, 0
    %s32 = sadd.s32 %s31, 1
    %s33 = scalar_select %p30, %s31, %s32
    %p36 = pneg %p30
    %p37 = scmp.eq.s32.totalorder %s9, 1
    %p38 = por %p36, %p37
    %p39 = scmp.ne.s32.totalorder %s31, %s34
    %p40 = scmp.eq.s32.totalorder %s9, 0
    %p41 = por %p39, %p40
    %p42 = scmp.ne.s32.totalorder %s31, %s34
    %p43 = scmp.eq.s32.totalorder %s14, 1
    %p44 = por %p42, %p43
    %p45 = scmp.ne.s32.totalorder %s34, %s35
    %p46 = scmp.eq.s32.totalorder %s14, 0
    %p47 = por %p45, %p46
    %p48 = scmp.ne.s32.totalorder %s34, %s35
    %p49 = scmp.eq.s32.totalorder %s15, 1
    %p50 = por %p48, %p49
    %p52 = scmp.ne.s32.totalorder %s35, %s51
    %p53 = scmp.eq.s32.totalorder %s15, 0
    %p54 = por %p52, %p53
    %s55 = ssub.s32 %s17, %s24
    %p56 = scmp.eq.s32.totalorder %s55, 0
    %s58 = sadd.s32 %s57, 1
    %s59 = scalar_select %p56, %s57, %s58
    %p62 = pneg %p56
    %p63 = scmp.eq.s32.totalorder %s9, 1
    %p64 = por %p62, %p63
    %p65 = scmp.ne.s32.totalorder %s57, %s60
    %p66 = scmp.eq.s32.totalorder %s9, 0
    %p67 = por %p65, %p66
    %p68 = scmp.ne.s32.totalorder %s57, %s60
    %p69 = scmp.eq.s32.totalorder %s14, 1
    %p70 = por %p68, %p69
    %p71 = scmp.ne.s32.totalorder %s60, %s61
    %p72 = scmp.eq.s32.totalorder %s14, 0
    %p73 = por %p71, %p72
    %p74 = scmp.ne.s32.totalorder %s60, %s61
    %p75 = scmp.eq.s32.totalorder %s15, 1
    %p76 = por %p74, %p75
    %p78 = scmp.ne.s32.totalorder %s61, %s77
    %p79 = scmp.eq.s32.totalorder %s15, 0
    %p80 = por %p78, %p79
    %s81 = ssub.s32 %s17, %s24
    %p82 = scmp.eq.s32.totalorder %s81, 0
    %s84 = sadd.s32 %s83, 1
    %s85 = scalar_select %p82, %s83, %s84
    %p88 = pneg %p82
    %p89 = scmp.eq.s32.totalorder %s9, 1
    %p90 = por %p88, %p89
    %p91 = scmp.ne.s32.totalorder %s83, %s86
    %p92 = scmp.eq.s32.totalorder %s9, 0
    %p93 = por %p91, %p92
    %p94 = scmp.ne.s32.totalorder %s83, %s86
    %p95 = scmp.eq.s32.totalorder %s14, 1
    %p96 = por %p94, %p95
    %p97 = scmp.ne.s32.totalorder %s86, %s87
    %p98 = scmp.eq.s32.totalorder %s14, 0
    %p99 = por %p97, %p98
    %p100 = scmp.ne.s32.totalorder %s86, %s87
    %p101 = scmp.eq.s32.totalorder %s15, 1
    %p102 = por %p100, %p101
    %p104 = scmp.ne.s32.totalorder %s87, %s103
    %p105 = scmp.eq.s32.totalorder %s15, 0
    %p106 = por %p104, %p105
    %s107 = ssub.s32 %s16, %s28
    %s108 = ssub.s32 %s17, %s24
    %s109 = sor.u32 %s107, %s108
    %p110 = scmp.eq.s32.totalorder %s109, 0
    %s112 = sadd.s32 %s111, 1
    %s113 = scalar_select %p110, %s111, %s112
    %p116 = pneg %p110
    %p117 = scmp.eq.s32.totalorder %s9, 1
    %p118 = por %p116, %p117
    %p119 = scmp.ne.s32.totalorder %s111, %s114
    %p120 = scmp.eq.s32.totalorder %s9, 0
    %p121 = por %p119, %p120
    %p122 = scmp.ne.s32.totalorder %s111, %s114
    %p123 = scmp.eq.s32.totalorder %s14, 1
    %p124 = por %p122, %p123
    %p125 = scmp.ne.s32.totalorder %s114, %s115
    %p126 = scmp.eq.s32.totalorder %s14, 0
    %p127 = por %p125, %p126
    %p128 = scmp.ne.s32.totalorder %s114, %s115
    %p129 = scmp.eq.s32.totalorder %s15, 1
    %p130 = por %p128, %p129
    %p132 = scmp.ne.s32.totalorder %s115, %s131
    %p133 = scmp.eq.s32.totalorder %s15, 0
    %p134 = por %p132, %p133
    %p135 = scmp.le.s32.totalorder 1, %s9
    %p136 = scmp.lt.s32.totalorder %s9, 3
    %p137 = pnand %p135, %p136
    %p138 = pneg %p137
    // Predicated region
    $region9: #{backboned_forward.4} parent=5 // pred_check
      _
    $region10: #{backboned_forward.4} parent=5 // pred_check_branch
      %140 = sbr.rel (%p137) target = $region12
    $region11: #{backboned_forward.4} parent=5 // pred_region
      %s141 = ssub.s32 %s9, 1
      // Predicated region
      $region13: #{backboned_forward.4} parent=11 // pred_check
        %p142 = pneg %p73
      $region14: #{backboned_forward.4} parent=11 // pred_check_branch
        %144 = sbr.rel (%p142) target = $region16
      $region15: #{backboned_forward.4} parent=11 // pred_region
        %p145 = scmp.lt.s32.totalorder %s19, 0
        %s146 = scalar_select %p145, %s19, 0
        %s147 = smul.addr %s146, 4
        %s148 = scalar_lea.vmem %s1, %s147
      $region16: #{backboned_forward.4} parent=11 // pred_fallthru
        _
      // Predicated region
      $region17: #{backboned_forward.4} parent=11 // pred_check
        %p149 = pneg %p99
      $region18: #{backboned_forward.4} parent=11 // pred_check_branch
        %151 = sbr.rel (%p149) target = $region20
      $region19: #{backboned_forward.4} parent=11 // pred_region
        %p152 = scmp.lt.s32.totalorder %s19, 0
        %s153 = scalar_select %p152, %s19, 0
        %s154 = scalar_lea.vmem %s2, %s153
      $region20: #{backboned_forward.4} parent=11 // pred_fallthru
        _
    $region12: #{backboned_forward.4} parent=5 // pred_fallthru
      _
    %p155 = scmp.lt.s32.totalorder %s9, 2
    // Predicated region
    $region21: #{backboned_forward.4} parent=5 // pred_check
      %p156 = pneg %p155
    $region22: #{backboned_forward.4} parent=5 // pred_check_branch
      %158 = sbr.rel (%p156) target = $region24
    $region23: #{backboned_forward.4} parent=5 // pred_region
      // Predicated region
      $region25: #{backboned_forward.4} parent=23 // pred_check
        %p159 = pneg %p41
      $region26: #{backboned_forward.4} parent=23 // pred_check_branch
        %161 = sbr.rel (%p159) target = $region28
      $region27: #{backboned_forward.4} parent=23 // pred_region
        %p162 = scmp.lt.s32.totalorder %s16, 1
        %s163 = scalar_select %p162, %s16, 1
        %s164 = smul.addr %s163, 20
        %s165 = smul.addr %s164, 4
        %s166 = scalar_lea.vmem %s0, %s165
      $region28: #{backboned_forward.4} parent=23 // pred_fallthru
        _
    $region24: #{backboned_forward.4} parent=5 // pred_fallthru
      _
    %p167 = scmp.le.s32.totalorder 1, %s9
    %p168 = scmp.lt.s32.totalorder %s9, 3
    %p169 = pnand %p167, %p168
    %p170 = pneg %p169
    // Predicated region
    $region29: #{backboned_forward.4} parent=5 // pred_check
      _
    $region30: #{backboned_forward.4} parent=5 // pred_check_branch
      %172 = sbr.rel (%p169) target = $region32
    $region31: #{backboned_forward.4} parent=5 // pred_region
      %s173 = ssub.s32 %s9, 1
      %p174 = scmp.lt.s32.totalorder %s18, 1
      %s175 = scalar_select %p174, %s18, 1
      %s176 = smul.addr %s175, 20
      %s177 = smul.addr %s176, 4
      %s178 = scalar_lea.vmem %s0, %s177
      %p179 = pneg %p47
      %p180 = pneg %p44
      %p181 = scmp.lt.s32.totalorder %s19, 0
      %s182 = scalar_select %p181, %s19, 0
      %s183 = smul.addr %s182, 4
      %s184 = scalar_lea.vmem %s1, %s183
      %p185 = pneg %p73
      %p186 = pneg %p70
      %p187 = scmp.lt.s32.totalorder %s19, 0
      %s188 = scalar_select %p187, %s19, 0
      %s189 = scalar_lea.vmem %s2, %s188
      %p190 = pneg %p99
      %p191 = pneg %p96
      %p192 = pneg %p127
      %p193 = pneg %p124
      %p194 = scmp.lt.s32.totalorder %s18, 1
      %s195 = scalar_select %p194, %s18, 1
      %p196 = scmp.lt.s32.totalorder %s19, 0
      %s197 = scalar_select %p196, %s19, 0
      %s198 = smul.addr %s195, 4
      %s199 = sadd.s32 %s197, %s198
      %s200 = smul.addr %s199, 4
      %s201 = scalar_lea.vmem %s3, %s200
      %p202 = scmp.lt.s32.totalorder %s18, 1
      %s203 = scalar_select %p202, %s18, 1
      %s204 = smul.addr %s203, 20
      %s205 = smul.addr %s204, 4
      %s206 = scalar_lea.vmem %s0, %s205
      %p207 = scmp.lt.s32.totalorder %s19, 0
      %s208 = scalar_select %p207, %s19, 0
      %s209 = smul.addr %s208, 4
      %s210 = scalar_lea.vmem %s1, %s209
      %p211 = scmp.lt.s32.totalorder %s19, 0
      %s212 = scalar_select %p211, %s19, 0
      %s213 = scalar_lea.vmem %s2, %s212
      %p214 = scmp.lt.s32.totalorder %s18, 1
      %s215 = scalar_select %p214, %s18, 1
      %p216 = scmp.lt.s32.totalorder %s19, 0
      %s217 = scalar_select %p216, %s19, 0
      %s218 = smul.addr %s215, 4
      %s219 = sadd.s32 %s217, %s218
      %s220 = smul.addr %s219, 4
      %s221 = scalar_lea.vmem %s3, %s220
      %v223 = vld [vmem:[%s206] sm:$0xf]
      %v224 = vld [vmem:[%s206 + $0x4] sm:$0xf]
      %v225 = vld [vmem:[%s206 + $0x8] sm:$0xf]
      %v226 = vld [vmem:[%s206 + $0xc] sm:$0xf]
      %v227 = vld [vmem:[%s210] sm:$0xf]
      %v228 = vld [vmem:[%s210 + $0x4] sm:$0xf]
      %v229 = vld [vmem:[%s210 + $0x8] sm:$0xf]
      %v230 = vld [vmem:[%s210 + $0xc] sm:$0xf]
      %v231 = vld [vmem:[%s210 + $0x10] sm:$0xf]
      %v232 = vld [vmem:[%s210 + $0x14] sm:$0xf]
      %v233 = vld [vmem:[%s210 + $0x18] sm:$0xf]
      %v234 = vld [vmem:[%s210 + $0x1c] sm:$0xf]
      %v235 = vld [vmem:[%s210 + $0x20] sm:$0xf]
      %v236 = vld [vmem:[%s210 + $0x24] sm:$0xf]
      %v237 = vld [vmem:[%s210 + $0x28] sm:$0xf]
      %v238 = vld [vmem:[%s210 + $0x2c] sm:$0xf]
      %v239 = vld [vmem:[%s210 + $0x30] sm:$0xf]
      %v240 = vld [vmem:[%s210 + $0x34] sm:$0xf]
      %v241 = vld [vmem:[%s210 + $0x38] sm:$0xf]
      %v242 = vld [vmem:[%s210 + $0x3c] sm:$0xf]
      %s243 = scalar_lea.vmem %s206, 20
      %v244 = vld [vmem:[%s243] sm:$0xf]
      %v245 = vld [vmem:[%s243 + $0x4] sm:$0xf]
      %v246 = vld [vmem:[%s243 + $0x8] sm:$0xf]
      %v247 = vld [vmem:[%s243 + $0xc] sm:$0xf]
      %s248 = scalar_lea.vmem %s210, 64
      %v249 = vld [vmem:[%s248] sm:$0xf]
      %v250 = vld [vmem:[%s248 + $0x4] sm:$0xf]
      %v251 = vld [vmem:[%s248 + $0x8] sm:$0xf]
      %v252 = vld [vmem:[%s248 + $0xc] sm:$0xf]
      %v253 = vld [vmem:[%s248 + $0x10] sm:$0xf]
      %v254 = vld [vmem:[%s248 + $0x14] sm:$0xf]
      %v255 = vld [vmem:[%s248 + $0x18] sm:$0xf]
      %v256 = vld [vmem:[%s248 + $0x1c] sm:$0xf]
      %v257 = vld [vmem:[%s248 + $0x20] sm:$0xf]
      %v258 = vld [vmem:[%s248 + $0x24] sm:$0xf]
      %v259 = vld [vmem:[%s248 + $0x28] sm:$0xf]
      %v260 = vld [vmem:[%s248 + $0x2c] sm:$0xf]
      %v261 = vld [vmem:[%s248 + $0x30] sm:$0xf]
      %v262 = vld [vmem:[%s248 + $0x34] sm:$0xf]
      %v263 = vld [vmem:[%s248 + $0x38] sm:$0xf]
      %v264 = vld [vmem:[%s248 + $0x3c] sm:$0xf]
      %v269 = vunpack.c.l.b16 %v244
      %v270 = vunpack.c.l.b16 %v245
      %v271 = vunpack.c.l.b16 %v246
      %v272 = vunpack.c.l.b16 %v247
      %v273 = vpack.c.b16 %v270, %v269
      %v274 = vpack.c.b16 %v272, %v271
      %v293 = vunpack.c.l.b16 %v249
      %v294 = vunpack.c.l.b16 %v250
      %v295 = vunpack.c.l.b16 %v251
      %v296 = vunpack.c.l.b16 %v252
      %v297 = vunpack.c.l.b16 %v253
      %v298 = vunpack.c.l.b16 %v254
      %v299 = vunpack.c.l.b16 %v255
      %v300 = vunpack.c.l.b16 %v256
      %v301 = vunpack.c.l.b16 %v257
      %v302 = vunpack.c.l.b16 %v258
      %v303 = vunpack.c.l.b16 %v259
      %v304 = vunpack.c.l.b16 %v260
      %v305 = vunpack.c.l.b16 %v261
      %v306 = vunpack.c.l.b16 %v262
      %v307 = vunpack.c.l.b16 %v263
      %v308 = vunpack.c.l.b16 %v264
      %v309 = vpack.c.b16 %v294, %v293
      %v310 = vpack.c.b16 %v296, %v295
      %v311 = vpack.c.b16 %v298, %v297
      %v312 = vpack.c.b16 %v300, %v299
      %v313 = vpack.c.b16 %v302, %v301
      %v314 = vpack.c.b16 %v304, %v303
      %v315 = vpack.c.b16 %v306, %v305
      %v316 = vpack.c.b16 %v308, %v307
      %325 = vmatprep.subr.bf16.mxu0 0
      %326 = vmatpush1.bf16.msra.mxu0 %v309
      %327 = vmatprep.subr.bf16.mxu0 0
      %328 = vmatpush1.bf16.msra.mxu0 %v310
      %329 = vmatprep.subr.bf16.mxu0 0
      %330 = vmatpush1.bf16.msra.mxu0 %v311
      %331 = vmatprep.subr.bf16.mxu0 0
      %332 = vmatpush1.bf16.msra.mxu0 %v312
      %333 = vmatprep.subr.bf16.mxu0 0
      %334 = vmatpush1.bf16.msra.mxu0 %v313
      %335 = vmatprep.subr.bf16.mxu0 0
      %336 = vmatpush1.bf16.msra.mxu0 %v314
      %337 = vmatprep.subr.bf16.mxu0 0
      %338 = vmatpush1.bf16.msra.mxu0 %v315
      %339 = vmatprep.subr.bf16.mxu0 0
      %340 = vmatpush1.bf16.msra.mxu0 %v316
      %341 = vmatprep.subr.bf16.mxu0 0
      %342 = vmatpush1.bf16.msra.mxu0 0
      %343 = vmatprep.subr.bf16.mxu0 0
      %344 = vmatpush1.bf16.msra.mxu0 0
      %345 = vmatprep.subr.bf16.mxu0 0
      %346 = vmatpush1.bf16.msra.mxu0 0
      %347 = vmatprep.subr.bf16.mxu0 0
      %348 = vmatpush1.bf16.msra.mxu0 0
      %349 = vmatprep.subr.bf16.mxu0 0
      %350 = vmatpush1.bf16.msra.mxu0 0
      %351 = vmatprep.subr.bf16.mxu0 0
      %352 = vmatpush1.bf16.msra.mxu0 0
      %353 = vmatprep.subr.bf16.mxu0 0
      %354 = vmatpush1.bf16.msra.mxu0 0
      %355 = vmatprep.subr.bf16.mxu0 0
      %356 = vmatpush1.bf16.msra.mxu0 0
      %357 = vmatprep.mubr.bf16.mxu0 0
      %358 = vmatmul.mubr.bf16.gmra.mrb[0].mxu0 %v273
      %v359 = vpop.f32.mrb[0].mxu0
      %v360 = vadd.f32 0.0, %v359
      %v361 = vpop.f32.mrb[0].mxu0
      %v362 = vpop.f32.mrb[0].mxu0
      %v363 = vadd.f32 0.0, %v362
      %v364 = vpop.f32.mrb[0].mxu0
      %365 = vmatprep.mubr.bf16.mxu0 0
      %366 = vmatmul.mubr.bf16.gmra.mrb[0].mxu0 %v274
      %v367 = vpop.f32.mrb[0].mxu0
      %v368 = vadd.f32 0.0, %v367
      %v369 = vpop.f32.mrb[0].mxu0
      %v370 = vpop.f32.mrb[0].mxu0
      %v371 = vadd.f32 0.0, %v370
      %v372 = vpop.f32.mrb[0].mxu0
      %373 = vdwg.mxu0
      %v378 = vunpack.c.l.b16 %v223
      %v379 = vunpack.c.l.b16 %v224
      %v380 = vunpack.c.l.b16 %v225
      %v381 = vunpack.c.l.b16 %v226
      %v382 = vpack.c.b16 %v379, %v378
      %v383 = vpack.c.b16 %v381, %v380
      %v402 = vunpack.c.l.b16 %v227
      %v403 = vunpack.c.l.b16 %v228
      %v404 = vunpack.c.l.b16 %v229
      %v405 = vunpack.c.l.b16 %v230
      %v406 = vunpack.c.l.b16 %v231
      %v407 = vunpack.c.l.b16 %v232
      %v408 = vunpack.c.l.b16 %v233
      %v409 = vunpack.c.l.b16 %v234
      %v410 = vunpack.c.l.b16 %v235
      %v411 = vunpack.c.l.b16 %v236
      %v412 = vunpack.c.l.b16 %v237
      %v413 = vunpack.c.l.b16 %v238
      %v414 = vunpack.c.l.b16 %v239
      %v415 = vunpack.c.l.b16 %v240
      %v416 = vunpack.c.l.b16 %v241
      %v417 = vunpack.c.l.b16 %v242
      %v418 = vpack.c.b16 %v403, %v402
      %v419 = vpack.c.b16 %v405, %v404
      %v420 = vpack.c.b16 %v407, %v406
      %v421 = vpack.c.b16 %v409, %v408
      %v422 = vpack.c.b16 %v411, %v410
      %v423 = vpack.c.b16 %v413, %v412
      %v424 = vpack.c.b16 %v415, %v414
      %v425 = vpack.c.b16 %v417, %v416
      %434 = vmatprep.subr.bf16.mxu0 0
      %435 = vmatpush1.bf16.msra.mxu0 %v418
      %436 = vmatprep.subr.bf16.mxu0 0
      %437 = vmatpush1.bf16.msra.mxu0 %v419
      %438 = vmatprep.subr.bf16.mxu0 0
      %439 = vmatpush1.bf16.msra.mxu0 %v420
      %440 = vmatprep.subr.bf16.mxu0 0
      %441 = vmatpush1.bf16.msra.mxu0 %v421
      %442 = vmatprep.subr.bf16.mxu0 0
      %443 = vmatpush1.bf16.msra.mxu0 %v422
      %444 = vmatprep.subr.bf16.mxu0 0
      %445 = vmatpush1.bf16.msra.mxu0 %v423
      %446 = vmatprep.subr.bf16.mxu0 0
      %447 = vmatpush1.bf16.msra.mxu0 %v424
      %448 = vmatprep.subr.bf16.mxu0 0
      %449 = vmatpush1.bf16.msra.mxu0 %v425
      %450 = vmatprep.subr.bf16.mxu0 0
      %451 = vmatpush1.bf16.msra.mxu0 0
      %452 = vmatprep.subr.bf16.mxu0 0
      %453 = vmatpush1.bf16.msra.mxu0 0
      %454 = vmatprep.subr.bf16.mxu0 0
      %455 = vmatpush1.bf16.msra.mxu0 0
      %456 = vmatprep.subr.bf16.mxu0 0
      %457 = vmatpush1.bf16.msra.mxu0 0
      %458 = vmatprep.subr.bf16.mxu0 0
      %459 = vmatpush1.bf16.msra.mxu0 0
      %460 = vmatprep.subr.bf16.mxu0 0
      %461 = vmatpush1.bf16.msra.mxu0 0
      %462 = vmatprep.subr.bf16.mxu0 0
      %463 = vmatpush1.bf16.msra.mxu0 0
      %464 = vmatprep.subr.bf16.mxu0 0
      %465 = vmatpush1.bf16.msra.mxu0 0
      %466 = vmatprep.mubr.bf16.mxu0 0
      %467 = vmatmul.mubr.bf16.gmra.mrb[0].mxu0 %v382
      %v468 = vpop.f32.mrb[0].mxu0
      %v469 = vadd.f32 %v360, %v468
      %v470 = vpop.f32.mrb[0].mxu0
      %v471 = vpop.f32.mrb[0].mxu0
      %v472 = vadd.f32 %v363, %v471
      %v473 = vpop.f32.mrb[0].mxu0
      %474 = vmatprep.mubr.bf16.mxu0 0
      %475 = vmatmul.mubr.bf16.gmra.mrb[0].mxu0 %v383
      %v476 = vpop.f32.mrb[0].mxu0
      %v477 = vadd.f32 %v368, %v476
      %v478 = vpop.f32.mrb[0].mxu0
      %v479 = vpop.f32.mrb[0].mxu0
      %v480 = vadd.f32 %v371, %v479
      %v481 = vpop.f32.mrb[0].mxu0
      %482 = vdwg.mxu0
      %v483 = vld [vmem:[%s206] sm:$0xf]
      %v484 = vld [vmem:[%s206 + $0x4] sm:$0xf]
      %v485 = vld [vmem:[%s206 + $0x8] sm:$0xf]
      %v486 = vld [vmem:[%s206 + $0xc] sm:$0xf]
      %v487 = vld [vmem:[%s206 + $0x10] sm:$0x1]
      %s488 = scalar_lea.vmem %s210, 128
      %v489 = vld [vmem:[%s488] sm:$0xf]
      %v490 = vld [vmem:[%s488 + $0x4] sm:$0xf]
      %v491 = vld [vmem:[%s488 + $0x8] sm:$0xf]
      %v492 = vld [vmem:[%s488 + $0xc] sm:$0xf]
      %v493 = vld [vmem:[%s488 + $0x10] sm:$0xf]
      %v494 = vld [vmem:[%s488 + $0x14] sm:$0xf]
      %v495 = vld [vmem:[%s488 + $0x18] sm:$0xf]
      %v496 = vld [vmem:[%s488 + $0x1c] sm:$0xf]
      %v497 = vld [vmem:[%s488 + $0x20] sm:$0xf]
      %v498 = vld [vmem:[%s488 + $0x24] sm:$0xf]
      %v499 = vld [vmem:[%s488 + $0x28] sm:$0xf]
      %v500 = vld [vmem:[%s488 + $0x2c] sm:$0xf]
      %v501 = vld [vmem:[%s488 + $0x30] sm:$0xf]
      %v502 = vld [vmem:[%s488 + $0x34] sm:$0xf]
      %v503 = vld [vmem:[%s488 + $0x38] sm:$0xf]
      %v504 = vld [vmem:[%s488 + $0x3c] sm:$0xf]
      %v510 = vunpack.c.l.b16 %v483
      %v511 = vunpack.c.l.b16 %v484
      %v512 = vunpack.c.l.b16 %v485
      %v513 = vunpack.c.l.b16 %v486
      %v514 = vunpack.c.l.b16 %v487
      %v515 = vpack.c.b16 %v511, %v510
      %v516 = vpack.c.b16 %v513, %v512
      %v517 = vpack.c.b16 %v514, %v514
      %vm518 = vsmask.f32 7424
      %v520 = vshrl.u32 %v515, 16
      %v522 = vshll.u32 %v515, 16
      %v524 = vrot.slane %v522, 1
      %v525 = vor.u32 %v520, %v524
      %v527 = vshll.u32 %v516, 16
      %v529 = vrot.slane %v527, 1
      %v530 = vsel %vm518, %v525, %v529
      %v531 = vshrl.u32 %v516, 16
      %v533 = vor.u32 %v531, %v529
      %v535 = vshll.u32 %v517, 16
      %v537 = vrot.slane %v535, 1
      %v538 = vsel %vm518, %v533, %v537
      %v557 = vunpack.c.l.b16 %v489
      %v558 = vunpack.c.l.b16 %v490
      %v559 = vunpack.c.l.b16 %v491
      %v560 = vunpack.c.l.b16 %v492
      %v561 = vunpack.c.l.b16 %v493
      %v562 = vunpack.c.l.b16 %v494
      %v563 = vunpack.c.l.b16 %v495
      %v564 = vunpack.c.l.b16 %v496
      %v565 = vunpack.c.l.b16 %v497
      %v566 = vunpack.c.l.b16 %v498
      %v567 = vunpack.c.l.b16 %v499
      %v568 = vunpack.c.l.b16 %v500
      %v569 = vunpack.c.l.b16 %v501
      %v570 = vunpack.c.l.b16 %v502
      %v571 = vunpack.c.l.b16 %v503
      %v572 = vunpack.c.l.b16 %v504
      %v573 = vpack.c.b16 %v558, %v557
      %v574 = vpack.c.b16 %v560, %v559
      %v575 = vpack.c.b16 %v562, %v561
      %v576 = vpack.c.b16 %v564, %v563
      %v577 = vpack.c.b16 %v566, %v565
      %v578 = vpack.c.b16 %v568, %v567
      %v579 = vpack.c.b16 %v570, %v569
      %v580 = vpack.c.b16 %v572, %v571
      %589 = vmatprep.subr.bf16.mxu0 0
      %590 = vmatpush1.bf16.msra.mxu0 %v573
      %591 = vmatprep.subr.bf16.mxu0 0
      %592 = vmatpush1.bf16.msra.mxu0 %v574
      %593 = vmatprep.subr.bf16.mxu0 0
      %594 = vmatpush1.bf16.msra.mxu0 %v575
      %595 = vmatprep.subr.bf16.mxu0 0
      %596 = vmatpush1.bf16.msra.mxu0 %v576
      %597 = vmatprep.subr.bf16.mxu0 0
      %598 = vmatpush1.bf16.msra.mxu0 %v577
      %599 = vmatprep.subr.bf16.mxu0 0
      %600 = vmatpush1.bf16.msra.mxu0 %v578
      %601 = vmatprep.subr.bf16.mxu0 0
      %602 = vmatpush1.bf16.msra.mxu0 %v579
      %603 = vmatprep.subr.bf16.mxu0 0
      %604 = vmatpush1.bf16.msra.mxu0 %v580
      %605 = vmatprep.subr.bf16.mxu0 0
      %606 = vmatpush1.bf16.msra.mxu0 0
      %607 = vmatprep.subr.bf16.mxu0 0
      %608 = vmatpush1.bf16.msra.mxu0 0
      %609 = vmatprep.subr.bf16.mxu0 0
      %610 = vmatpush1.bf16.msra.mxu0 0
      %611 = vmatprep.subr.bf16.mxu0 0
      %612 = vmatpush1.bf16.msra.mxu0 0
      %613 = vmatprep.subr.bf16.mxu0 0
      %614 = vmatpush1.bf16.msra.mxu0 0
      %615 = vmatprep.subr.bf16.mxu0 0
      %616 = vmatpush1.bf16.msra.mxu0 0
      %617 = vmatprep.subr.bf16.mxu0 0
      %618 = vmatpush1.bf16.msra.mxu0 0
      %619 = vmatprep.subr.bf16.mxu0 0
      %620 = vmatpush1.bf16.msra.mxu0 0
      %621 = vmatprep.mubr.bf16.mxu0 0
      %622 = vmatmul.mubr.bf16.gmra.mrb[0].mxu0 %v530
      %v623 = vpop.f32.mrb[0].mxu0
      %v624 = vadd.f32 0.0, %v623
      %v625 = vpop.f32.mrb[0].mxu0
      %v626 = vpop.f32.mrb[0].mxu0
      %v627 = vadd.f32 0.0, %v626
      %v628 = vpop.f32.mrb[0].mxu0
      %629 = vmatprep.mubr.bf16.mxu0 0
      %630 = vmatmul.mubr.bf16.gmra.mrb[0].mxu0 %v538
      %v631 = vpop.f32.mrb[0].mxu0
      %v632 = vadd.f32 0.0, %v631
      %v633 = vpop.f32.mrb[0].mxu0
      %v634 = vpop.f32.mrb[0].mxu0
      %v635 = vadd.f32 0.0, %v634
      %v636 = vpop.f32.mrb[0].mxu0
      %637 = vdwg.mxu0
      %v638 = vadd.f32 %v469, %v624
      %v639 = vadd.f32 %v472, %v627
      %v640 = vadd.f32 %v477, %v632
      %v641 = vadd.f32 %v480, %v635
      %s642 = scalar_lea.vmem %s206, 40
      %v643 = vld [vmem:[%s642] sm:$0xf]
      %v644 = vld [vmem:[%s642 + $0x4] sm:$0xf]
      %v645 = vld [vmem:[%s642 + $0x8] sm:$0xf]
      %v646 = vld [vmem:[%s642 + $0xc] sm:$0xf]
      %s647 = scalar_lea.vmem %s210, 192
      %v648 = vld [vmem:[%s647] sm:$0xf]
      %v649 = vld [vmem:[%s647 + $0x4] sm:$0xf]
      %v650 = vld [vmem:[%s647 + $0x8] sm:$0xf]
      %v651 = vld [vmem:[%s647 + $0xc] sm:$0xf]
      %v652 = vld [vmem:[%s647 + $0x10] sm:$0xf]
      %v653 = vld [vmem:[%s647 + $0x14] sm:$0xf]
      %v654 = vld [vmem:[%s647 + $0x18] sm:$0xf]
      %v655 = vld [vmem:[%s647 + $0x1c] sm:$0xf]
      %v656 = vld [vmem:[%s647 + $0x20] sm:$0xf]
      %v657 = vld [vmem:[%s647 + $0x24] sm:$0xf]
      %v658 = vld [vmem:[%s647 + $0x28] sm:$0xf]
      %v659 = vld [vmem:[%s647 + $0x2c] sm:$0xf]
      %v660 = vld [vmem:[%s647 + $0x30] sm:$0xf]
      %v661 = vld [vmem:[%s647 + $0x34] sm:$0xf]
      %v662 = vld [vmem:[%s647 + $0x38] sm:$0xf]
      %v663 = vld [vmem:[%s647 + $0x3c] sm:$0xf]
      %v668 = vunpack.c.l.b16 %v643
      %v669 = vunpack.c.l.b16 %v644
      %v670 = vunpack.c.l.b16 %v645
      %v671 = vunpack.c.l.b16 %v646
      %v672 = vpack.c.b16 %v669, %v668
      %v673 = vpack.c.b16 %v671, %v670
      %v692 = vunpack.c.l.b16 %v648
      %v693 = vunpack.c.l.b16 %v649
      %v694 = vunpack.c.l.b16 %v650
      %v695 = vunpack.c.l.b16 %v651
      %v696 = vunpack.c.l.b16 %v652
      %v697 = vunpack.c.l.b16 %v653
      %v698 = vunpack.c.l.b16 %v654
      %v699 = vunpack.c.l.b16 %v655
      %v700 = vunpack.c.l.b16 %v656
      %v701 = vunpack.c.l.b16 %v657
      %v702 = vunpack.c.l.b16 %v658
      %v703 = vunpack.c.l.b16 %v659
      %v704 = vunpack.c.l.b16 %v660
      %v705 = vunpack.c.l.b16 %v661
      %v706 = vunpack.c.l.b16 %v662
      %v707 = vunpack.c.l.b16 %v663
      %v708 = vpack.c.b16 %v693, %v692
      %v709 = vpack.c.b16 %v695, %v694
      %v710 = vpack.c.b16 %v697, %v696
      %v711 = vpack.c.b16 %v699, %v698
      %v712 = vpack.c.b16 %v701, %v700
      %v713 = vpack.c.b16 %v703, %v702
      %v714 = vpack.c.b16 %v705, %v704
      %v715 = vpack.c.b16 %v707, %v706
      %724 = vmatprep.subr.bf16.mxu0 0
      %725 = vmatpush1.bf16.msra.mxu0 %v708
      %726 = vmatprep.subr.bf16.mxu0 0
      %727 = vmatpush1.bf16.msra.mxu0 %v709
      %728 = vmatprep.subr.bf16.mxu0 0
      %729 = vmatpush1.bf16.msra.mxu0 %v710
      %730 = vmatprep.subr.bf16.mxu0 0
      %731 = vmatpush1.bf16.msra.mxu0 %v711
      %732 = vmatprep.subr.bf16.mxu0 0
      %733 = vmatpush1.bf16.msra.mxu0 %v712
      %734 = vmatprep.subr.bf16.mxu0 0
      %735 = vmatpush1.bf16.msra.mxu0 %v713
      %736 = vmatprep.subr.bf16.mxu0 0
      %737 = vmatpush1.bf16.msra.mxu0 %v714
      %738 = vmatprep.subr.bf16.mxu0 0
      %739 = vmatpush1.bf16.msra.mxu0 %v715
      %740 = vmatprep.subr.bf16.mxu0 0
      %741 = vmatpush1.bf16.msra.mxu0 0
      %742 = vmatprep.subr.bf16.mxu0 0
      %743 = vmatpush1.bf16.msra.mxu0 0
      %744 = vmatprep.subr.bf16.mxu0 0
      %745 = vmatpush1.bf16.msra.mxu0 0
      %746 = vmatprep.subr.bf16.mxu0 0
      %747 = vmatpush1.bf16.msra.mxu0 0
      %748 = vmatprep.subr.bf16.mxu0 0
      %749 = vmatpush1.bf16.msra.mxu0 0
      %750 = vmatprep.subr.bf16.mxu0 0
      %751 = vmatpush1.bf16.msra.mxu0 0
      %752 = vmatprep.subr.bf16.mxu0 0
      %753 = vmatpush1.bf16.msra.mxu0 0
      %754 = vmatprep.subr.bf16.mxu0 0
      %755 = vmatpush1.bf16.msra.mxu0 0
      %756 = vmatprep.mubr.bf16.mxu0 0
      %757 = vmatmul.mubr.bf16.gmra.mrb[0].mxu0 %v672
      %v758 = vpop.f32.mrb[0].mxu0
      %v759 = vadd.f32 0.0, %v758
      %v760 = vpop.f32.mrb[0].mxu0
      %v761 = vpop.f32.mrb[0].mxu0
      %v762 = vadd.f32 0.0, %v761
      %v763 = vpop.f32.mrb[0].mxu0
      %764 = vmatprep.mubr.bf16.mxu0 0
      %765 = vmatmul.mubr.bf16.gmra.mrb[0].mxu0 %v673
      %v766 = vpop.f32.mrb[0].mxu0
      %v767 = vadd.f32 0.0, %v766
      %v768 = vpop.f32.mrb[0].mxu0
      %v769 = vpop.f32.mrb[0].mxu0
      %v770 = vadd.f32 0.0, %v769
      %v771 = vpop.f32.mrb[0].mxu0
      %772 = vdwg.mxu0
      %v773 = vadd.f32 %v638, %v759
      %v774 = vadd.f32 %v639, %v762
      %v775 = vadd.f32 %v640, %v767
      %v776 = vadd.f32 %v641, %v770
      %s777 = scalar_lea.vmem %s206, 60
      %v778 = vld [vmem:[%s777] sm:$0xf]
      %v779 = vld [vmem:[%s777 + $0x4] sm:$0xf]
      %v780 = vld [vmem:[%s777 + $0x8] sm:$0xf]
      %v781 = vld [vmem:[%s777 + $0xc] sm:$0xf]
      %s782 = scalar_lea.vmem %s210, 256
      %v783 = vld [vmem:[%s782] sm:$0xf]
      %v784 = vld [vmem:[%s782 + $0x4] sm:$0xf]
      %v785 = vld [vmem:[%s782 + $0x8] sm:$0xf]
      %v786 = vld [vmem:[%s782 + $0xc] sm:$0xf]
      %v787 = vld [vmem:[%s782 + $0x10] sm:$0xf]
      %v788 = vld [vmem:[%s782 + $0x14] sm:$0xf]
      %v789 = vld [vmem:[%s782 + $0x18] sm:$0xf]
      %v790 = vld [vmem:[%s782 + $0x1c] sm:$0xf]
      %v791 = vld [vmem:[%s782 + $0x20] sm:$0xf]
      %v792 = vld [vmem:[%s782 + $0x24] sm:$0xf]
      %v793 = vld [vmem:[%s782 + $0x28] sm:$0xf]
      %v794 = vld [vmem:[%s782 + $0x2c] sm:$0xf]
      %v795 = vld [vmem:[%s782 + $0x30] sm:$0xf]
      %v796 = vld [vmem:[%s782 + $0x34] sm:$0xf]
      %v797 = vld [vmem:[%s782 + $0x38] sm:$0xf]
      %v798 = vld [vmem:[%s782 + $0x3c] sm:$0xf]
      %v803 = vunpack.c.l.b16 %v778
      %v804 = vunpack.c.l.b16 %v779
      %v805 = vunpack.c.l.b16 %v780
      %v806 = vunpack.c.l.b16 %v781
      %v807 = vpack.c.b16 %v804, %v803
      %v808 = vpack.c.b16 %v806, %v805
      %v827 = vunpack.c.l.b16 %v783
      %v828 = vunpack.c.l.b16 %v784
      %v829 = vunpack.c.l.b16 %v785
      %v830 = vunpack.c.l.b16 %v786
      %v831 = vunpack.c.l.b16 %v787
      %v832 = vunpack.c.l.b16 %v788
      %v833 = vunpack.c.l.b16 %v789
      %v834 = vunpack.c.l.b16 %v790
      %v835 = vunpack.c.l.b16 %v791
      %v836 = vunpack.c.l.b16 %v792
      %v837 = vunpack.c.l.b16 %v793
      %v838 = vunpack.c.l.b16 %v794
      %v839 = vunpack.c.l.b16 %v795
      %v840 = vunpack.c.l.b16 %v796
      %v841 = vunpack.c.l.b16 %v797
      %v842 = vunpack.c.l.b16 %v798
      %v843 = vpack.c.b16 %v828, %v827
      %v844 = vpack.c.b16 %v830, %v829
      %v845 = vpack.c.b16 %v832, %v831
      %v846 = vpack.c.b16 %v834, %v833
      %v847 = vpack.c.b16 %v836, %v835
      %v848 = vpack.c.b16 %v838, %v837
      %v849 = vpack.c.b16 %v840, %v839
      %v850 = vpack.c.b16 %v842, %v841
      %859 = vmatprep.subr.bf16.mxu0 0
      %860 = vmatpush1.bf16.msra.mxu0 %v843
      %861 = vmatprep.subr.bf16.mxu0 0
      %862 = vmatpush1.bf16.msra.mxu0 %v844
      %863 = vmatprep.subr.bf16.mxu0 0
      %864 = vmatpush1.bf16.msra.mxu0 %v845
      %865 = vmatprep.subr.bf16.mxu0 0
      %866 = vmatpush1.bf16.msra.mxu0 %v846
      %867 = vmatprep.subr.bf16.mxu0 0
      %868 = vmatpush1.bf16.msra.mxu0 %v847
      %869 = vmatprep.subr.bf16.mxu0 0
      %870 = vmatpush1.bf16.msra.mxu0 %v848
      %871 = vmatprep.subr.bf16.mxu0 0
      %872 = vmatpush1.bf16.msra.mxu0 %v849
      %873 = vmatprep.subr.bf16.mxu0 0
      %874 = vmatpush1.bf16.msra.mxu0 %v850
      %875 = vmatprep.subr.bf16.mxu0 0
      %876 = vmatpush1.bf16.msra.mxu0 0
      %877 = vmatprep.subr.bf16.mxu0 0
      %878 = vmatpush1.bf16.msra.mxu0 0
      %879 = vmatprep.subr.bf16.mxu0 0
      %880 = vmatpush1.bf16.msra.mxu0 0
      %881 = vmatprep.subr.bf16.mxu0 0
      %882 = vmatpush1.bf16.msra.mxu0 0
      %883 = vmatprep.subr.bf16.mxu0 0
      %884 = vmatpush1.bf16.msra.mxu0 0
      %885 = vmatprep.subr.bf16.mxu0 0
      %886 = vmatpush1.bf16.msra.mxu0 0
      %887 = vmatprep.subr.bf16.mxu0 0
      %888 = vmatpush1.bf16.msra.mxu0 0
      %889 = vmatprep.subr.bf16.mxu0 0
      %890 = vmatpush1.bf16.msra.mxu0 0
      %891 = vmatprep.mubr.bf16.mxu0 0
      %892 = vmatmul.mubr.bf16.gmra.mrb[0].mxu0 %v807
      %v893 = vpop.f32.mrb[0].mxu0
      %v894 = vadd.f32 0.0, %v893
      %v895 = vpop.f32.mrb[0].mxu0
      %v896 = vpop.f32.mrb[0].mxu0
      %v897 = vadd.f32 0.0, %v896
      %v898 = vpop.f32.mrb[0].mxu0
      %899 = vmatprep.mubr.bf16.mxu0 0
      %900 = vmatmul.mubr.bf16.gmra.mrb[0].mxu0 %v808
      %v901 = vpop.f32.mrb[0].mxu0
      %v902 = vadd.f32 0.0, %v901
      %v903 = vpop.f32.mrb[0].mxu0
      %v904 = vpop.f32.mrb[0].mxu0
      %v905 = vadd.f32 0.0, %v904
      %v906 = vpop.f32.mrb[0].mxu0
      %907 = vdwg.mxu0
      %v908 = vadd.f32 %v773, %v894
      %v909 = vadd.f32 %v774, %v897
      %v910 = vadd.f32 %v775, %v902
      %v911 = vadd.f32 %v776, %v905
      %v912 = vld [vmem:[%s642] sm:$0xf]
      %v913 = vld [vmem:[%s642 + $0x4] sm:$0xf]
      %v914 = vld [vmem:[%s642 + $0x8] sm:$0xf]
      %v915 = vld [vmem:[%s642 + $0xc] sm:$0xf]
      %v916 = vld [vmem:[%s642 + $0x10] sm:$0x1]
      %s917 = scalar_lea.vmem %s210, 320
      %v918 = vld [vmem:[%s917] sm:$0xf]
      %v919 = vld [vmem:[%s917 + $0x4] sm:$0xf]
      %v920 = vld [vmem:[%s917 + $0x8] sm:$0xf]
      %v921 = vld [vmem:[%s917 + $0xc] sm:$0xf]
      %v922 = vld [vmem:[%s917 + $0x10] sm:$0xf]
      %v923 = vld [vmem:[%s917 + $0x14] sm:$0xf]
      %v924 = vld [vmem:[%s917 + $0x18] sm:$0xf]
      %v925 = vld [vmem:[%s917 + $0x1c] sm:$0xf]
      %v926 = vld [vmem:[%s917 + $0x20] sm:$0xf]
      %v927 = vld [vmem:[%s917 + $0x24] sm:$0xf]
      %v928 = vld [vmem:[%s917 + $0x28] sm:$0xf]
      %v929 = vld [vmem:[%s917 + $0x2c] sm:$0xf]
      %v930 = vld [vmem:[%s917 + $0x30] sm:$0xf]
      %v931 = vld [vmem:[%s917 + $0x34] sm:$0xf]
      %v932 = vld [vmem:[%s917 + $0x38] sm:$0xf]
      %v933 = vld [vmem:[%s917 + $0x3c] sm:$0xf]
      %v939 = vunpack.c.l.b16 %v912
      %v940 = vunpack.c.l.b16 %v913
      %v941 = vunpack.c.l.b16 %v914
      %v942 = vunpack.c.l.b16 %v915
      %v943 = vunpack.c.l.b16 %v916
      %v944 = vpack.c.b16 %v940, %v939
      %v945 = vpack.c.b16 %v942, %v941
      %v946 = vpack.c.b16 %v943, %v943
      %v948 = vshrl.u32 %v944, 16
      %v950 = vshll.u32 %v944, 16
      %v952 = vrot.slane %v950, 1
      %v953 = vor.u32 %v948, %v952
      %v955 = vshll.u32 %v945, 16
      %v957 = vrot.slane %v955, 1
      %v958 = vsel %vm518, %v953, %v957
      %v959 = vshrl.u32 %v945, 16
      %v961 = vor.u32 %v959, %v957
      %v963 = vshll.u32 %v946, 16
      %v965 = vrot.slane %v963, 1
      %v966 = vsel %vm518, %v961, %v965
      %v985 = vunpack.c.l.b16 %v918
      %v986 = vunpack.c.l.b16 %v919
      %v987 = vunpack.c.l.b16 %v920
      %v988 = vunpack.c.l.b16 %v921
      %v989 = vunpack.c.l.b16 %v922
      %v990 = vunpack.c.l.b16 %v923
      %v991 = vunpack.c.l.b16 %v924
      %v992 = vunpack.c.l.b16 %v925
      %v993 = vunpack.c.l.b16 %v926
      %v994 = vunpack.c.l.b16 %v927
      %v995 = vunpack.c.l.b16 %v928
      %v996 = vunpack.c.l.b16 %v929
      %v997 = vunpack.c.l.b16 %v930
      %v998 = vunpack.c.l.b16 %v931
      %v999 = vunpack.c.l.b16 %v932
      %v1000 = vunpack.c.l.b16 %v933
      %v1001 = vpack.c.b16 %v986, %v985
      %v1002 = vpack.c.b16 %v988, %v987
      %v1003 = vpack.c.b16 %v990, %v989
      %v1004 = vpack.c.b16 %v992, %v991
      %v1005 = vpack.c.b16 %v994, %v993
      %v1006 = vpack.c.b16 %v996, %v995
      %v1007 = vpack.c.b16 %v998, %v997
      %v1008 = vpack.c.b16 %v1000, %v999
      %1017 = vmatprep.subr.bf16.mxu0 0
      %1018 = vmatpush1.bf16.msra.mxu0 %v1001
      %1019 = vmatprep.subr.bf16.mxu0 0
      %1020 = vmatpush1.bf16.msra.mxu0 %v1002
      %1021 = vmatprep.subr.bf16.mxu0 0
      %1022 = vmatpush1.bf16.msra.mxu0 %v1003
      %1023 = vmatprep.subr.bf16.mxu0 0
      %1024 = vmatpush1.bf16.msra.mxu0 %v1004
      %1025 = vmatprep.subr.bf16.mxu0 0
      %1026 = vmatpush1.bf16.msra.mxu0 %v1005
      %1027 = vmatprep.subr.bf16.mxu0 0
      %1028 = vmatpush1.bf16.msra.mxu0 %v1006
      %1029 = vmatprep.subr.bf16.mxu0 0
      %1030 = vmatpush1.bf16.msra.mxu0 %v1007
      %1031 = vmatprep.subr.bf16.mxu0 0
      %1032 = vmatpush1.bf16.msra.mxu0 %v1008
      %1033 = vmatprep.subr.bf16.mxu0 0
      %1034 = vmatpush1.bf16.msra.mxu0 0
      %1035 = vmatprep.subr.bf16.mxu0 0
      %1036 = vmatpush1.bf16.msra.mxu0 0
      %1037 = vmatprep.subr.bf16.mxu0 0
      %1038 = vmatpush1.bf16.msra.mxu0 0
      %1039 = vmatprep.subr.bf16.mxu0 0
      %1040 = vmatpush1.bf16.msra.mxu0 0
      %1041 = vmatprep.subr.bf16.mxu0 0
      %1042 = vmatpush1.bf16.msra.mxu0 0
      %1043 = vmatprep.subr.bf16.mxu0 0
      %1044 = vmatpush1.bf16.msra.mxu0 0
      %1045 = vmatprep.subr.bf16.mxu0 0
      %1046 = vmatpush1.bf16.msra.mxu0 0
      %1047 = vmatprep.subr.bf16.mxu0 0
      %1048 = vmatpush1.bf16.msra.mxu0 0
      %1049 = vmatprep.mubr.bf16.mxu0 0
      %1050 = vmatmul.mubr.bf16.gmra.mrb[0].mxu0 %v958
      %v1051 = vpop.f32.mrb[0].mxu0
      %v1052 = vadd.f32 0.0, %v1051
      %v1053 = vpop.f32.mrb[0].mxu0
      %v1054 = vpop.f32.mrb[0].mxu0
      %v1055 = vadd.f32 0.0, %v1054
      %v1056 = vpop.f32.mrb[0].mxu0
      %1057 = vmatprep.mubr.bf16.mxu0 0
      %1058 = vmatmul.mubr.bf16.gmra.mrb[0].mxu0 %v966
      %v1059 = vpop.f32.mrb[0].mxu0
      %v1060 = vadd.f32 0.0, %v1059
      %v1061 = vpop.f32.mrb[0].mxu0
      %v1062 = vpop.f32.mrb[0].mxu0
      %v1063 = vadd.f32 0.0, %v1062
      %v1064 = vpop.f32.mrb[0].mxu0
      %1065 = vdwg.mxu0
      %v1066 = vadd.f32 %v908, %v1052
      %v1067 = vadd.f32 %v909, %v1055
      %v1068 = vadd.f32 %v910, %v1060
      %v1069 = vadd.f32 %v911, %v1063
      %v1070 = vld [vmem:[%s206] sm:$0xc]
      %v1071 = vld [vmem:[%s206 + $0x10] sm:$0x7]
      %s1072 = scalar_lea.vmem %s210, 384
      %v1073 = vld [vmem:[%s1072] sm:$0xf]
      %v1074 = vld [vmem:[%s1072 + $0x4] sm:$0xf]
      %v1075 = vld [vmem:[%s1072 + $0x8] sm:$0xf]
      %v1076 = vld [vmem:[%s1072 + $0xc] sm:$0xf]
      %v1077 = vld [vmem:[%s1072 + $0x10] sm:$0xf]
      %v1078 = vld [vmem:[%s1072 + $0x14] sm:$0xf]
      %v1079 = vld [vmem:[%s1072 + $0x18] sm:$0xf]
      %v1080 = vld [vmem:[%s1072 + $0x1c] sm:$0xf]
      %v1081 = vld [vmem:[%s1072 + $0x20] sm:$0xf]
      %v1082 = vld [vmem:[%s1072 + $0x24] sm:$0xf]
      %v1083 = vld [vmem:[%s1072 + $0x28] sm:$0xf]
      %v1084 = vld [vmem:[%s1072 + $0x2c] sm:$0xf]
      %v1085 = vld [vmem:[%s1072 + $0x30] sm:$0xf]
      %v1086 = vld [vmem:[%s1072 + $0x34] sm:$0xf]
      %v1087 = vld [vmem:[%s1072 + $0x38] sm:$0xf]
      %v1088 = vld [vmem:[%s1072 + $0x3c] sm:$0xf]
      %v1091 = vunpack.c.l.b16 %v1070
      %v1092 = vunpack.c.l.b16 %v1071
      %v1093 = vpack.c.b16 %v511, %v1091
      %v1094 = vpack.c.b16 %v1092, %v1092
      %vm1095 = vsmask.f32 5376
      %v1097 = vshrl.u32 %v1093, 16
      %v1099 = vrot.slane %v1097, 2
      %v1100 = vshll.u32 %v1093, 16
      %v1102 = vrot.slane %v1100, 3
      %v1103 = vor.u32 %v1099, %v1102
      %v1104 = vrot.slane %v531, 2
      %v1105 = vrot.slane %v527, 3
      %v1106 = vor.u32 %v1104, %v1105
      %v1107 = vsel %vm1095, %v1103, %v1106
      %v1109 = vshrl.u32 %v1094, 16
      %v1111 = vrot.slane %v1109, 2
      %v1112 = vshll.u32 %v1094, 16
      %v1114 = vrot.slane %v1112, 3
      %v1115 = vor.u32 %v1111, %v1114
      %v1116 = vsel %vm1095, %v1106, %v1115
      %v1135 = vunpack.c.l.b16 %v1073
      %v1136 = vunpack.c.l.b16 %v1074
      %v1137 = vunpack.c.l.b16 %v1075
      %v1138 = vunpack.c.l.b16 %v1076
      %v1139 = vunpack.c.l.b16 %v1077
      %v1140 = vunpack.c.l.b16 %v1078
      %v1141 = vunpack.c.l.b16 %v1079
      %v1142 = vunpack.c.l.b16 %v1080
      %v1143 = vunpack.c.l.b16 %v1081
      %v1144 = vunpack.c.l.b16 %v1082
      %v1145 = vunpack.c.l.b16 %v1083
      %v1146 = vunpack.c.l.b16 %v1084
      %v1147 = vunpack.c.l.b16 %v1085
      %v1148 = vunpack.c.l.b16 %v1086
      %v1149 = vunpack.c.l.b16 %v1087
      %v1150 = vunpack.c.l.b16 %v1088
      %v1151 = vpack.c.b16 %v1136, %v1135
      %v1152 = vpack.c.b16 %v1138, %v1137
      %v1153 = vpack.c.b16 %v1140, %v1139
      %v1154 = vpack.c.b16 %v1142, %v1141
      %v1155 = vpack.c.b16 %v1144, %v1143
      %v1156 = vpack.c.b16 %v1146, %v1145
      %v1157 = vpack.c.b16 %v1148, %v1147
      %v1158 = vpack.c.b16 %v1150, %v1149
      %1167 = vmatprep.subr.bf16.mxu0 0
      %1168 = vmatpush1.bf16.msra.mxu0 %v1151
      %1169 = vmatprep.subr.bf16.mxu0 0
      %1170 = vmatpush1.bf16.msra.mxu0 %v1152
      %1171 = vmatprep.subr.bf16.mxu0 0
      %1172 = vmatpush1.bf16.msra.mxu0 %v1153
      %1173 = vmatprep.subr.bf16.mxu0 0
      %1174 = vmatpush1.bf16.msra.mxu0 %v1154
      %1175 = vmatprep.subr.bf16.mxu0 0
      %1176 = vmatpush1.bf16.msra.mxu0 %v1155
      %1177 = vmatprep.subr.bf16.mxu0 0
      %1178 = vmatpush1.bf16.msra.mxu0 %v1156
      %1179 = vmatprep.subr.bf16.mxu0 0
      %1180 = vmatpush1.bf16.msra.mxu0 %v1157
      %1181 = vmatprep.subr.bf16.mxu0 0
      %1182 = vmatpush1.bf16.msra.mxu0 %v1158
      %1183 = vmatprep.subr.bf16.mxu0 0
      %1184 = vmatpush1.bf16.msra.mxu0 0
      %1185 = vmatprep.subr.bf16.mxu0 0
      %1186 = vmatpush1.bf16.msra.mxu0 0
      %1187 = vmatprep.subr.bf16.mxu0 0
      %1188 = vmatpush1.bf16.msra.mxu0 0
      %1189 = vmatprep.subr.bf16.mxu0 0
      %1190 = vmatpush1.bf16.msra.mxu0 0
      %1191 = vmatprep.subr.bf16.mxu0 0
      %1192 = vmatpush1.bf16.msra.mxu0 0
      %1193 = vmatprep.subr.bf16.mxu0 0
      %1194 = vmatpush1.bf16.msra.mxu0 0
      %1195 = vmatprep.subr.bf16.mxu0 0
      %1196 = vmatpush1.bf16.msra.mxu0 0
      %1197 = vmatprep.subr.bf16.mxu0 0
      %1198 = vmatpush1.bf16.msra.mxu0 0
      %1199 = vmatprep.mubr.bf16.mxu0 0
      %1200 = vmatmul.mubr.bf16.gmra.mrb[0].mxu0 %v1107
      %v1201 = vpop.f32.mrb[0].mxu0
      %v1202 = vadd.f32 0.0, %v1201
      %v1203 = vpop.f32.mrb[0].mxu0
      %v1204 = vpop.f32.mrb[0].mxu0
      %v1205 = vadd.f32 0.0, %v1204
      %v1206 = vpop.f32.mrb[0].mxu0
      %1207 = vmatprep.mubr.bf16.mxu0 0
      %1208 = vmatmul.mubr.bf16.gmra.mrb[0].mxu0 %v1116
      %v1209 = vpop.f32.mrb[0].mxu0
      %v1210 = vadd.f32 0.0, %v1209
      %v1211 = vpop.f32.mrb[0].mxu0
      %v1212 = vpop.f32.mrb[0].mxu0
      %v1213 = vadd.f32 0.0, %v1212
      %v1214 = vpop.f32.mrb[0].mxu0
      %1215 = vdwg.mxu0
      %v1216 = vadd.f32 %v1066, %v1202
      %v1217 = vadd.f32 %v1067, %v1205
      %v1218 = vadd.f32 %v1068, %v1210
      %v1219 = vadd.f32 %v1069, %v1213
      %v1220 = vld [vmem:[%s243] sm:$0xc]
      %v1221 = vld [vmem:[%s243 + $0x4] sm:$0xf]
      %v1222 = vld [vmem:[%s243 + $0x8] sm:$0xf]
      %v1223 = vld [vmem:[%s243 + $0xc] sm:$0xf]
      %v1224 = vld [vmem:[%s243 + $0x10] sm:$0x7]
      %s1225 = scalar_lea.vmem %s210, 448
      %v1226 = vld [vmem:[%s1225] sm:$0xf]
      %v1227 = vld [vmem:[%s1225 + $0x4] sm:$0xf]
      %v1228 = vld [vmem:[%s1225 + $0x8] sm:$0xf]
      %v1229 = vld [vmem:[%s1225 + $0xc] sm:$0xf]
      %v1230 = vld [vmem:[%s1225 + $0x10] sm:$0xf]
      %v1231 = vld [vmem:[%s1225 + $0x14] sm:$0xf]
      %v1232 = vld [vmem:[%s1225 + $0x18] sm:$0xf]
      %v1233 = vld [vmem:[%s1225 + $0x1c] sm:$0xf]
      %v1234 = vld [vmem:[%s1225 + $0x20] sm:$0xf]
      %v1235 = vld [vmem:[%s1225 + $0x24] sm:$0xf]
      %v1236 = vld [vmem:[%s1225 + $0x28] sm:$0xf]
      %v1237 = vld [vmem:[%s1225 + $0x2c] sm:$0xf]
      %v1238 = vld [vmem:[%s1225 + $0x30] sm:$0xf]
      %v1239 = vld [vmem:[%s1225 + $0x34] sm:$0xf]
      %v1240 = vld [vmem:[%s1225 + $0x38] sm:$0xf]
      %v1241 = vld [vmem:[%s1225 + $0x3c] sm:$0xf]
      %v1247 = vunpack.c.l.b16 %v1220
      %v1248 = vunpack.c.l.b16 %v1221
      %v1249 = vunpack.c.l.b16 %v1222
      %v1250 = vunpack.c.l.b16 %v1223
      %v1251 = vunpack.c.l.b16 %v1224
      %v1252 = vpack.c.b16 %v1248, %v1247
      %v1253 = vpack.c.b16 %v1250, %v1249
      %v1254 = vpack.c.b16 %v1251, %v1251
      %v1256 = vshrl.u32 %v1252, 16
      %v1258 = vrot.slane %v1256, 2
      %v1259 = vshll.u32 %v1252, 16
      %v1261 = vrot.slane %v1259, 3
      %v1262 = vor.u32 %v1258, %v1261
      %v1264 = vshrl.u32 %v1253, 16
      %v1266 = vrot.slane %v1264, 2
      %v1267 = vshll.u32 %v1253, 16
      %v1269 = vrot.slane %v1267, 3
      %v1270 = vor.u32 %v1266, %v1269
      %v1271 = vsel %vm1095, %v1262, %v1270
      %v1273 = vshrl.u32 %v1254, 16
      %v1275 = vrot.slane %v1273, 2
      %v1276 = vshll.u32 %v1254, 16
      %v1278 = vrot.slane %v1276, 3
      %v1279 = vor.u32 %v1275, %v1278
      %v1280 = vsel %vm1095, %v1270, %v1279
      %v1299 = vunpack.c.l.b16 %v1226
      %v1300 = vunpack.c.l.b16 %v1227
      %v1301 = vunpack.c.l.b16 %v1228
      %v1302 = vunpack.c.l.b16 %v1229
      %v1303 = vunpack.c.l.b16 %v1230
      %v1304 = vunpack.c.l.b16 %v1231
      %v1305 = vunpack.c.l.b16 %v1232
      %v1306 = vunpack.c.l.b16 %v1233
      %v1307 = vunpack.c.l.b16 %v1234
      %v1308 = vunpack.c.l.b16 %v1235
      %v1309 = vunpack.c.l.b16 %v1236
      %v1310 = vunpack.c.l.b16 %v1237
      %v1311 = vunpack.c.l.b16 %v1238
      %v1312 = vunpack.c.l.b16 %v1239
      %v1313 = vunpack.c.l.b16 %v1240
      %v1314 = vunpack.c.l.b16 %v1241
      %v1315 = vpack.c.b16 %v1300, %v1299
      %v1316 = vpack.c.b16 %v1302, %v1301
      %v1317 = vpack.c.b16 %v1304, %v1303
      %v1318 = vpack.c.b16 %v1306, %v1305
      %v1319 = vpack.c.b16 %v1308, %v1307
      %v1320 = vpack.c.b16 %v1310, %v1309
      %v1321 = vpack.c.b16 %v1312, %v1311
      %v1322 = vpack.c.b16 %v1314, %v1313
      %1331 = vmatprep.subr.bf16.mxu0 0
      %1332 = vmatpush1.bf16.msra.mxu0 %v1315
      %1333 = vmatprep.subr.bf16.mxu0 0
      %1334 = vmatpush1.bf16.msra.mxu0 %v1316
      %1335 = vmatprep.subr.bf16.mxu0 0
      %1336 = vmatpush1.bf16.msra.mxu0 %v1317
      %1337 = vmatprep.subr.bf16.mxu0 0
      %1338 = vmatpush1.bf16.msra.mxu0 %v1318
      %1339 = vmatprep.subr.bf16.mxu0 0
      %1340 = vmatpush1.bf16.msra.mxu0 %v1319
      %1341 = vmatprep.subr.bf16.mxu0 0
      %1342 = vmatpush1.bf16.msra.mxu0 %v1320
      %1343 = vmatprep.subr.bf16.mxu0 0
      %1344 = vmatpush1.bf16.msra.mxu0 %v1321
      %1345 = vmatprep.subr.bf16.mxu0 0
      %1346 = vmatpush1.bf16.msra.mxu0 %v1322
      %1347 = vmatprep.subr.bf16.mxu0 0
      %1348 = vmatpush1.bf16.msra.mxu0 0
      %1349 = vmatprep.subr.bf16.mxu0 0
      %1350 = vmatpush1.bf16.msra.mxu0 0
      %1351 = vmatprep.subr.bf16.mxu0 0
      %1352 = vmatpush1.bf16.msra.mxu0 0
      %1353 = vmatprep.subr.bf16.mxu0 0
      %1354 = vmatpush1.bf16.msra.mxu0 0
      %1355 = vmatprep.subr.bf16.mxu0 0
      %1356 = vmatpush1.bf16.msra.mxu0 0
      %1357 = vmatprep.subr.bf16.mxu0 0
      %1358 = vmatpush1.bf16.msra.mxu0 0
      %1359 = vmatprep.subr.bf16.mxu0 0
      %1360 = vmatpush1.bf16.msra.mxu0 0
      %1361 = vmatprep.subr.bf16.mxu0 0
      %1362 = vmatpush1.bf16.msra.mxu0 0
      %1363 = vmatprep.mubr.bf16.mxu0 0
      %1364 = vmatmul.mubr.bf16.gmra.mrb[0].mxu0 %v1271
      %v1365 = vpop.f32.mrb[0].mxu0
      %v1366 = vadd.f32 0.0, %v1365
      %v1367 = vpop.f32.mrb[0].mxu0
      %v1368 = vpop.f32.mrb[0].mxu0
      %v1369 = vadd.f32 0.0, %v1368
      %v1370 = vpop.f32.mrb[0].mxu0
      %1371 = vmatprep.mubr.bf16.mxu0 0
      %1372 = vmatmul.mubr.bf16.gmra.mrb[0].mxu0 %v1280
      %v1373 = vpop.f32.mrb[0].mxu0
      %v1374 = vadd.f32 0.0, %v1373
      %v1375 = vpop.f32.mrb[0].mxu0
      %v1376 = vpop.f32.mrb[0].mxu0
      %v1377 = vadd.f32 0.0, %v1376
      %v1378 = vpop.f32.mrb[0].mxu0
      %1379 = vdwg.mxu0
      %v1380 = vadd.f32 %v1216, %v1366
      %v1381 = vadd.f32 %v1217, %v1369
      %v1382 = vadd.f32 %v1218, %v1374
      %v1383 = vadd.f32 %v1219, %v1377
      %v1384 = vld [vmem:[%s206] sm:$0x8]
      %s1385 = scalar_lea.vmem %s210, 512
      %v1386 = vld [vmem:[%s1385] sm:$0xf]
      %v1387 = vld [vmem:[%s1385 + $0x4] sm:$0xf]
      %v1388 = vld [vmem:[%s1385 + $0x8] sm:$0xf]
      %v1389 = vld [vmem:[%s1385 + $0xc] sm:$0xf]
      %v1390 = vld [vmem:[%s1385 + $0x10] sm:$0xf]
      %v1391 = vld [vmem:[%s1385 + $0x14] sm:$0xf]
      %v1392 = vld [vmem:[%s1385 + $0x18] sm:$0xf]
      %v1393 = vld [vmem:[%s1385 + $0x1c] sm:$0xf]
      %v1394 = vld [vmem:[%s1385 + $0x20] sm:$0xf]
      %v1395 = vld [vmem:[%s1385 + $0x24] sm:$0xf]
      %v1396 = vld [vmem:[%s1385 + $0x28] sm:$0xf]
      %v1397 = vld [vmem:[%s1385 + $0x2c] sm:$0xf]
      %v1398 = vld [vmem:[%s1385 + $0x30] sm:$0xf]
      %v1399 = vld [vmem:[%s1385 + $0x34] sm:$0xf]
      %v1400 = vld [vmem:[%s1385 + $0x38] sm:$0xf]
      %v1401 = vld [vmem:[%s1385 + $0x3c] sm:$0xf]
      %v1403 = vunpack.c.l.b16 %v1384
      %v1404 = vpack.c.b16 %v511, %v1403
      %vm1405 = vcmask 1044480
      %v1406 = vrot.slane %v1404, 3
      %v1407 = vrot.slane %v516, 3
      %v1408 = vsel %vm1405, %v1406, %v1407
      %v1409 = vrot.slane %v1094, 3
      %v1410 = vsel %vm1405, %v1407, %v1409
      %v1429 = vunpack.c.l.b16 %v1386
      %v1430 = vunpack.c.l.b16 %v1387
      %v1431 = vunpack.c.l.b16 %v1388
      %v1432 = vunpack.c.l.b16 %v1389
      %v1433 = vunpack.c.l.b16 %v1390
      %v1434 = vunpack.c.l.b16 %v1391
      %v1435 = vunpack.c.l.b16 %v1392
      %v1436 = vunpack.c.l.b16 %v1393
      %v1437 = vunpack.c.l.b16 %v1394
      %v1438 = vunpack.c.l.b16 %v1395
      %v1439 = vunpack.c.l.b16 %v1396
      %v1440 = vunpack.c.l.b16 %v1397
      %v1441 = vunpack.c.l.b16 %v1398
      %v1442 = vunpack.c.l.b16 %v1399
      %v1443 = vunpack.c.l.b16 %v1400
      %v1444 = vunpack.c.l.b16 %v1401
      %v1445 = vpack.c.b16 %v1430, %v1429
      %v1446 = vpack.c.b16 %v1432, %v1431
      %v1447 = vpack.c.b16 %v1434, %v1433
      %v1448 = vpack.c.b16 %v1436, %v1435
      %v1449 = vpack.c.b16 %v1438, %v1437
      %v1450 = vpack.c.b16 %v1440, %v1439
      %v1451 = vpack.c.b16 %v1442, %v1441
      %v1452 = vpack.c.b16 %v1444, %v1443
      %1461 = vmatprep.subr.bf16.mxu0 0
      %1462 = vmatpush1.bf16.msra.mxu0 %v1445
      %1463 = vmatprep.subr.bf16.mxu0 0
      %1464 = vmatpush1.bf16.msra.mxu0 %v1446
      %1465 = vmatprep.subr.bf16.mxu0 0
      %1466 = vmatpush1.bf16.msra.mxu0 %v1447
      %1467 = vmatprep.subr.bf16.mxu0 0
      %1468 = vmatpush1.bf16.msra.mxu0 %v1448
      %1469 = vmatprep.subr.bf16.mxu0 0
      %1470 = vmatpush1.bf16.msra.mxu0 %v1449
      %1471 = vmatprep.subr.bf16.mxu0 0
      %1472 = vmatpush1.bf16.msra.mxu0 %v1450
      %1473 = vmatprep.subr.bf16.mxu0 0
      %1474 = vmatpush1.bf16.msra.mxu0 %v1451
      %1475 = vmatprep.subr.bf16.mxu0 0
      %1476 = vmatpush1.bf16.msra.mxu0 %v1452
      %1477 = vmatprep.subr.bf16.mxu0 0
      %1478 = vmatpush1.bf16.msra.mxu0 0
      %1479 = vmatprep.subr.bf16.mxu0 0
      %1480 = vmatpush1.bf16.msra.mxu0 0
      %1481 = vmatprep.subr.bf16.mxu0 0
      %1482 = vmatpush1.bf16.msra.mxu0 0
      %1483 = vmatprep.subr.bf16.mxu0 0
      %1484 = vmatpush1.bf16.msra.mxu0 0
      %1485 = vmatprep.subr.bf16.mxu0 0
      %1486 = vmatpush1.bf16.msra.mxu0 0
      %1487 = vmatprep.subr.bf16.mxu0 0
      %1488 = vmatpush1.bf16.msra.mxu0 0
      %1489 = vmatprep.subr.bf16.mxu0 0
      %1490 = vmatpush1.bf16.msra.mxu0 0
      %1491 = vmatprep.subr.bf16.mxu0 0
      %1492 = vmatpush1.bf16.msra.mxu0 0
      %1493 = vmatprep.mubr.bf16.mxu0 0
      %1494 = vmatmul.mubr.bf16.gmra.mrb[0].mxu0 %v1408
      %v1495 = vpop.f32.mrb[0].mxu0
      %v1496 = vadd.f32 0.0, %v1495
      %v1497 = vpop.f32.mrb[0].mxu0
      %v1498 = vpop.f32.mrb[0].mxu0
      %v1499 = vadd.f32 0.0, %v1498
      %v1500 = vpop.f32.mrb[0].mxu0
      %1501 = vmatprep.mubr.bf16.mxu0 0
      %1502 = vmatmul.mubr.bf16.gmra.mrb[0].mxu0 %v1410
      %v1503 = vpop.f32.mrb[0].mxu0
      %v1504 = vadd.f32 0.0, %v1503
      %v1505 = vpop.f32.mrb[0].mxu0
      %v1506 = vpop.f32.mrb[0].mxu0
      %v1507 = vadd.f32 0.0, %v1506
      %v1508 = vpop.f32.mrb[0].mxu0
      %1509 = vdwg.mxu0
      %v1510 = vadd.f32 %v1380, %v1496
      %v1511 = vadd.f32 %v1381, %v1499
      %v1512 = vadd.f32 %v1382, %v1504
      %v1513 = vadd.f32 %v1383, %v1507
      %v1514 = vld [vmem:[%s213] sm:$0x1]
      %v1516 = vlaneseq
      %v1517 = vshrl.u32 %v1516, 7
      %v1518 = vsub.s32 0, %v1517
      %v1519 = vrot.slane %v1514, %v1518
      %v1521 = vadd.f32 %v1510, %v1519
      %v1522 = vadd.f32 %v1511, %v1519
      %v1523 = vadd.f32 %v1512, %v1519
      %v1524 = vadd.f32 %v1513, %v1519
      %v1525 = vmax.f32 %v1521, 0.0
      %v1526 = vmax.f32 %v1522, 0.0
      %v1527 = vmax.f32 %v1523, 0.0
      %v1528 = vmax.f32 %v1524, 0.0
      %v1529 = vpack.c.bf16 %v1526, %v1525
      %v1530 = vpack.c.bf16 %v1528, %v1527
      %v1533 = vunpack.c.l.b16 %v1529
      %v1534 = vunpack.c.h.b16 %v1529
      %v1535 = vunpack.c.l.b16 %v1530
      %v1536 = vunpack.c.h.b16 %v1530
      %v1537 = vpack.c.b16 %v1533, %v1533
      %v1538 = vpack.c.b16 %v1534, %v1534
      %v1539 = vpack.c.b16 %v1535, %v1535
      %v1540 = vpack.c.b16 %v1536, %v1536
      %1545 = vst [vmem:[%s221] sm:$0xf] %v1537
      %1546 = vst [vmem:[%s221 + $0x4] sm:$0xf] %v1538
      %1547 = vst [vmem:[%s221 + $0x8] sm:$0xf] %v1539
      %1548 = vst [vmem:[%s221 + $0xc] sm:$0xf] %v1540
      %p1549 = scmp.lt.s32.totalorder %s18, 1
      %s1550 = scalar_select %p1549, %s18, 1
      %p1551 = scmp.lt.s32.totalorder %s19, 0
      %s1552 = scalar_select %p1551, %s19, 0
      %s1553 = smul.addr %s1550, 4
      %s1554 = sadd.s32 %s1552, %s1553
      %s1555 = smul.addr %s1554, 4
      %s1556 = scalar_lea.vmem %s3, %s1555
      // Predicated region
      $region33: #{backboned_forward.4} parent=31 // pred_check
        %p1557 = pneg %p124
      $region34: #{backboned_forward.4} parent=31 // pred_check_branch
        %1559 = sbr.rel (%p1557) target = $region36
      $region35: #{backboned_forward.4} parent=31 // pred_region
        _
      $region36: #{backboned_forward.4} parent=31 // pred_fallthru
        _
    $region32: #{backboned_forward.4} parent=5 // pred_fallthru
      _
    %p1560 = scmp.le.s32.totalorder 2, %s9
    // Predicated region
    $region37: #{backboned_forward.4} parent=5 // pred_check
      %p1561 = pneg %p1560
    $region38: #{backboned_forward.4} parent=5 // pred_check_branch
      %1563 = sbr.rel (%p1561) target = $region40
    $region39: #{backboned_forward.4} parent=5 // pred_region
      %s1564 = ssub.s32 %s9, 2
      // Predicated region
      $region41: #{backboned_forward.4} parent=39 // pred_check
        %p1565 = pneg %p130
      $region42: #{backboned_forward.4} parent=39 // pred_check_branch
        %1567 = sbr.rel (%p1565) target = $region44
      $region43: #{backboned_forward.4} parent=39 // pred_region
        %p1568 = scmp.lt.s32.totalorder %s20, 1
        %s1569 = scalar_select %p1568, %s20, 1
        %p1570 = scmp.lt.s32.totalorder %s21, 0
        %s1571 = scalar_select %p1570, %s21, 0
        %s1572 = smul.addr %s1569, 4
        %s1573 = sadd.s32 %s1571, %s1572
        %s1574 = smul.addr %s1573, 4
        %s1575 = scalar_lea.vmem %s3, %s1574
      $region44: #{backboned_forward.4} parent=39 // pred_fallthru
        _
    $region40: #{backboned_forward.4} parent=5 // pred_fallthru
      _
  $region6: #{backboned_forward.4} parent=0 // loop_footer
    %s13 = sadd.s32 1, %s9
  $region7: #{backboned_forward.4} parent=0 // loop_footer_branch
    %8 = sbr.rel target = $region3
  $region8: #{backboned_forward.4} parent=0 // loop_exit
    _

// kernel: backboned_forward.3
$region0: #{backboned_forward.3}
  #allocation0 [shape = 'u32[]', space=smem, size = 0x4, offset = 0x4, fixed_abs, tag = 'smem constant byte address 0x4 - core index']
  #allocation1 [shape = 'u32[144,128]{1,0:T(1,128)}', space=vmem, size = 0x12000, scoped, tag = 'internal scratch']
  %s0 = inlined_call_operand.vmem [shape: bf16[2,4,104,128], index: 0, kind: input, shape index: {}]
  %s1 = inlined_call_operand.vmem [shape: bf16[9,128,128], index: 1, kind: input, shape index: {}]
  %s2 = inlined_call_operand.vmem [shape: f32[1,128], index: 2, kind: input, shape index: {}]
  %s3 = inlined_call_operand.vmem [shape: bf16[2,88,128], index: 3, kind: output, shape index: {}]
  %s4 = sld [smem:[#allocation0]]
  $region45: #{backboned_forward.3} parent=0
    _
  %s6 = ssub.s32 1, %s4
  %s7 = scalar_select 0, %s6, %s4
  loop: start=0, step=1, limit=4
  $region2: #{backboned_forward.3} parent=0 // loop_pre_header
    _
  $region3: #{backboned_forward.3} parent=0 // loop_header
    %s9 = sphi 0, %s13
    %p10 = scmp.ge.s32.totalorder %s9, 4
    %s16 = sphi 0, %s28
    %s17 = sphi 0, %s24
    %s18 = sphi 0, %s16
    %s19 = sphi 0, %s17
    %s20 = sphi 0, %s18
    %s21 = sphi 0, %s19
    %s31 = sphi 0, %s33
    %s34 = sphi 0, %s31
    %s35 = sphi 0, %s34
    %s51 = sphi 0, %s35
    %s57 = sphi 0, %s59
    %s60 = sphi 0, %s57
    %s61 = sphi 0, %s60
    %s77 = sphi 0, %s61
    %s83 = sphi 0, %s85
    %s86 = sphi 0, %s83
    %s87 = sphi 0, %s86
    %s103 = sphi 0, %s87
    %s111 = sphi 0, %s113
    %s114 = sphi 0, %s111
    %s115 = sphi 0, %s114
    %s131 = sphi 0, %s115
  $region4: #{backboned_forward.3} parent=0 // loop_header_branch
    %12 = sbr.rel (%p10) target = $region8
  $region5: #{backboned_forward.3} parent=0 // loop_body
    %s14 = ssub.s32 %s9, 1
    %s15 = ssub.s32 %s9, 2
    %s22 = sadd.s32 1, %s17
    %p23 = scmp.ge.s32.totalorder %s22, 1
    %s24 = scalar_select %p23, 0, %s22
    %s25 = sadd.s32 1, %s16
    %s26 = scalar_select %p23, %s25, %s16
    %p27 = scmp.ge.s32.totalorder %s26, 2
    %s28 = scalar_select %p27, 0, %s26
    %s29 = ssub.s32 %s16, %s28
    %p30 = scmp.eq.s32.totalorder %s29, 0
    %s32 = sadd.s32 %s31, 1
    %s33 = scalar_select %p30, %s31, %s32
    %p36 = pneg %p30
    %p37 = scmp.eq.s32.totalorder %s9, 1
    %p38 = por %p36, %p37
    %p39 = scmp.ne.s32.totalorder %s31, %s34
    %p40 = scmp.eq.s32.totalorder %s9, 0
    %p41 = por %p39, %p40
    %p42 = scmp.ne.s32.totalorder %s31, %s34
    %p43 = scmp.eq.s32.totalorder %s14, 1
    %p44 = por %p42, %p43
    %p45 = scmp.ne.s32.totalorder %s34, %s35
    %p46 = scmp.eq.s32.totalorder %s14, 0
    %p47 = por %p45, %p46
    %p48 = scmp.ne.s32.totalorder %s34, %s35
    %p49 = scmp.eq.s32.totalorder %s15, 1
    %p50 = por %p48, %p49
    %p52 = scmp.ne.s32.totalorder %s35, %s51
    %p53 = scmp.eq.s32.totalorder %s15, 0
    %p54 = por %p52, %p53
    %s55 = ssub.s32 %s17, %s24
    %p56 = scmp.eq.s32.totalorder %s55, 0
    %s58 = sadd.s32 %s57, 1
    %s59 = scalar_select %p56, %s57, %s58
    %p62 = pneg %p56
    %p63 = scmp.eq.s32.totalorder %s9, 1
    %p64 = por %p62, %p63
    %p65 = scmp.ne.s32.totalorder %s57, %s60
    %p66 = scmp.eq.s32.totalorder %s9, 0
    %p67 = por %p65, %p66
    %p68 = scmp.ne.s32.totalorder %s57, %s60
    %p69 = scmp.eq.s32.totalorder %s14, 1
    %p70 = por %p68, %p69
    %p71 = scmp.ne.s32.totalorder %s60, %s61
    %p72 = scmp.eq.s32.totalorder %s14, 0
    %p73 = por %p71, %p72
    %p74 = scmp.ne.s32.totalorder %s60, %s61
    %p75 = scmp.eq.s32.totalorder %s15, 1
    %p76 = por %p74, %p75
    %p78 = scmp.ne.s32.totalorder %s61, %s77
    %p79 = scmp.eq.s32.totalorder %s15, 0
    %p80 = por %p78, %p79
    %s81 = ssub.s32 %s17, %s24
    %p82 = scmp.eq.s32.totalorder %s81, 0
    %s84 = sadd.s32 %s83, 1
    %s85 = scalar_select %p82, %s83, %s84
    %p88 = pneg %p82
    %p89 = scmp.eq.s32.totalorder %s9, 1
    %p90 = por %p88, %p89
    %p91 = scmp.ne.s32.totalorder %s83, %s86
    %p92 = scmp.eq.s32.totalorder %s9, 0
    %p93 = por %p91, %p92
    %p94 = scmp.ne.s32.totalorder %s83, %s86
    %p95 = scmp.eq.s32.totalorder %s14, 1
    %p96 = por %p94, %p95
    %p97 = scmp.ne.s32.totalorder %s86, %s87
    %p98 = scmp.eq.s32.totalorder %s14, 0
    %p99 = por %p97, %p98
    %p100 = scmp.ne.s32.totalorder %s86, %s87
    %p101 = scmp.eq.s32.totalorder %s15, 1
    %p102 = por %p100, %p101
    %p104 = scmp.ne.s32.totalorder %s87, %s103
    %p105 = scmp.eq.s32.totalorder %s15, 0
    %p106 = por %p104, %p105
    %s107 = ssub.s32 %s16, %s28
    %s108 = ssub.s32 %s17, %s24
    %s109 = sor.u32 %s107, %s108
    %p110 = scmp.eq.s32.totalorder %s109, 0
    %s112 = sadd.s32 %s111, 1
    %s113 = scalar_select %p110, %s111, %s112
    %p116 = pneg %p110
    %p117 = scmp.eq.s32.totalorder %s9, 1
    %p118 = por %p116, %p117
    %p119 = scmp.ne.s32.totalorder %s111, %s114
    %p120 = scmp.eq.s32.totalorder %s9, 0
    %p121 = por %p119, %p120
    %p122 = scmp.ne.s32.totalorder %s111, %s114
    %p123 = scmp.eq.s32.totalorder %s14, 1
    %p124 = por %p122, %p123
    %p125 = scmp.ne.s32.totalorder %s114, %s115
    %p126 = scmp.eq.s32.totalorder %s14, 0
    %p127 = por %p125, %p126
    %p128 = scmp.ne.s32.totalorder %s114, %s115
    %p129 = scmp.eq.s32.totalorder %s15, 1
    %p130 = por %p128, %p129
    %p132 = scmp.ne.s32.totalorder %s115, %s131
    %p133 = scmp.eq.s32.totalorder %s15, 0
    %p134 = por %p132, %p133
    %p135 = scmp.le.s32.totalorder 1, %s9
    %p136 = scmp.lt.s32.totalorder %s9, 3
    %p137 = pnand %p135, %p136
    %p138 = pneg %p137
    // Predicated region
    $region9: #{backboned_forward.3} parent=5 // pred_check
      _
    $region10: #{backboned_forward.3} parent=5 // pred_check_branch
      %140 = sbr.rel (%p137) target = $region12
    $region11: #{backboned_forward.3} parent=5 // pred_region
      %s141 = ssub.s32 %s9, 1
      // Predicated region
      $region13: #{backboned_forward.3} parent=11 // pred_check
        %p142 = pneg %p73
      $region14: #{backboned_forward.3} parent=11 // pred_check_branch
        %144 = sbr.rel (%p142) target = $region16
      $region15: #{backboned_forward.3} parent=11 // pred_region
        %p145 = scmp.lt.s32.totalorder %s19, 0
        %s146 = scalar_select %p145, %s19, 0
        %s147 = smul.addr %s146, 4
        %s148 = scalar_lea.vmem %s1, %s147
      $region16: #{backboned_forward.3} parent=11 // pred_fallthru
        _
      // Predicated region
      $region17: #{backboned_forward.3} parent=11 // pred_check
        %p149 = pneg %p99
      $region18: #{backboned_forward.3} parent=11 // pred_check_branch
        %151 = sbr.rel (%p149) target = $region20
      $region19: #{backboned_forward.3} parent=11 // pred_region
        %p152 = scmp.lt.s32.totalorder %s19, 0
        %s153 = scalar_select %p152, %s19, 0
        %s154 = scalar_lea.vmem %s2, %s153
      $region20: #{backboned_forward.3} parent=11 // pred_fallthru
        _
    $region12: #{backboned_forward.3} parent=5 // pred_fallthru
      _
    %p155 = scmp.lt.s32.totalorder %s9, 2
    // Predicated region
    $region21: #{backboned_forward.3} parent=5 // pred_check
      %p156 = pneg %p155
    $region22: #{backboned_forward.3} parent=5 // pred_check_branch
      %158 = sbr.rel (%p156) target = $region24
    $region23: #{backboned_forward.3} parent=5 // pred_region
      // Predicated region
      $region25: #{backboned_forward.3} parent=23 // pred_check
        %p159 = pneg %p41
      $region26: #{backboned_forward.3} parent=23 // pred_check_branch
        %161 = sbr.rel (%p159) target = $region28
      $region27: #{backboned_forward.3} parent=23 // pred_region
        %p162 = scmp.lt.s32.totalorder %s16, 1
        %s163 = scalar_select %p162, %s16, 1
        %s164 = smul.addr %s163, 52
        %s165 = smul.addr %s164, 4
        %s166 = scalar_lea.vmem %s0, %s165
      $region28: #{backboned_forward.3} parent=23 // pred_fallthru
        _
    $region24: #{backboned_forward.3} parent=5 // pred_fallthru
      _
    %p167 = scmp.le.s32.totalorder 1, %s9
    %p168 = scmp.lt.s32.totalorder %s9, 3
    %p169 = pnand %p167, %p168
    %p170 = pneg %p169
    // Predicated region
    $region29: #{backboned_forward.3} parent=5 // pred_check
      _
    $region30: #{backboned_forward.3} parent=5 // pred_check_branch
      %172 = sbr.rel (%p169) target = $region32
    $region31: #{backboned_forward.3} parent=5 // pred_region
      %s173 = ssub.s32 %s9, 1
      %p174 = scmp.lt.s32.totalorder %s18, 1
      %s175 = scalar_select %p174, %s18, 1
      %s176 = smul.addr %s175, 52
      %s177 = smul.addr %s176, 4
      %s178 = scalar_lea.vmem %s0, %s177
      %p179 = pneg %p47
      %p180 = pneg %p44
      %p181 = scmp.lt.s32.totalorder %s19, 0
      %s182 = scalar_select %p181, %s19, 0
      %s183 = smul.addr %s182, 4
      %s184 = scalar_lea.vmem %s1, %s183
      %p185 = pneg %p73
      %p186 = pneg %p70
      %p187 = scmp.lt.s32.totalorder %s19, 0
      %s188 = scalar_select %p187, %s19, 0
      %s189 = scalar_lea.vmem %s2, %s188
      %p190 = pneg %p99
      %p191 = pneg %p96
      %p192 = pneg %p127
      %p193 = pneg %p124
      %p194 = scmp.lt.s32.totalorder %s18, 1
      %s195 = scalar_select %p194, %s18, 1
      %p196 = scmp.lt.s32.totalorder %s19, 0
      %s197 = scalar_select %p196, %s19, 0
      %s198 = smul.addr %s195, 11
      %s199 = sadd.s32 %s197, %s198
      %s200 = smul.addr %s199, 4
      %s201 = scalar_lea.vmem %s3, %s200
      %p202 = scmp.lt.s32.totalorder %s18, 1
      %s203 = scalar_select %p202, %s18, 1
      %s204 = smul.addr %s203, 52
      %s205 = smul.addr %s204, 4
      %s206 = scalar_lea.vmem %s0, %s205
      %p207 = scmp.lt.s32.totalorder %s19, 0
      %s208 = scalar_select %p207, %s19, 0
      %s209 = smul.addr %s208, 4
      %s210 = scalar_lea.vmem %s1, %s209
      %p211 = scmp.lt.s32.totalorder %s19, 0
      %s212 = scalar_select %p211, %s19, 0
      %s213 = scalar_lea.vmem %s2, %s212
      %p214 = scmp.lt.s32.totalorder %s18, 1
      %s215 = scalar_select %p214, %s18, 1
      %p216 = scmp.lt.s32.totalorder %s19, 0
      %s217 = scalar_select %p216, %s19, 0
      %s218 = smul.addr %s215, 11
      %s219 = sadd.s32 %s217, %s218
      %s220 = smul.addr %s219, 4
      %s221 = scalar_lea.vmem %s3, %s220
      %v223 = vld [vmem:[%s206] sm:$0xf]
      %v224 = vld [vmem:[%s206 + $0x4] sm:$0xf]
      %v225 = vld [vmem:[%s206 + $0x8] sm:$0xf]
      %v226 = vld [vmem:[%s206 + $0xc] sm:$0xf]
      %v227 = vld [vmem:[%s206 + $0x10] sm:$0xf]
      %v228 = vld [vmem:[%s206 + $0x14] sm:$0xf]
      %v229 = vld [vmem:[%s206 + $0x18] sm:$0xf]
      %v230 = vld [vmem:[%s206 + $0x1c] sm:$0xf]
      %v231 = vld [vmem:[%s206 + $0x20] sm:$0xf]
      %v232 = vld [vmem:[%s206 + $0x24] sm:$0xf]
      %v233 = vld [vmem:[%s206 + $0x28] sm:$0xf]
      %v234 = vld [vmem:[%s210] sm:$0xf]
      %v235 = vld [vmem:[%s210 + $0x4] sm:$0xf]
      %v236 = vld [vmem:[%s210 + $0x8] sm:$0xf]
      %v237 = vld [vmem:[%s210 + $0xc] sm:$0xf]
      %v238 = vld [vmem:[%s210 + $0x10] sm:$0xf]
      %v239 = vld [vmem:[%s210 + $0x14] sm:$0xf]
      %v240 = vld [vmem:[%s210 + $0x18] sm:$0xf]
      %v241 = vld [vmem:[%s210 + $0x1c] sm:$0xf]
      %v242 = vld [vmem:[%s210 + $0x20] sm:$0xf]
      %v243 = vld [vmem:[%s210 + $0x24] sm:$0xf]
      %v244 = vld [vmem:[%s210 + $0x28] sm:$0xf]
      %v245 = vld [vmem:[%s210 + $0x2c] sm:$0xf]
      %v246 = vld [vmem:[%s210 + $0x30] sm:$0xf]
      %v247 = vld [vmem:[%s210 + $0x34] sm:$0xf]
      %v248 = vld [vmem:[%s210 + $0x38] sm:$0xf]
      %v249 = vld [vmem:[%s210 + $0x3c] sm:$0xf]
      %s250 = scalar_lea.vmem %s206, 52
      %v251 = vld [vmem:[%s250] sm:$0xf]
      %v252 = vld [vmem:[%s250 + $0x4] sm:$0xf]
      %v253 = vld [vmem:[%s250 + $0x8] sm:$0xf]
      %v254 = vld [vmem:[%s250 + $0xc] sm:$0xf]
      %v255 = vld [vmem:[%s250 + $0x10] sm:$0xf]
      %v256 = vld [vmem:[%s250 + $0x14] sm:$0xf]
      %v257 = vld [vmem:[%s250 + $0x18] sm:$0xf]
      %v258 = vld [vmem:[%s250 + $0x1c] sm:$0xf]
      %v259 = vld [vmem:[%s250 + $0x20] sm:$0xf]
      %v260 = vld [vmem:[%s250 + $0x24] sm:$0xf]
      %v261 = vld [vmem:[%s250 + $0x28] sm:$0xf]
      %s262 = scalar_lea.vmem %s210, 64
      %v263 = vld [vmem:[%s262] sm:$0xf]
      %v264 = vld [vmem:[%s262 + $0x4] sm:$0xf]
      %v265 = vld [vmem:[%s262 + $0x8] sm:$0xf]
      %v266 = vld [vmem:[%s262 + $0xc] sm:$0xf]
      %v267 = vld [vmem:[%s262 + $0x10] sm:$0xf]
      %v268 = vld [vmem:[%s262 + $0x14] sm:$0xf]
      %v269 = vld [vmem:[%s262 + $0x18] sm:$0xf]
      %v270 = vld [vmem:[%s262 + $0x1c] sm:$0xf]
      %v271 = vld [vmem:[%s262 + $0x20] sm:$0xf]
      %v272 = vld [vmem:[%s262 + $0x24] sm:$0xf]
      %v273 = vld [vmem:[%s262 + $0x28] sm:$0xf]
      %v274 = vld [vmem:[%s262 + $0x2c] sm:$0xf]
      %v275 = vld [vmem:[%s262 + $0x30] sm:$0xf]
      %v276 = vld [vmem:[%s262 + $0x34] sm:$0xf]
      %v277 = vld [vmem:[%s262 + $0x38] sm:$0xf]
      %v278 = vld [vmem:[%s262 + $0x3c] sm:$0xf]
      %v290 = vunpack.c.l.b16 %v251
      %v291 = vunpack.c.l.b16 %v252
      %v292 = vunpack.c.l.b16 %v253
      %v293 = vunpack.c.l.b16 %v254
      %v294 = vunpack.c.l.b16 %v255
      %v295 = vunpack.c.l.b16 %v256
      %v296 = vunpack.c.l.b16 %v257
      %v297 = vunpack.c.l.b16 %v258
      %v298 = vunpack.c.l.b16 %v259
      %v299 = vunpack.c.l.b16 %v260
      %v300 = vunpack.c.l.b16 %v261
      %v301 = vpack.c.b16 %v291, %v290
      %v302 = vpack.c.b16 %v293, %v292
      %v303 = vpack.c.b16 %v295, %v294
      %v304 = vpack.c.b16 %v297, %v296
      %v305 = vpack.c.b16 %v299, %v298
      %v306 = vpack.c.b16 %v300, %v300
      %v329 = vunpack.c.l.b16 %v263
      %v330 = vunpack.c.l.b16 %v264
      %v331 = vunpack.c.l.b16 %v265
      %v332 = vunpack.c.l.b16 %v266
      %v333 = vunpack.c.l.b16 %v267
      %v334 = vunpack.c.l.b16 %v268
      %v335 = vunpack.c.l.b16 %v269
      %v336 = vunpack.c.l.b16 %v270
      %v337 = vunpack.c.l.b16 %v271
      %v338 = vunpack.c.l.b16 %v272
      %v339 = vunpack.c.l.b16 %v273
      %v340 = vunpack.c.l.b16 %v274
      %v341 = vunpack.c.l.b16 %v275
      %v342 = vunpack.c.l.b16 %v276
      %v343 = vunpack.c.l.b16 %v277
      %v344 = vunpack.c.l.b16 %v278
      %v345 = vpack.c.b16 %v330, %v329
      %v346 = vpack.c.b16 %v332, %v331
      %v347 = vpack.c.b16 %v334, %v333
      %v348 = vpack.c.b16 %v336, %v335
      %v349 = vpack.c.b16 %v338, %v337
      %v350 = vpack.c.b16 %v340, %v339
      %v351 = vpack.c.b16 %v342, %v341
      %v352 = vpack.c.b16 %v344, %v343
      %361 = vmatprep.subr.bf16.mxu0 0
      %362 = vmatpush1.bf16.msra.mxu0 %v345
      %363 = vmatprep.subr.bf16.mxu0 0
      %364 = vmatpush1.bf16.msra.mxu0 %v346
      %365 = vmatprep.subr.bf16.mxu0 0
      %366 = vmatpush1.bf16.msra.mxu0 %v347
      %367 = vmatprep.subr.bf16.mxu0 0
      %368 = vmatpush1.bf16.msra.mxu0 %v348
      %369 = vmatprep.subr.bf16.mxu0 0
      %370 = vmatpush1.bf16.msra.mxu0 %v349
      %371 = vmatprep.subr.bf16.mxu0 0
      %372 = vmatpush1.bf16.msra.mxu0 %v350
      %373 = vmatprep.subr.bf16.mxu0 0
      %374 = vmatpush1.bf16.msra.mxu0 %v351
      %375 = vmatprep.subr.bf16.mxu0 0
      %376 = vmatpush1.bf16.msra.mxu0 %v352
      %377 = vmatprep.subr.bf16.mxu0 0
      %378 = vmatpush1.bf16.msra.mxu0 0
      %379 = vmatprep.subr.bf16.mxu0 0
      %380 = vmatpush1.bf16.msra.mxu0 0
      %381 = vmatprep.subr.bf16.mxu0 0
      %382 = vmatpush1.bf16.msra.mxu0 0
      %383 = vmatprep.subr.bf16.mxu0 0
      %384 = vmatpush1.bf16.msra.mxu0 0
      %385 = vmatprep.subr.bf16.mxu0 0
      %386 = vmatpush1.bf16.msra.mxu0 0
      %387 = vmatprep.subr.bf16.mxu0 0
      %388 = vmatpush1.bf16.msra.mxu0 0
      %389 = vmatprep.subr.bf16.mxu0 0
      %390 = vmatpush1.bf16.msra.mxu0 0
      %391 = vmatprep.subr.bf16.mxu0 0
      %392 = vmatpush1.bf16.msra.mxu0 0
      %393 = vmatprep.mubr.bf16.mxu0 0
      %394 = vmatmul.mubr.bf16.gmra.mrb[0].mxu0 %v301
      %v395 = vpop.f32.mrb[0].mxu0
      %v396 = vadd.f32 0.0, %v395
      %v397 = vpop.f32.mrb[0].mxu0
      %v398 = vpop.f32.mrb[0].mxu0
      %v399 = vadd.f32 0.0, %v398
      %v400 = vpop.f32.mrb[0].mxu0
      %401 = vmatprep.mubr.bf16.mxu0 0
      %402 = vmatmul.mubr.bf16.gmra.mrb[0].mxu0 %v302
      %v403 = vpop.f32.mrb[0].mxu0
      %v404 = vadd.f32 0.0, %v403
      %v405 = vpop.f32.mrb[0].mxu0
      %v406 = vpop.f32.mrb[0].mxu0
      %v407 = vadd.f32 0.0, %v406
      %v408 = vpop.f32.mrb[0].mxu0
      %409 = vmatprep.mubr.bf16.mxu0 0
      %410 = vmatmul.mubr.bf16.gmra.mrb[0].mxu0 %v303
      %v411 = vpop.f32.mrb[0].mxu0
      %v412 = vadd.f32 0.0, %v411
      %v413 = vpop.f32.mrb[0].mxu0
      %v414 = vpop.f32.mrb[0].mxu0
      %v415 = vadd.f32 0.0, %v414
      %v416 = vpop.f32.mrb[0].mxu0
      %417 = vmatprep.mubr.bf16.mxu0 0
      %418 = vmatmul.mubr.bf16.gmra.mrb[0].mxu0 %v304
      %v419 = vpop.f32.mrb[0].mxu0
      %v420 = vadd.f32 0.0, %v419
      %v421 = vpop.f32.mrb[0].mxu0
      %v422 = vpop.f32.mrb[0].mxu0
      %v423 = vadd.f32 0.0, %v422
      %v424 = vpop.f32.mrb[0].mxu0
      %425 = vmatprep.mubr.bf16.mxu0 0
      %426 = vmatmul.mubr.bf16.gmra.mrb[0].mxu0 %v305
      %v427 = vpop.f32.mrb[0].mxu0
      %v428 = vadd.f32 0.0, %v427
      %v429 = vpop.f32.mrb[0].mxu0
      %v430 = vpop.f32.mrb[0].mxu0
      %v431 = vadd.f32 0.0, %v430
      %v432 = vpop.f32.mrb[0].mxu0
      %433 = vmatprep.mubr.bf16.mxu0 0
      %434 = vmatmul.mubr.bf16.gmra.mrb[0].mxu0 %v306
      %v435 = vpop.f32.mrb[0].mxu0
      %v436 = vadd.f32 0.0, %v435
      %v437 = vpop.f32.mrb[0].mxu0
      %v438 = vpop.f32.mrb[0].mxu0
      %v439 = vpop.f32.mrb[0].mxu0
      %440 = vdwg.mxu0
      %v452 = vunpack.c.l.b16 %v223
      %v453 = vunpack.c.l.b16 %v224
      %v454 = vunpack.c.l.b16 %v225
      %v455 = vunpack.c.l.b16 %v226
      %v456 = vunpack.c.l.b16 %v227
      %v457 = vunpack.c.l.b16 %v228
      %v458 = vunpack.c.l.b16 %v229
      %v459 = vunpack.c.l.b16 %v230
      %v460 = vunpack.c.l.b16 %v231
      %v461 = vunpack.c.l.b16 %v232
      %v462 = vunpack.c.l.b16 %v233
      %v463 = vpack.c.b16 %v453, %v452
      %v464 = vpack.c.b16 %v455, %v454
      %v465 = vpack.c.b16 %v457, %v456
      %v466 = vpack.c.b16 %v459, %v458
      %v467 = vpack.c.b16 %v461, %v460
      %v468 = vpack.c.b16 %v462, %v462
      %v491 = vunpack.c.l.b16 %v234
      %v492 = vunpack.c.l.b16 %v235
      %v493 = vunpack.c.l.b16 %v236
      %v494 = vunpack.c.l.b16 %v237
      %v495 = vunpack.c.l.b16 %v238
      %v496 = vunpack.c.l.b16 %v239
      %v497 = vunpack.c.l.b16 %v240
      %v498 = vunpack.c.l.b16 %v241
      %v499 = vunpack.c.l.b16 %v242
      %v500 = vunpack.c.l.b16 %v243
      %v501 = vunpack.c.l.b16 %v244
      %v502 = vunpack.c.l.b16 %v245
      %v503 = vunpack.c.l.b16 %v246
      %v504 = vunpack.c.l.b16 %v247
      %v505 = vunpack.c.l.b16 %v248
      %v506 = vunpack.c.l.b16 %v249
      %v507 = vpack.c.b16 %v492, %v491
      %v508 = vpack.c.b16 %v494, %v493
      %v509 = vpack.c.b16 %v496, %v495
      %v510 = vpack.c.b16 %v498, %v497
      %v511 = vpack.c.b16 %v500, %v499
      %v512 = vpack.c.b16 %v502, %v501
      %v513 = vpack.c.b16 %v504, %v503
      %v514 = vpack.c.b16 %v506, %v505
      %523 = vmatprep.subr.bf16.mxu0 0
      %524 = vmatpush1.bf16.msra.mxu0 %v507
      %525 = vmatprep.subr.bf16.mxu0 0
      %526 = vmatpush1.bf16.msra.mxu0 %v508
      %527 = vmatprep.subr.bf16.mxu0 0
      %528 = vmatpush1.bf16.msra.mxu0 %v509
      %529 = vmatprep.subr.bf16.mxu0 0
      %530 = vmatpush1.bf16.msra.mxu0 %v510
      %531 = vmatprep.subr.bf16.mxu0 0
      %532 = vmatpush1.bf16.msra.mxu0 %v511
      %533 = vmatprep.subr.bf16.mxu0 0
      %534 = vmatpush1.bf16.msra.mxu0 %v512
      %535 = vmatprep.subr.bf16.mxu0 0
      %536 = vmatpush1.bf16.msra.mxu0 %v513
      %537 = vmatprep.subr.bf16.mxu0 0
      %538 = vmatpush1.bf16.msra.mxu0 %v514
      %539 = vmatprep.subr.bf16.mxu0 0
      %540 = vmatpush1.bf16.msra.mxu0 0
      %541 = vmatprep.subr.bf16.mxu0 0
      %542 = vmatpush1.bf16.msra.mxu0 0
      %543 = vmatprep.subr.bf16.mxu0 0
      %544 = vmatpush1.bf16.msra.mxu0 0
      %545 = vmatprep.subr.bf16.mxu0 0
      %546 = vmatpush1.bf16.msra.mxu0 0
      %547 = vmatprep.subr.bf16.mxu0 0
      %548 = vmatpush1.bf16.msra.mxu0 0
      %549 = vmatprep.subr.bf16.mxu0 0
      %550 = vmatpush1.bf16.msra.mxu0 0
      %551 = vmatprep.subr.bf16.mxu0 0
      %552 = vmatpush1.bf16.msra.mxu0 0
      %553 = vmatprep.subr.bf16.mxu0 0
      %554 = vmatpush1.bf16.msra.mxu0 0
      %555 = vmatprep.mubr.bf16.mxu0 0
      %556 = vmatmul.mubr.bf16.gmra.mrb[0].mxu0 %v463
      %v557 = vpop.f32.mrb[0].mxu0
      %v558 = vadd.f32 %v396, %v557
      %v559 = vpop.f32.mrb[0].mxu0
      %v560 = vpop.f32.mrb[0].mxu0
      %v561 = vadd.f32 %v399, %v560
      %v562 = vpop.f32.mrb[0].mxu0
      %563 = vmatprep.mubr.bf16.mxu0 0
      %564 = vmatmul.mubr.bf16.gmra.mrb[0].mxu0 %v464
      %v565 = vpop.f32.mrb[0].mxu0
      %v566 = vadd.f32 %v404, %v565
      %v567 = vpop.f32.mrb[0].mxu0
      %v568 = vpop.f32.mrb[0].mxu0
      %v569 = vadd.f32 %v407, %v568
      %v570 = vpop.f32.mrb[0].mxu0
      %571 = vmatprep.mubr.bf16.mxu0 0
      %572 = vmatmul.mubr.bf16.gmra.mrb[0].mxu0 %v465
      %v573 = vpop.f32.mrb[0].mxu0
      %v574 = vadd.f32 %v412, %v573
      %v575 = vpop.f32.mrb[0].mxu0
      %v576 = vpop.f32.mrb[0].mxu0
      %v577 = vadd.f32 %v415, %v576
      %v578 = vpop.f32.mrb[0].mxu0
      %579 = vmatprep.mubr.bf16.mxu0 0
      %580 = vmatmul.mubr.bf16.gmra.mrb[0].mxu0 %v466
      %v581 = vpop.f32.mrb[0].mxu0
      %v582 = vadd.f32 %v420, %v581
      %v583 = vpop.f32.mrb[0].mxu0
      %v584 = vpop.f32.mrb[0].mxu0
      %v585 = vadd.f32 %v423, %v584
      %v586 = vpop.f32.mrb[0].mxu0
      %587 = vmatprep.mubr.bf16.mxu0 0
      %588 = vmatmul.mubr.bf16.gmra.mrb[0].mxu0 %v467
      %v589 = vpop.f32.mrb[0].mxu0
      %v590 = vadd.f32 %v428, %v589
      %v591 = vpop.f32.mrb[0].mxu0
      %v592 = vpop.f32.mrb[0].mxu0
      %v593 = vadd.f32 %v431, %v592
      %v594 = vpop.f32.mrb[0].mxu0
      %595 = vmatprep.mubr.bf16.mxu0 0
      %596 = vmatmul.mubr.bf16.gmra.mrb[0].mxu0 %v468
      %v597 = vpop.f32.mrb[0].mxu0
      %v598 = vadd.f32 %v436, %v597
      %v599 = vpop.f32.mrb[0].mxu0
      %v600 = vpop.f32.mrb[0].mxu0
      %v601 = vpop.f32.mrb[0].mxu0
      %602 = vdwg.mxu0
      %v603 = vld [vmem:[%s206] sm:$0xf]
      %v604 = vld [vmem:[%s206 + $0x4] sm:$0xf]
      %v605 = vld [vmem:[%s206 + $0x8] sm:$0xf]
      %v606 = vld [vmem:[%s206 + $0xc] sm:$0xf]
      %v607 = vld [vmem:[%s206 + $0x10] sm:$0xf]
      %v608 = vld [vmem:[%s206 + $0x14] sm:$0xf]
      %v609 = vld [vmem:[%s206 + $0x18] sm:$0xf]
      %v610 = vld [vmem:[%s206 + $0x1c] sm:$0xf]
      %v611 = vld [vmem:[%s206 + $0x20] sm:$0xf]
      %v612 = vld [vmem:[%s206 + $0x24] sm:$0xf]
      %v613 = vld [vmem:[%s206 + $0x28] sm:$0xf]
      %v614 = vld [vmem:[%s206 + $0x2c] sm:$0x1]
      %s615 = scalar_lea.vmem %s210, 128
      %v616 = vld [vmem:[%s615] sm:$0xf]
      %v617 = vld [vmem:[%s615 + $0x4] sm:$0xf]
      %v618 = vld [vmem:[%s615 + $0x8] sm:$0xf]
      %v619 = vld [vmem:[%s615 + $0xc] sm:$0xf]
      %v620 = vld [vmem:[%s615 + $0x10] sm:$0xf]
      %v621 = vld [vmem:[%s615 + $0x14] sm:$0xf]
      %v622 = vld [vmem:[%s615 + $0x18] sm:$0xf]
      %v623 = vld [vmem:[%s615 + $0x1c] sm:$0xf]
      %v624 = vld [vmem:[%s615 + $0x20] sm:$0xf]
      %v625 = vld [vmem:[%s615 + $0x24] sm:$0xf]
      %v626 = vld [vmem:[%s615 + $0x28] sm:$0xf]
      %v627 = vld [vmem:[%s615 + $0x2c] sm:$0xf]
      %v628 = vld [vmem:[%s615 + $0x30] sm:$0xf]
      %v629 = vld [vmem:[%s615 + $0x34] sm:$0xf]
      %v630 = vld [vmem:[%s615 + $0x38] sm:$0xf]
      %v631 = vld [vmem:[%s615 + $0x3c] sm:$0xf]
      %v644 = vunpack.c.l.b16 %v603
      %v645 = vunpack.c.l.b16 %v604
      %v646 = vunpack.c.l.b16 %v605
      %v647 = vunpack.c.l.b16 %v606
      %v648 = vunpack.c.l.b16 %v607
      %v649 = vunpack.c.l.b16 %v608
      %v650 = vunpack.c.l.b16 %v609
      %v651 = vunpack.c.l.b16 %v610
      %v652 = vunpack.c.l.b16 %v611
      %v653 = vunpack.c.l.b16 %v612
      %v654 = vunpack.c.l.b16 %v613
      %v655 = vunpack.c.l.b16 %v614
      %v656 = vpack.c.b16 %v645, %v644
      %v657 = vpack.c.b16 %v647, %v646
      %v658 = vpack.c.b16 %v649, %v648
      %v659 = vpack.c.b16 %v651, %v650
      %v660 = vpack.c.b16 %v653, %v652
      %v661 = vpack.c.b16 %v655, %v654
      %vm662 = vsmask.f32 7424
      %v664 = vshrl.u32 %v656, 16
      %v666 = vshll.u32 %v656, 16
      %v668 = vrot.slane %v666, 1
      %v669 = vor.u32 %v664, %v668
      %v671 = vshll.u32 %v657, 16
      %v673 = vrot.slane %v671, 1
      %v674 = vsel %vm662, %v669, %v673
      %v675 = vshrl.u32 %v657, 16
      %v677 = vor.u32 %v675, %v673
      %v679 = vshll.u32 %v658, 16
      %v681 = vrot.slane %v679, 1
      %v682 = vsel %vm662, %v677, %v681
      %v683 = vshrl.u32 %v658, 16
      %v685 = vor.u32 %v683, %v681
      %v687 = vshll.u32 %v659, 16
      %v689 = vrot.slane %v687, 1
      %v690 = vsel %vm662, %v685, %v689
      %v691 = vshrl.u32 %v659, 16
      %v693 = vor.u32 %v691, %v689
      %v695 = vshll.u32 %v660, 16
      %v697 = vrot.slane %v695, 1
      %v698 = vsel %vm662, %v693, %v697
      %v699 = vshrl.u32 %v660, 16
      %v701 = vor.u32 %v699, %v697
      %v703 = vshll.u32 %v661, 16
      %v705 = vrot.slane %v703, 1
      %v706 = vsel %vm662, %v701, %v705
      %v707 = vshrl.u32 %v661, 16
      %v709 = vor.u32 %v707, %v705
      %v732 = vunpack.c.l.b16 %v616
      %v733 = vunpack.c.l.b16 %v617
      %v734 = vunpack.c.l.b16 %v618
      %v735 = vunpack.c.l.b16 %v619
      %v736 = vunpack.c.l.b16 %v620
      %v737 = vunpack.c.l.b16 %v621
      %v738 = vunpack.c.l.b16 %v622
      %v739 = vunpack.c.l.b16 %v623
      %v740 = vunpack.c.l.b16 %v624
      %v741 = vunpack.c.l.b16 %v625
      %v742 = vunpack.c.l.b16 %v626
      %v743 = vunpack.c.l.b16 %v627
      %v744 = vunpack.c.l.b16 %v628
      %v745 = vunpack.c.l.b16 %v629
      %v746 = vunpack.c.l.b16 %v630
      %v747 = vunpack.c.l.b16 %v631
      %v748 = vpack.c.b16 %v733, %v732
      %v749 = vpack.c.b16 %v735, %v734
      %v750 = vpack.c.b16 %v737, %v736
      %v751 = vpack.c.b16 %v739, %v738
      %v752 = vpack.c.b16 %v741, %v740
      %v753 = vpack.c.b16 %v743, %v742
      %v754 = vpack.c.b16 %v745, %v744
      %v755 = vpack.c.b16 %v747, %v746
      %764 = vmatprep.subr.bf16.mxu0 0
      %765 = vmatpush1.bf16.msra.mxu0 %v748
      %766 = vmatprep.subr.bf16.mxu0 0
      %767 = vmatpush1.bf16.msra.mxu0 %v749
      %768 = vmatprep.subr.bf16.mxu0 0
      %769 = vmatpush1.bf16.msra.mxu0 %v750
      %770 = vmatprep.subr.bf16.mxu0 0
      %771 = vmatpush1.bf16.msra.mxu0 %v751
      %772 = vmatprep.subr.bf16.mxu0 0
      %773 = vmatpush1.bf16.msra.mxu0 %v752
      %774 = vmatprep.subr.bf16.mxu0 0
      %775 = vmatpush1.bf16.msra.mxu0 %v753
      %776 = vmatprep.subr.bf16.mxu0 0
      %777 = vmatpush1.bf16.msra.mxu0 %v754
      %778 = vmatprep.subr.bf16.mxu0 0
      %779 = vmatpush1.bf16.msra.mxu0 %v755
      %780 = vmatprep.subr.bf16.mxu0 0
      %781 = vmatpush1.bf16.msra.mxu0 0
      %782 = vmatprep.subr.bf16.mxu0 0
      %783 = vmatpush1.bf16.msra.mxu0 0
      %784 = vmatprep.subr.bf16.mxu0 0
      %785 = vmatpush1.bf16.msra.mxu0 0
      %786 = vmatprep.subr.bf16.mxu0 0
      %787 = vmatpush1.bf16.msra.mxu0 0
      %788 = vmatprep.subr.bf16.mxu0 0
      %789 = vmatpush1.bf16.msra.mxu0 0
      %790 = vmatprep.subr.bf16.mxu0 0
      %791 = vmatpush1.bf16.msra.mxu0 0
      %792 = vmatprep.subr.bf16.mxu0 0
      %793 = vmatpush1.bf16.msra.mxu0 0
      %794 = vmatprep.subr.bf16.mxu0 0
      %795 = vmatpush1.bf16.msra.mxu0 0
      %796 = vmatprep.mubr.bf16.mxu0 0
      %797 = vmatmul.mubr.bf16.gmra.mrb[0].mxu0 %v674
      %v798 = vpop.f32.mrb[0].mxu0
      %v799 = vadd.f32 0.0, %v798
      %v800 = vpop.f32.mrb[0].mxu0
      %v801 = vpop.f32.mrb[0].mxu0
      %v802 = vadd.f32 0.0, %v801
      %v803 = vpop.f32.mrb[0].mxu0
      %804 = vmatprep.mubr.bf16.mxu0 0
      %805 = vmatmul.mubr.bf16.gmra.mrb[0].mxu0 %v682
      %v806 = vpop.f32.mrb[0].mxu0
      %v807 = vadd.f32 0.0, %v806
      %v808 = vpop.f32.mrb[0].mxu0
      %v809 = vpop.f32.mrb[0].mxu0
      %v810 = vadd.f32 0.0, %v809
      %v811 = vpop.f32.mrb[0].mxu0
      %812 = vmatprep.mubr.bf16.mxu0 0
      %813 = vmatmul.mubr.bf16.gmra.mrb[0].mxu0 %v690
      %v814 = vpop.f32.mrb[0].mxu0
      %v815 = vadd.f32 0.0, %v814
      %v816 = vpop.f32.mrb[0].mxu0
      %v817 = vpop.f32.mrb[0].mxu0
      %v818 = vadd.f32 0.0, %v817
      %v819 = vpop.f32.mrb[0].mxu0
      %820 = vmatprep.mubr.bf16.mxu0 0
      %821 = vmatmul.mubr.bf16.gmra.mrb[0].mxu0 %v698
      %v822 = vpop.f32.mrb[0].mxu0
      %v823 = vadd.f32 0.0, %v822
      %v824 = vpop.f32.mrb[0].mxu0
      %v825 = vpop.f32.mrb[0].mxu0
      %v826 = vadd.f32 0.0, %v825
      %v827 = vpop.f32.mrb[0].mxu0
      %828 = vmatprep.mubr.bf16.mxu0 0
      %829 = vmatmul.mubr.bf16.gmra.mrb[0].mxu0 %v706
      %v830 = vpop.f32.mrb[0].mxu0
      %v831 = vadd.f32 0.0, %v830
      %v832 = vpop.f32.mrb[0].mxu0
      %v833 = vpop.f32.mrb[0].mxu0
      %v834 = vadd.f32 0.0, %v833
      %v835 = vpop.f32.mrb[0].mxu0
      %836 = vmatprep.mubr.bf16.mxu0 0
      %837 = vmatmul.mubr.bf16.gmra.mrb[0].mxu0 %v709
      %v838 = vpop.f32.mrb[0].mxu0
      %v839 = vadd.f32 0.0, %v838
      %v840 = vpop.f32.mrb[0].mxu0
      %v841 = vpop.f32.mrb[0].mxu0
      %v842 = vpop.f32.mrb[0].mxu0
      %843 = vdwg.mxu0
      %v844 = vadd.f32 %v558, %v799
      %v845 = vadd.f32 %v561, %v802
      %v846 = vadd.f32 %v566, %v807
      %v847 = vadd.f32 %v569, %v810
      %v848 = vadd.f32 %v574, %v815
      %v849 = vadd.f32 %v577, %v818
      %v850 = vadd.f32 %v582, %v823
      %v851 = vadd.f32 %v585, %v826
      %v852 = vadd.f32 %v590, %v831
      %v853 = vadd.f32 %v593, %v834
      %v854 = vadd.f32 %v598, %v839
      %s855 = scalar_lea.vmem %s206, 104
      %v856 = vld [vmem:[%s855] sm:$0xf]
      %v857 = vld [vmem:[%s855 + $0x4] sm:$0xf]
      %v858 = vld [vmem:[%s855 + $0x8] sm:$0xf]
      %v859 = vld [vmem:[%s855 + $0xc] sm:$0xf]
      %v860 = vld [vmem:[%s855 + $0x10] sm:$0xf]
      %v861 = vld [vmem:[%s855 + $0x14] sm:$0xf]
      %v862 = vld [vmem:[%s855 + $0x18] sm:$0xf]
      %v863 = vld [vmem:[%s855 + $0x1c] sm:$0xf]
      %v864 = vld [vmem:[%s855 + $0x20] sm:$0xf]
      %v865 = vld [vmem:[%s855 + $0x24] sm:$0xf]
      %v866 = vld [vmem:[%s855 + $0x28] sm:$0xf]
      %s867 = scalar_lea.vmem %s210, 192
      %v868 = vld [vmem:[%s867] sm:$0xf]
      %v869 = vld [vmem:[%s867 + $0x4] sm:$0xf]
      %v870 = vld [vmem:[%s867 + $0x8] sm:$0xf]
      %v871 = vld [vmem:[%s867 + $0xc] sm:$0xf]
      %v872 = vld [vmem:[%s867 + $0x10] sm:$0xf]
      %v873 = vld [vmem:[%s867 + $0x14] sm:$0xf]
      %v874 = vld [vmem:[%s867 + $0x18] sm:$0xf]
      %v875 = vld [vmem:[%s867 + $0x1c] sm:$0xf]
      %v876 = vld [vmem:[%s867 + $0x20] sm:$0xf]
      %v877 = vld [vmem:[%s867 + $0x24] sm:$0xf]
      %v878 = vld [vmem:[%s867 + $0x28] sm:$0xf]
      %v879 = vld [vmem:[%s867 + $0x2c] sm:$0xf]
      %v880 = vld [vmem:[%s867 + $0x30] sm:$0xf]
      %v881 = vld [vmem:[%s867 + $0x34] sm:$0xf]
      %v882 = vld [vmem:[%s867 + $0x38] sm:$0xf]
      %v883 = vld [vmem:[%s867 + $0x3c] sm:$0xf]
      %v895 = vunpack.c.l.b16 %v856
      %v896 = vunpack.c.l.b16 %v857
      %v897 = vunpack.c.l.b16 %v858
      %v898 = vunpack.c.l.b16 %v859
      %v899 = vunpack.c.l.b16 %v860
      %v900 = vunpack.c.l.b16 %v861
      %v901 = vunpack.c.l.b16 %v862
      %v902 = vunpack.c.l.b16 %v863
      %v903 = vunpack.c.l.b16 %v864
      %v904 = vunpack.c.l.b16 %v865
      %v905 = vunpack.c.l.b16 %v866
      %v906 = vpack.c.b16 %v896, %v895
      %v907 = vpack.c.b16 %v898, %v897
      %v908 = vpack.c.b16 %v900, %v899
      %v909 = vpack.c.b16 %v902, %v901
      %v910 = vpack.c.b16 %v904, %v903
      %v911 = vpack.c.b16 %v905, %v905
      %v934 = vunpack.c.l.b16 %v868
      %v935 = vunpack.c.l.b16 %v869
      %v936 = vunpack.c.l.b16 %v870
      %v937 = vunpack.c.l.b16 %v871
      %v938 = vunpack.c.l.b16 %v872
      %v939 = vunpack.c.l.b16 %v873
      %v940 = vunpack.c.l.b16 %v874
      %v941 = vunpack.c.l.b16 %v875
      %v942 = vunpack.c.l.b16 %v876
      %v943 = vunpack.c.l.b16 %v877
      %v944 = vunpack.c.l.b16 %v878
      %v945 = vunpack.c.l.b16 %v879
      %v946 = vunpack.c.l.b16 %v880
      %v947 = vunpack.c.l.b16 %v881
      %v948 = vunpack.c.l.b16 %v882
      %v949 = vunpack.c.l.b16 %v883
      %v950 = vpack.c.b16 %v935, %v934
      %v951 = vpack.c.b16 %v937, %v936
      %v952 = vpack.c.b16 %v939, %v938
      %v953 = vpack.c.b16 %v941, %v940
      %v954 = vpack.c.b16 %v943, %v942
      %v955 = vpack.c.b16 %v945, %v944
      %v956 = vpack.c.b16 %v947, %v946
      %v957 = vpack.c.b16 %v949, %v948
      %966 = vmatprep.subr.bf16.mxu0 0
      %967 = vmatpush1.bf16.msra.mxu0 %v950
      %968 = vmatprep.subr.bf16.mxu0 0
      %969 = vmatpush1.bf16.msra.mxu0 %v951
      %970 = vmatprep.subr.bf16.mxu0 0
      %971 = vmatpush1.bf16.msra.mxu0 %v952
      %972 = vmatprep.subr.bf16.mxu0 0
      %973 = vmatpush1.bf16.msra.mxu0 %v953
      %974 = vmatprep.subr.bf16.mxu0 0
      %975 = vmatpush1.bf16.msra.mxu0 %v954
      %976 = vmatprep.subr.bf16.mxu0 0
      %977 = vmatpush1.bf16.msra.mxu0 %v955
      %978 = vmatprep.subr.bf16.mxu0 0
      %979 = vmatpush1.bf16.msra.mxu0 %v956
      %980 = vmatprep.subr.bf16.mxu0 0
      %981 = vmatpush1.bf16.msra.mxu0 %v957
      %982 = vmatprep.subr.bf16.mxu0 0
      %983 = vmatpush1.bf16.msra.mxu0 0
      %984 = vmatprep.subr.bf16.mxu0 0
      %985 = vmatpush1.bf16.msra.mxu0 0
      %986 = vmatprep.subr.bf16.mxu0 0
      %987 = vmatpush1.bf16.msra.mxu0 0
      %988 = vmatprep.subr.bf16.mxu0 0
      %989 = vmatpush1.bf16.msra.mxu0 0
      %990 = vmatprep.subr.bf16.mxu0 0
      %991 = vmatpush1.bf16.msra.mxu0 0
      %992 = vmatprep.subr.bf16.mxu0 0
      %993 = vmatpush1.bf16.msra.mxu0 0
      %994 = vmatprep.subr.bf16.mxu0 0
      %995 = vmatpush1.bf16.msra.mxu0 0
      %996 = vmatprep.subr.bf16.mxu0 0
      %997 = vmatpush1.bf16.msra.mxu0 0
      %998 = vmatprep.mubr.bf16.mxu0 0
      %999 = vmatmul.mubr.bf16.gmra.mrb[0].mxu0 %v906
      %v1000 = vpop.f32.mrb[0].mxu0
      %v1001 = vadd.f32 0.0, %v1000
      %v1002 = vpop.f32.mrb[0].mxu0
      %v1003 = vpop.f32.mrb[0].mxu0
      %v1004 = vadd.f32 0.0, %v1003
      %v1005 = vpop.f32.mrb[0].mxu0
      %1006 = vmatprep.mubr.bf16.mxu0 0
      %1007 = vmatmul.mubr.bf16.gmra.mrb[0].mxu0 %v907
      %v1008 = vpop.f32.mrb[0].mxu0
      %v1009 = vadd.f32 0.0, %v1008
      %v1010 = vpop.f32.mrb[0].mxu0
      %v1011 = vpop.f32.mrb[0].mxu0
      %v1012 = vadd.f32 0.0, %v1011
      %v1013 = vpop.f32.mrb[0].mxu0
      %1014 = vmatprep.mubr.bf16.mxu0 0
      %1015 = vmatmul.mubr.bf16.gmra.mrb[0].mxu0 %v908
      %v1016 = vpop.f32.mrb[0].mxu0
      %v1017 = vadd.f32 0.0, %v1016
      %v1018 = vpop.f32.mrb[0].mxu0
      %v1019 = vpop.f32.mrb[0].mxu0
      %v1020 = vadd.f32 0.0, %v1019
      %v1021 = vpop.f32.mrb[0].mxu0
      %1022 = vmatprep.mubr.bf16.mxu0 0
      %1023 = vmatmul.mubr.bf16.gmra.mrb[0].mxu0 %v909
      %v1024 = vpop.f32.mrb[0].mxu0
      %v1025 = vadd.f32 0.0, %v1024
      %v1026 = vpop.f32.mrb[0].mxu0
      %v1027 = vpop.f32.mrb[0].mxu0
      %v1028 = vadd.f32 0.0, %v1027
      %v1029 = vpop.f32.mrb[0].mxu0
      %1030 = vmatprep.mubr.bf16.mxu0 0
      %1031 = vmatmul.mubr.bf16.gmra.mrb[0].mxu0 %v910
      %v1032 = vpop.f32.mrb[0].mxu0
      %v1033 = vadd.f32 0.0, %v1032
      %v1034 = vpop.f32.mrb[0].mxu0
      %v1035 = vpop.f32.mrb[0].mxu0
      %v1036 = vadd.f32 0.0, %v1035
      %v1037 = vpop.f32.mrb[0].mxu0
      %1038 = vmatprep.mubr.bf16.mxu0 0
      %1039 = vmatmul.mubr.bf16.gmra.mrb[0].mxu0 %v911
      %v1040 = vpop.f32.mrb[0].mxu0
      %v1041 = vadd.f32 0.0, %v1040
      %v1042 = vpop.f32.mrb[0].mxu0
      %v1043 = vpop.f32.mrb[0].mxu0
      %v1044 = vpop.f32.mrb[0].mxu0
      %1045 = vdwg.mxu0
      %v1046 = vadd.f32 %v844, %v1001
      %v1047 = vadd.f32 %v845, %v1004
      %v1048 = vadd.f32 %v846, %v1009
      %v1049 = vadd.f32 %v847, %v1012
      %v1050 = vadd.f32 %v848, %v1017
      %v1051 = vadd.f32 %v849, %v1020
      %v1052 = vadd.f32 %v850, %v1025
      %v1053 = vadd.f32 %v851, %v1028
      %v1054 = vadd.f32 %v852, %v1033
      %v1055 = vadd.f32 %v853, %v1036
      %v1056 = vadd.f32 %v854, %v1041
      %s1057 = scalar_lea.vmem %s206, 156
      %v1058 = vld [vmem:[%s1057] sm:$0xf]
      %v1059 = vld [vmem:[%s1057 + $0x4] sm:$0xf]
      %v1060 = vld [vmem:[%s1057 + $0x8] sm:$0xf]
      %v1061 = vld [vmem:[%s1057 + $0xc] sm:$0xf]
      %v1062 = vld [vmem:[%s1057 + $0x10] sm:$0xf]
      %v1063 = vld [vmem:[%s1057 + $0x14] sm:$0xf]
      %v1064 = vld [vmem:[%s1057 + $0x18] sm:$0xf]
      %v1065 = vld [vmem:[%s1057 + $0x1c] sm:$0xf]
      %v1066 = vld [vmem:[%s1057 + $0x20] sm:$0xf]
      %v1067 = vld [vmem:[%s1057 + $0x24] sm:$0xf]
      %v1068 = vld [vmem:[%s1057 + $0x28] sm:$0xf]
      %s1069 = scalar_lea.vmem %s210, 256
      %v1070 = vld [vmem:[%s1069] sm:$0xf]
      %v1071 = vld [vmem:[%s1069 + $0x4] sm:$0xf]
      %v1072 = vld [vmem:[%s1069 + $0x8] sm:$0xf]
      %v1073 = vld [vmem:[%s1069 + $0xc] sm:$0xf]
      %v1074 = vld [vmem:[%s1069 + $0x10] sm:$0xf]
      %v1075 = vld [vmem:[%s1069 + $0x14] sm:$0xf]
      %v1076 = vld [vmem:[%s1069 + $0x18] sm:$0xf]
      %v1077 = vld [vmem:[%s1069 + $0x1c] sm:$0xf]
      %v1078 = vld [vmem:[%s1069 + $0x20] sm:$0xf]
      %v1079 = vld [vmem:[%s1069 + $0x24] sm:$0xf]
      %v1080 = vld [vmem:[%s1069 + $0x28] sm:$0xf]
      %v1081 = vld [vmem:[%s1069 + $0x2c] sm:$0xf]
      %v1082 = vld [vmem:[%s1069 + $0x30] sm:$0xf]
      %v1083 = vld [vmem:[%s1069 + $0x34] sm:$0xf]
      %v1084 = vld [vmem:[%s1069 + $0x38] sm:$0xf]
      %v1085 = vld [vmem:[%s1069 + $0x3c] sm:$0xf]
      %v1097 = vunpack.c.l.b16 %v1058
      %v1098 = vunpack.c.l.b16 %v1059
      %v1099 = vunpack.c.l.b16 %v1060
      %v1100 = vunpack.c.l.b16 %v1061
      %v1101 = vunpack.c.l.b16 %v1062
      %v1102 = vunpack.c.l.b16 %v1063
      %v1103 = vunpack.c.l.b16 %v1064
      %v1104 = vunpack.c.l.b16 %v1065
      %v1105 = vunpack.c.l.b16 %v1066
      %v1106 = vunpack.c.l.b16 %v1067
      %v1107 = vunpack.c.l.b16 %v1068
      %v1108 = vpack.c.b16 %v1098, %v1097
      %v1109 = vpack.c.b16 %v1100, %v1099
      %v1110 = vpack.c.b16 %v1102, %v1101
      %v1111 = vpack.c.b16 %v1104, %v1103
      %v1112 = vpack.c.b16 %v1106, %v1105
      %v1113 = vpack.c.b16 %v1107, %v1107
      %v1136 = vunpack.c.l.b16 %v1070
      %v1137 = vunpack.c.l.b16 %v1071
      %v1138 = vunpack.c.l.b16 %v1072
      %v1139 = vunpack.c.l.b16 %v1073
      %v1140 = vunpack.c.l.b16 %v1074
      %v1141 = vunpack.c.l.b16 %v1075
      %v1142 = vunpack.c.l.b16 %v1076
      %v1143 = vunpack.c.l.b16 %v1077
      %v1144 = vunpack.c.l.b16 %v1078
      %v1145 = vunpack.c.l.b16 %v1079
      %v1146 = vunpack.c.l.b16 %v1080
      %v1147 = vunpack.c.l.b16 %v1081
      %v1148 = vunpack.c.l.b16 %v1082
      %v1149 = vunpack.c.l.b16 %v1083
      %v1150 = vunpack.c.l.b16 %v1084
      %v1151 = vunpack.c.l.b16 %v1085
      %v1152 = vpack.c.b16 %v1137, %v1136
      %v1153 = vpack.c.b16 %v1139, %v1138
      %v1154 = vpack.c.b16 %v1141, %v1140
      %v1155 = vpack.c.b16 %v1143, %v1142
      %v1156 = vpack.c.b16 %v1145, %v1144
      %v1157 = vpack.c.b16 %v1147, %v1146
      %v1158 = vpack.c.b16 %v1149, %v1148
      %v1159 = vpack.c.b16 %v1151, %v1150
      %1168 = vmatprep.subr.bf16.mxu0 0
      %1169 = vmatpush1.bf16.msra.mxu0 %v1152
      %1170 = vmatprep.subr.bf16.mxu0 0
      %1171 = vmatpush1.bf16.msra.mxu0 %v1153
      %1172 = vmatprep.subr.bf16.mxu0 0
      %1173 = vmatpush1.bf16.msra.mxu0 %v1154
      %1174 = vmatprep.subr.bf16.mxu0 0
      %1175 = vmatpush1.bf16.msra.mxu0 %v1155
      %1176 = vmatprep.subr.bf16.mxu0 0
      %1177 = vmatpush1.bf16.msra.mxu0 %v1156
      %1178 = vmatprep.subr.bf16.mxu0 0
      %1179 = vmatpush1.bf16.msra.mxu0 %v1157
      %1180 = vmatprep.subr.bf16.mxu0 0
      %1181 = vmatpush1.bf16.msra.mxu0 %v1158
      %1182 = vmatprep.subr.bf16.mxu0 0
      %1183 = vmatpush1.bf16.msra.mxu0 %v1159
      %1184 = vmatprep.subr.bf16.mxu0 0
      %1185 = vmatpush1.bf16.msra.mxu0 0
      %1186 = vmatprep.subr.bf16.mxu0 0
      %1187 = vmatpush1.bf16.msra.mxu0 0
      %1188 = vmatprep.subr.bf16.mxu0 0
      %1189 = vmatpush1.bf16.msra.mxu0 0
      %1190 = vmatprep.subr.bf16.mxu0 0
      %1191 = vmatpush1.bf16.msra.mxu0 0
      %1192 = vmatprep.subr.bf16.mxu0 0
      %1193 = vmatpush1.bf16.msra.mxu0 0
      %1194 = vmatprep.subr.bf16.mxu0 0
      %1195 = vmatpush1.bf16.msra.mxu0 0
      %1196 = vmatprep.subr.bf16.mxu0 0
      %1197 = vmatpush1.bf16.msra.mxu0 0
      %1198 = vmatprep.subr.bf16.mxu0 0
      %1199 = vmatpush1.bf16.msra.mxu0 0
      %1200 = vmatprep.mubr.bf16.mxu0 0
      %1201 = vmatmul.mubr.bf16.gmra.mrb[0].mxu0 %v1108
      %v1202 = vpop.f32.mrb[0].mxu0
      %v1203 = vadd.f32 0.0, %v1202
      %v1204 = vpop.f32.mrb[0].mxu0
      %v1205 = vpop.f32.mrb[0].mxu0
      %v1206 = vadd.f32 0.0, %v1205
      %v1207 = vpop.f32.mrb[0].mxu0
      %1208 = vmatprep.mubr.bf16.mxu0 0
      %1209 = vmatmul.mubr.bf16.gmra.mrb[0].mxu0 %v1109
      %v1210 = vpop.f32.mrb[0].mxu0
      %v1211 = vadd.f32 0.0, %v1210
      %v1212 = vpop.f32.mrb[0].mxu0
      %v1213 = vpop.f32.mrb[0].mxu0
      %v1214 = vadd.f32 0.0, %v1213
      %v1215 = vpop.f32.mrb[0].mxu0
      %1216 = vmatprep.mubr.bf16.mxu0 0
      %1217 = vmatmul.mubr.bf16.gmra.mrb[0].mxu0 %v1110
      %v1218 = vpop.f32.mrb[0].mxu0
      %v1219 = vadd.f32 0.0, %v1218
      %v1220 = vpop.f32.mrb[0].mxu0
      %v1221 = vpop.f32.mrb[0].mxu0
      %v1222 = vadd.f32 0.0, %v1221
      %v1223 = vpop.f32.mrb[0].mxu0
      %1224 = vmatprep.mubr.bf16.mxu0 0
      %1225 = vmatmul.mubr.bf16.gmra.mrb[0].mxu0 %v1111
      %v1226 = vpop.f32.mrb[0].mxu0
      %v1227 = vadd.f32 0.0, %v1226
      %v1228 = vpop.f32.mrb[0].mxu0
      %v1229 = vpop.f32.mrb[0].mxu0
      %v1230 = vadd.f32 0.0, %v1229
      %v1231 = vpop.f32.mrb[0].mxu0
      %1232 = vmatprep.mubr.bf16.mxu0 0
      %1233 = vmatmul.mubr.bf16.gmra.mrb[0].mxu0 %v1112
      %v1234 = vpop.f32.mrb[0].mxu0
      %v1235 = vadd.f32 0.0, %v1234
      %v1236 = vpop.f32.mrb[0].mxu0
      %v1237 = vpop.f32.mrb[0].mxu0
      %v1238 = vadd.f32 0.0, %v1237
      %v1239 = vpop.f32.mrb[0].mxu0
      %1240 = vmatprep.mubr.bf16.mxu0 0
      %1241 = vmatmul.mubr.bf16.gmra.mrb[0].mxu0 %v1113
      %v1242 = vpop.f32.mrb[0].mxu0
      %v1243 = vadd.f32 0.0, %v1242
      %v1244 = vpop.f32.mrb[0].mxu0
      %v1245 = vpop.f32.mrb[0].mxu0
      %v1246 = vpop.f32.mrb[0].mxu0
      %1247 = vdwg.mxu0
      %v1248 = vadd.f32 %v1046, %v1203
      %v1249 = vadd.f32 %v1047, %v1206
      %v1250 = vadd.f32 %v1048, %v1211
      %v1251 = vadd.f32 %v1049, %v1214
      %v1252 = vadd.f32 %v1050, %v1219
      %v1253 = vadd.f32 %v1051, %v1222
      %v1254 = vadd.f32 %v1052, %v1227
      %v1255 = vadd.f32 %v1053, %v1230
      %v1256 = vadd.f32 %v1054, %v1235
      %v1257 = vadd.f32 %v1055, %v1238
      %v1258 = vadd.f32 %v1056, %v1243
      %v1259 = vld [vmem:[%s855] sm:$0xf]
      %v1260 = vld [vmem:[%s855 + $0x4] sm:$0xf]
      %v1261 = vld [vmem:[%s855 + $0x8] sm:$0xf]
      %v1262 = vld [vmem:[%s855 + $0xc] sm:$0xf]
      %v1263 = vld [vmem:[%s855 + $0x10] sm:$0xf]
      %v1264 = vld [vmem:[%s855 + $0x14] sm:$0xf]
      %v1265 = vld [vmem:[%s855 + $0x18] sm:$0xf]
      %v1266 = vld [vmem:[%s855 + $0x1c] sm:$0xf]
      %v1267 = vld [vmem:[%s855 + $0x20] sm:$0xf]
      %v1268 = vld [vmem:[%s855 + $0x24] sm:$0xf]
      %v1269 = vld [vmem:[%s855 + $0x28] sm:$0xf]
      %v1270 = vld [vmem:[%s855 + $0x2c] sm:$0x1]
      %s1271 = scalar_lea.vmem %s210, 320
      %v1272 = vld [vmem:[%s1271] sm:$0xf]
      %v1273 = vld [vmem:[%s1271 + $0x4] sm:$0xf]
      %v1274 = vld [vmem:[%s1271 + $0x8] sm:$0xf]
      %v1275 = vld [vmem:[%s1271 + $0xc] sm:$0xf]
      %v1276 = vld [vmem:[%s1271 + $0x10] sm:$0xf]
      %v1277 = vld [vmem:[%s1271 + $0x14] sm:$0xf]
      %v1278 = vld [vmem:[%s1271 + $0x18] sm:$0xf]
      %v1279 = vld [vmem:[%s1271 + $0x1c] sm:$0xf]
      %v1280 = vld [vmem:[%s1271 + $0x20] sm:$0xf]
      %v1281 = vld [vmem:[%s1271 + $0x24] sm:$0xf]
      %v1282 = vld [vmem:[%s1271 + $0x28] sm:$0xf]
      %v1283 = vld [vmem:[%s1271 + $0x2c] sm:$0xf]
      %v1284 = vld [vmem:[%s1271 + $0x30] sm:$0xf]
      %v1285 = vld [vmem:[%s1271 + $0x34] sm:$0xf]
      %v1286 = vld [vmem:[%s1271 + $0x38] sm:$0xf]
      %v1287 = vld [vmem:[%s1271 + $0x3c] sm:$0xf]
      %v1300 = vunpack.c.l.b16 %v1259
      %v1301 = vunpack.c.l.b16 %v1260
      %v1302 = vunpack.c.l.b16 %v1261
      %v1303 = vunpack.c.l.b16 %v1262
      %v1304 = vunpack.c.l.b16 %v1263
      %v1305 = vunpack.c.l.b16 %v1264
      %v1306 = vunpack.c.l.b16 %v1265
      %v1307 = vunpack.c.l.b16 %v1266
      %v1308 = vunpack.c.l.b16 %v1267
      %v1309 = vunpack.c.l.b16 %v1268
      %v1310 = vunpack.c.l.b16 %v1269
      %v1311 = vunpack.c.l.b16 %v1270
      %v1312 = vpack.c.b16 %v1301, %v1300
      %v1313 = vpack.c.b16 %v1303, %v1302
      %v1314 = vpack.c.b16 %v1305, %v1304
      %v1315 = vpack.c.b16 %v1307, %v1306
      %v1316 = vpack.c.b16 %v1309, %v1308
      %v1317 = vpack.c.b16 %v1311, %v1310
      %v1319 = vshrl.u32 %v1312, 16
      %v1321 = vshll.u32 %v1312, 16
      %v1323 = vrot.slane %v1321, 1
      %v1324 = vor.u32 %v1319, %v1323
      %v1326 = vshll.u32 %v1313, 16
      %v1328 = vrot.slane %v1326, 1
      %v1329 = vsel %vm662, %v1324, %v1328
      %v1330 = vshrl.u32 %v1313, 16
      %v1332 = vor.u32 %v1330, %v1328
      %v1334 = vshll.u32 %v1314, 16
      %v1336 = vrot.slane %v1334, 1
      %v1337 = vsel %vm662, %v1332, %v1336
      %v1338 = vshrl.u32 %v1314, 16
      %v1340 = vor.u32 %v1338, %v1336
      %v1342 = vshll.u32 %v1315, 16
      %v1344 = vrot.slane %v1342, 1
      %v1345 = vsel %vm662, %v1340, %v1344
      %v1346 = vshrl.u32 %v1315, 16
      %v1348 = vor.u32 %v1346, %v1344
      %v1350 = vshll.u32 %v1316, 16
      %v1352 = vrot.slane %v1350, 1
      %v1353 = vsel %vm662, %v1348, %v1352
      %v1354 = vshrl.u32 %v1316, 16
      %v1356 = vor.u32 %v1354, %v1352
      %v1358 = vshll.u32 %v1317, 16
      %v1360 = vrot.slane %v1358, 1
      %v1361 = vsel %vm662, %v1356, %v1360
      %v1362 = vshrl.u32 %v1317, 16
      %v1364 = vor.u32 %v1362, %v1360
      %v1387 = vunpack.c.l.b16 %v1272
      %v1388 = vunpack.c.l.b16 %v1273
      %v1389 = vunpack.c.l.b16 %v1274
      %v1390 = vunpack.c.l.b16 %v1275
      %v1391 = vunpack.c.l.b16 %v1276
      %v1392 = vunpack.c.l.b16 %v1277
      %v1393 = vunpack.c.l.b16 %v1278
      %v1394 = vunpack.c.l.b16 %v1279
      %v1395 = vunpack.c.l.b16 %v1280
      %v1396 = vunpack.c.l.b16 %v1281
      %v1397 = vunpack.c.l.b16 %v1282
      %v1398 = vunpack.c.l.b16 %v1283
      %v1399 = vunpack.c.l.b16 %v1284
      %v1400 = vunpack.c.l.b16 %v1285
      %v1401 = vunpack.c.l.b16 %v1286
      %v1402 = vunpack.c.l.b16 %v1287
      %v1403 = vpack.c.b16 %v1388, %v1387
      %v1404 = vpack.c.b16 %v1390, %v1389
      %v1405 = vpack.c.b16 %v1392, %v1391
      %v1406 = vpack.c.b16 %v1394, %v1393
      %v1407 = vpack.c.b16 %v1396, %v1395
      %v1408 = vpack.c.b16 %v1398, %v1397
      %v1409 = vpack.c.b16 %v1400, %v1399
      %v1410 = vpack.c.b16 %v1402, %v1401
      %1419 = vmatprep.subr.bf16.mxu0 0
      %1420 = vmatpush1.bf16.msra.mxu0 %v1403
      %1421 = vmatprep.subr.bf16.mxu0 0
      %1422 = vmatpush1.bf16.msra.mxu0 %v1404
      %1423 = vmatprep.subr.bf16.mxu0 0
      %1424 = vmatpush1.bf16.msra.mxu0 %v1405
      %1425 = vmatprep.subr.bf16.mxu0 0
      %1426 = vmatpush1.bf16.msra.mxu0 %v1406
      %1427 = vmatprep.subr.bf16.mxu0 0
      %1428 = vmatpush1.bf16.msra.mxu0 %v1407
      %1429 = vmatprep.subr.bf16.mxu0 0
      %1430 = vmatpush1.bf16.msra.mxu0 %v1408
      %1431 = vmatprep.subr.bf16.mxu0 0
      %1432 = vmatpush1.bf16.msra.mxu0 %v1409
      %1433 = vmatprep.subr.bf16.mxu0 0
      %1434 = vmatpush1.bf16.msra.mxu0 %v1410
      %1435 = vmatprep.subr.bf16.mxu0 0
      %1436 = vmatpush1.bf16.msra.mxu0 0
      %1437 = vmatprep.subr.bf16.mxu0 0
      %1438 = vmatpush1.bf16.msra.mxu0 0
      %1439 = vmatprep.subr.bf16.mxu0 0
      %1440 = vmatpush1.bf16.msra.mxu0 0
      %1441 = vmatprep.subr.bf16.mxu0 0
      %1442 = vmatpush1.bf16.msra.mxu0 0
      %1443 = vmatprep.subr.bf16.mxu0 0
      %1444 = vmatpush1.bf16.msra.mxu0 0
      %1445 = vmatprep.subr.bf16.mxu0 0
      %1446 = vmatpush1.bf16.msra.mxu0 0
      %1447 = vmatprep.subr.bf16.mxu0 0
      %1448 = vmatpush1.bf16.msra.mxu0 0
      %1449 = vmatprep.subr.bf16.mxu0 0
      %1450 = vmatpush1.bf16.msra.mxu0 0
      %1451 = vmatprep.mubr.bf16.mxu0 0
      %1452 = vmatmul.mubr.bf16.gmra.mrb[0].mxu0 %v1329
      %v1453 = vpop.f32.mrb[0].mxu0
      %v1454 = vadd.f32 0.0, %v1453
      %v1455 = vpop.f32.mrb[0].mxu0
      %v1456 = vpop.f32.mrb[0].mxu0
      %v1457 = vadd.f32 0.0, %v1456
      %v1458 = vpop.f32.mrb[0].mxu0
      %1459 = vmatprep.mubr.bf16.mxu0 0
      %1460 = vmatmul.mubr.bf16.gmra.mrb[0].mxu0 %v1337
      %v1461 = vpop.f32.mrb[0].mxu0
      %v1462 = vadd.f32 0.0, %v1461
      %v1463 = vpop.f32.mrb[0].mxu0
      %v1464 = vpop.f32.mrb[0].mxu0
      %v1465 = vadd.f32 0.0, %v1464
      %v1466 = vpop.f32.mrb[0].mxu0
      %1467 = vmatprep.mubr.bf16.mxu0 0
      %1468 = vmatmul.mubr.bf16.gmra.mrb[0].mxu0 %v1345
      %v1469 = vpop.f32.mrb[0].mxu0
      %v1470 = vadd.f32 0.0, %v1469
      %v1471 = vpop.f32.mrb[0].mxu0
      %v1472 = vpop.f32.mrb[0].mxu0
      %v1473 = vadd.f32 0.0, %v1472
      %v1474 = vpop.f32.mrb[0].mxu0
      %1475 = vmatprep.mubr.bf16.mxu0 0
      %1476 = vmatmul.mubr.bf16.gmra.mrb[0].mxu0 %v1353
      %v1477 = vpop.f32.mrb[0].mxu0
      %v1478 = vadd.f32 0.0, %v1477
      %v1479 = vpop.f32.mrb[0].mxu0
      %v1480 = vpop.f32.mrb[0].mxu0
      %v1481 = vadd.f32 0.0, %v1480
      %v1482 = vpop.f32.mrb[0].mxu0
      %1483 = vmatprep.mubr.bf16.mxu0 0
      %1484 = vmatmul.mubr.bf16.gmra.mrb[0].mxu0 %v1361
      %v1485 = vpop.f32.mrb[0].mxu0
      %v1486 = vadd.f32 0.0, %v1485
      %v1487 = vpop.f32.mrb[0].mxu0
      %v1488 = vpop.f32.mrb[0].mxu0
      %v1489 = vadd.f32 0.0, %v1488
      %v1490 = vpop.f32.mrb[0].mxu0
      %1491 = vmatprep.mubr.bf16.mxu0 0
      %1492 = vmatmul.mubr.bf16.gmra.mrb[0].mxu0 %v1364
      %v1493 = vpop.f32.mrb[0].mxu0
      %v1494 = vadd.f32 0.0, %v1493
      %v1495 = vpop.f32.mrb[0].mxu0
      %v1496 = vpop.f32.mrb[0].mxu0
      %v1497 = vpop.f32.mrb[0].mxu0
      %1498 = vdwg.mxu0
      %v1499 = vadd.f32 %v1248, %v1454
      %v1500 = vadd.f32 %v1249, %v1457
      %v1501 = vadd.f32 %v1250, %v1462
      %v1502 = vadd.f32 %v1251, %v1465
      %v1503 = vadd.f32 %v1252, %v1470
      %v1504 = vadd.f32 %v1253, %v1473
      %v1505 = vadd.f32 %v1254, %v1478
      %v1506 = vadd.f32 %v1255, %v1481
      %v1507 = vadd.f32 %v1256, %v1486
      %v1508 = vadd.f32 %v1257, %v1489
      %v1509 = vadd.f32 %v1258, %v1494
      %v1510 = vld [vmem:[%s206 + $0x4] sm:$0xf]
      %v1511 = vld [vmem:[%s206 + $0x8] sm:$0xf]
      %v1512 = vld [vmem:[%s206 + $0xc] sm:$0xf]
      %v1513 = vld [vmem:[%s206 + $0x10] sm:$0xf]
      %v1514 = vld [vmem:[%s206 + $0x14] sm:$0xf]
      %v1515 = vld [vmem:[%s206 + $0x18] sm:$0xf]
      %v1516 = vld [vmem:[%s206 + $0x1c] sm:$0xf]
      %v1517 = vld [vmem:[%s206 + $0x20] sm:$0xf]
      %v1518 = vld [vmem:[%s206 + $0x24] sm:$0xf]
      %v1519 = vld [vmem:[%s206 + $0x28] sm:$0xf]
      %v1520 = vld [vmem:[%s206 + $0x2c] sm:$0xf]
      %v1521 = vld [vmem:[%s206 + $0x30] sm:$0x1]
      %s1522 = scalar_lea.vmem %s210, 384
      %v1523 = vld [vmem:[%s1522] sm:$0xf]
      %v1524 = vld [vmem:[%s1522 + $0x4] sm:$0xf]
      %v1525 = vld [vmem:[%s1522 + $0x8] sm:$0xf]
      %v1526 = vld [vmem:[%s1522 + $0xc] sm:$0xf]
      %v1527 = vld [vmem:[%s1522 + $0x10] sm:$0xf]
      %v1528 = vld [vmem:[%s1522 + $0x14] sm:$0xf]
      %v1529 = vld [vmem:[%s1522 + $0x18] sm:$0xf]
      %v1530 = vld [vmem:[%s1522 + $0x1c] sm:$0xf]
      %v1531 = vld [vmem:[%s1522 + $0x20] sm:$0xf]
      %v1532 = vld [vmem:[%s1522 + $0x24] sm:$0xf]
      %v1533 = vld [vmem:[%s1522 + $0x28] sm:$0xf]
      %v1534 = vld [vmem:[%s1522 + $0x2c] sm:$0xf]
      %v1535 = vld [vmem:[%s1522 + $0x30] sm:$0xf]
      %v1536 = vld [vmem:[%s1522 + $0x34] sm:$0xf]
      %v1537 = vld [vmem:[%s1522 + $0x38] sm:$0xf]
      %v1538 = vld [vmem:[%s1522 + $0x3c] sm:$0xf]
      %v1551 = vunpack.c.l.b16 %v1510
      %v1552 = vunpack.c.l.b16 %v1511
      %v1553 = vunpack.c.l.b16 %v1512
      %v1554 = vunpack.c.l.b16 %v1513
      %v1555 = vunpack.c.l.b16 %v1514
      %v1556 = vunpack.c.l.b16 %v1515
      %v1557 = vunpack.c.l.b16 %v1516
      %v1558 = vunpack.c.l.b16 %v1517
      %v1559 = vunpack.c.l.b16 %v1518
      %v1560 = vunpack.c.l.b16 %v1519
      %v1561 = vunpack.c.l.b16 %v1520
      %v1562 = vunpack.c.l.b16 %v1521
      %v1563 = vpack.c.b16 %v1552, %v1551
      %v1564 = vpack.c.b16 %v1554, %v1553
      %v1565 = vpack.c.b16 %v1556, %v1555
      %v1566 = vpack.c.b16 %v1558, %v1557
      %v1567 = vpack.c.b16 %v1560, %v1559
      %v1568 = vpack.c.b16 %v1562, %v1561
      %v1570 = vshrl.u32 %v1563, 16
      %v1572 = vshll.u32 %v1563, 16
      %v1574 = vrot.slane %v1572, 1
      %v1575 = vor.u32 %v1570, %v1574
      %v1577 = vshll.u32 %v1564, 16
      %v1579 = vrot.slane %v1577, 1
      %v1580 = vsel %vm662, %v1575, %v1579
      %v1581 = vshrl.u32 %v1564, 16
      %v1583 = vor.u32 %v1581, %v1579
      %v1585 = vshll.u32 %v1565, 16
      %v1587 = vrot.slane %v1585, 1
      %v1588 = vsel %vm662, %v1583, %v1587
      %v1589 = vshrl.u32 %v1565, 16
      %v1591 = vor.u32 %v1589, %v1587
      %v1593 = vshll.u32 %v1566, 16
      %v1595 = vrot.slane %v1593, 1
      %v1596 = vsel %vm662, %v1591, %v1595
      %v1597 = vshrl.u32 %v1566, 16
      %v1599 = vor.u32 %v1597, %v1595
      %v1601 = vshll.u32 %v1567, 16
      %v1603 = vrot.slane %v1601, 1
      %v1604 = vsel %vm662, %v1599, %v1603
      %v1605 = vshrl.u32 %v1567, 16
      %v1607 = vor.u32 %v1605, %v1603
      %v1609 = vshll.u32 %v1568, 16
      %v1611 = vrot.slane %v1609, 1
      %v1612 = vsel %vm662, %v1607, %v1611
      %v1613 = vshrl.u32 %v1568, 16
      %v1615 = vor.u32 %v1613, %v1611
      %v1638 = vunpack.c.l.b16 %v1523
      %v1639 = vunpack.c.l.b16 %v1524
      %v1640 = vunpack.c.l.b16 %v1525
      %v1641 = vunpack.c.l.b16 %v1526
      %v1642 = vunpack.c.l.b16 %v1527
      %v1643 = vunpack.c.l.b16 %v1528
      %v1644 = vunpack.c.l.b16 %v1529
      %v1645 = vunpack.c.l.b16 %v1530
      %v1646 = vunpack.c.l.b16 %v1531
      %v1647 = vunpack.c.l.b16 %v1532
      %v1648 = vunpack.c.l.b16 %v1533
      %v1649 = vunpack.c.l.b16 %v1534
      %v1650 = vunpack.c.l.b16 %v1535
      %v1651 = vunpack.c.l.b16 %v1536
      %v1652 = vunpack.c.l.b16 %v1537
      %v1653 = vunpack.c.l.b16 %v1538
      %v1654 = vpack.c.b16 %v1639, %v1638
      %v1655 = vpack.c.b16 %v1641, %v1640
      %v1656 = vpack.c.b16 %v1643, %v1642
      %v1657 = vpack.c.b16 %v1645, %v1644
      %v1658 = vpack.c.b16 %v1647, %v1646
      %v1659 = vpack.c.b16 %v1649, %v1648
      %v1660 = vpack.c.b16 %v1651, %v1650
      %v1661 = vpack.c.b16 %v1653, %v1652
      %1670 = vmatprep.subr.bf16.mxu0 0
      %1671 = vmatpush1.bf16.msra.mxu0 %v1654
      %1672 = vmatprep.subr.bf16.mxu0 0
      %1673 = vmatpush1.bf16.msra.mxu0 %v1655
      %1674 = vmatprep.subr.bf16.mxu0 0
      %1675 = vmatpush1.bf16.msra.mxu0 %v1656
      %1676 = vmatprep.subr.bf16.mxu0 0
      %1677 = vmatpush1.bf16.msra.mxu0 %v1657
      %1678 = vmatprep.subr.bf16.mxu0 0
      %1679 = vmatpush1.bf16.msra.mxu0 %v1658
      %1680 = vmatprep.subr.bf16.mxu0 0
      %1681 = vmatpush1.bf16.msra.mxu0 %v1659
      %1682 = vmatprep.subr.bf16.mxu0 0
      %1683 = vmatpush1.bf16.msra.mxu0 %v1660
      %1684 = vmatprep.subr.bf16.mxu0 0
      %1685 = vmatpush1.bf16.msra.mxu0 %v1661
      %1686 = vmatprep.subr.bf16.mxu0 0
      %1687 = vmatpush1.bf16.msra.mxu0 0
      %1688 = vmatprep.subr.bf16.mxu0 0
      %1689 = vmatpush1.bf16.msra.mxu0 0
      %1690 = vmatprep.subr.bf16.mxu0 0
      %1691 = vmatpush1.bf16.msra.mxu0 0
      %1692 = vmatprep.subr.bf16.mxu0 0
      %1693 = vmatpush1.bf16.msra.mxu0 0
      %1694 = vmatprep.subr.bf16.mxu0 0
      %1695 = vmatpush1.bf16.msra.mxu0 0
      %1696 = vmatprep.subr.bf16.mxu0 0
      %1697 = vmatpush1.bf16.msra.mxu0 0
      %1698 = vmatprep.subr.bf16.mxu0 0
      %1699 = vmatpush1.bf16.msra.mxu0 0
      %1700 = vmatprep.subr.bf16.mxu0 0
      %1701 = vmatpush1.bf16.msra.mxu0 0
      %1702 = vmatprep.mubr.bf16.mxu0 0
      %1703 = vmatmul.mubr.bf16.gmra.mrb[0].mxu0 %v1580
      %v1704 = vpop.f32.mrb[0].mxu0
      %v1705 = vadd.f32 0.0, %v1704
      %v1706 = vpop.f32.mrb[0].mxu0
      %v1707 = vpop.f32.mrb[0].mxu0
      %v1708 = vadd.f32 0.0, %v1707
      %v1709 = vpop.f32.mrb[0].mxu0
      %1710 = vmatprep.mubr.bf16.mxu0 0
      %1711 = vmatmul.mubr.bf16.gmra.mrb[0].mxu0 %v1588
      %v1712 = vpop.f32.mrb[0].mxu0
      %v1713 = vadd.f32 0.0, %v1712
      %v1714 = vpop.f32.mrb[0].mxu0
      %v1715 = vpop.f32.mrb[0].mxu0
      %v1716 = vadd.f32 0.0, %v1715
      %v1717 = vpop.f32.mrb[0].mxu0
      %1718 = vmatprep.mubr.bf16.mxu0 0
      %1719 = vmatmul.mubr.bf16.gmra.mrb[0].mxu0 %v1596
      %v1720 = vpop.f32.mrb[0].mxu0
      %v1721 = vadd.f32 0.0, %v1720
      %v1722 = vpop.f32.mrb[0].mxu0
      %v1723 = vpop.f32.mrb[0].mxu0
      %v1724 = vadd.f32 0.0, %v1723
      %v1725 = vpop.f32.mrb[0].mxu0
      %1726 = vmatprep.mubr.bf16.mxu0 0
      %1727 = vmatmul.mubr.bf16.gmra.mrb[0].mxu0 %v1604
      %v1728 = vpop.f32.mrb[0].mxu0
      %v1729 = vadd.f32 0.0, %v1728
      %v1730 = vpop.f32.mrb[0].mxu0
      %v1731 = vpop.f32.mrb[0].mxu0
      %v1732 = vadd.f32 0.0, %v1731
      %v1733 = vpop.f32.mrb[0].mxu0
      %1734 = vmatprep.mubr.bf16.mxu0 0
      %1735 = vmatmul.mubr.bf16.gmra.mrb[0].mxu0 %v1612
      %v1736 = vpop.f32.mrb[0].mxu0
      %v1737 = vadd.f32 0.0, %v1736
      %v1738 = vpop.f32.mrb[0].mxu0
      %v1739 = vpop.f32.mrb[0].mxu0
      %v1740 = vadd.f32 0.0, %v1739
      %v1741 = vpop.f32.mrb[0].mxu0
      %1742 = vmatprep.mubr.bf16.mxu0 0
      %1743 = vmatmul.mubr.bf16.gmra.mrb[0].mxu0 %v1615
      %v1744 = vpop.f32.mrb[0].mxu0
      %v1745 = vadd.f32 0.0, %v1744
      %v1746 = vpop.f32.mrb[0].mxu0
      %v1747 = vpop.f32.mrb[0].mxu0
      %v1748 = vpop.f32.mrb[0].mxu0
      %1749 = vdwg.mxu0
      %v1750 = vadd.f32 %v1499, %v1705
      %v1751 = vadd.f32 %v1500, %v1708
      %v1752 = vadd.f32 %v1501, %v1713
      %v1753 = vadd.f32 %v1502, %v1716
      %v1754 = vadd.f32 %v1503, %v1721
      %v1755 = vadd.f32 %v1504, %v1724
      %v1756 = vadd.f32 %v1505, %v1729
      %v1757 = vadd.f32 %v1506, %v1732
      %v1758 = vadd.f32 %v1507, %v1737
      %v1759 = vadd.f32 %v1508, %v1740
      %v1760 = vadd.f32 %v1509, %v1745
      %v1761 = vld [vmem:[%s250 + $0x4] sm:$0xf]
      %v1762 = vld [vmem:[%s250 + $0x8] sm:$0xf]
      %v1763 = vld [vmem:[%s250 + $0xc] sm:$0xf]
      %v1764 = vld [vmem:[%s250 + $0x10] sm:$0xf]
      %v1765 = vld [vmem:[%s250 + $0x14] sm:$0xf]
      %v1766 = vld [vmem:[%s250 + $0x18] sm:$0xf]
      %v1767 = vld [vmem:[%s250 + $0x1c] sm:$0xf]
      %v1768 = vld [vmem:[%s250 + $0x20] sm:$0xf]
      %v1769 = vld [vmem:[%s250 + $0x24] sm:$0xf]
      %v1770 = vld [vmem:[%s250 + $0x28] sm:$0xf]
      %v1771 = vld [vmem:[%s250 + $0x2c] sm:$0xf]
      %v1772 = vld [vmem:[%s250 + $0x30] sm:$0x1]
      %s1773 = scalar_lea.vmem %s210, 448
      %v1774 = vld [vmem:[%s1773] sm:$0xf]
      %v1775 = vld [vmem:[%s1773 + $0x4] sm:$0xf]
      %v1776 = vld [vmem:[%s1773 + $0x8] sm:$0xf]
      %v1777 = vld [vmem:[%s1773 + $0xc] sm:$0xf]
      %v1778 = vld [vmem:[%s1773 + $0x10] sm:$0xf]
      %v1779 = vld [vmem:[%s1773 + $0x14] sm:$0xf]
      %v1780 = vld [vmem:[%s1773 + $0x18] sm:$0xf]
      %v1781 = vld [vmem:[%s1773 + $0x1c] sm:$0xf]
      %v1782 = vld [vmem:[%s1773 + $0x20] sm:$0xf]
      %v1783 = vld [vmem:[%s1773 + $0x24] sm:$0xf]
      %v1784 = vld [vmem:[%s1773 + $0x28] sm:$0xf]
      %v1785 = vld [vmem:[%s1773 + $0x2c] sm:$0xf]
      %v1786 = vld [vmem:[%s1773 + $0x30] sm:$0xf]
      %v1787 = vld [vmem:[%s1773 + $0x34] sm:$0xf]
      %v1788 = vld [vmem:[%s1773 + $0x38] sm:$0xf]
      %v1789 = vld [vmem:[%s1773 + $0x3c] sm:$0xf]
      %v1802 = vunpack.c.l.b16 %v1761
      %v1803 = vunpack.c.l.b16 %v1762
      %v1804 = vunpack.c.l.b16 %v1763
      %v1805 = vunpack.c.l.b16 %v1764
      %v1806 = vunpack.c.l.b16 %v1765
      %v1807 = vunpack.c.l.b16 %v1766
      %v1808 = vunpack.c.l.b16 %v1767
      %v1809 = vunpack.c.l.b16 %v1768
      %v1810 = vunpack.c.l.b16 %v1769
      %v1811 = vunpack.c.l.b16 %v1770
      %v1812 = vunpack.c.l.b16 %v1771
      %v1813 = vunpack.c.l.b16 %v1772
      %v1814 = vpack.c.b16 %v1803, %v1802
      %v1815 = vpack.c.b16 %v1805, %v1804
      %v1816 = vpack.c.b16 %v1807, %v1806
      %v1817 = vpack.c.b16 %v1809, %v1808
      %v1818 = vpack.c.b16 %v1811, %v1810
      %v1819 = vpack.c.b16 %v1813, %v1812
      %v1821 = vshrl.u32 %v1814, 16
      %v1823 = vshll.u32 %v1814, 16
      %v1825 = vrot.slane %v1823, 1
      %v1826 = vor.u32 %v1821, %v1825
      %v1828 = vshll.u32 %v1815, 16
      %v1830 = vrot.slane %v1828, 1
      %v1831 = vsel %vm662, %v1826, %v1830
      %v1832 = vshrl.u32 %v1815, 16
      %v1834 = vor.u32 %v1832, %v1830
      %v1836 = vshll.u32 %v1816, 16
      %v1838 = vrot.slane %v1836, 1
      %v1839 = vsel %vm662, %v1834, %v1838
      %v1840 = vshrl.u32 %v1816, 16
      %v1842 = vor.u32 %v1840, %v1838
      %v1844 = vshll.u32 %v1817, 16
      %v1846 = vrot.slane %v1844, 1
      %v1847 = vsel %vm662, %v1842, %v1846
      %v1848 = vshrl.u32 %v1817, 16
      %v1850 = vor.u32 %v1848, %v1846
      %v1852 = vshll.u32 %v1818, 16
      %v1854 = vrot.slane %v1852, 1
      %v1855 = vsel %vm662, %v1850, %v1854
      %v1856 = vshrl.u32 %v1818, 16
      %v1858 = vor.u32 %v1856, %v1854
      %v1860 = vshll.u32 %v1819, 16
      %v1862 = vrot.slane %v1860, 1
      %v1863 = vsel %vm662, %v1858, %v1862
      %v1864 = vshrl.u32 %v1819, 16
      %v1866 = vor.u32 %v1864, %v1862
      %v1889 = vunpack.c.l.b16 %v1774
      %v1890 = vunpack.c.l.b16 %v1775
      %v1891 = vunpack.c.l.b16 %v1776
      %v1892 = vunpack.c.l.b16 %v1777
      %v1893 = vunpack.c.l.b16 %v1778
      %v1894 = vunpack.c.l.b16 %v1779
      %v1895 = vunpack.c.l.b16 %v1780
      %v1896 = vunpack.c.l.b16 %v1781
      %v1897 = vunpack.c.l.b16 %v1782
      %v1898 = vunpack.c.l.b16 %v1783
      %v1899 = vunpack.c.l.b16 %v1784
      %v1900 = vunpack.c.l.b16 %v1785
      %v1901 = vunpack.c.l.b16 %v1786
      %v1902 = vunpack.c.l.b16 %v1787
      %v1903 = vunpack.c.l.b16 %v1788
      %v1904 = vunpack.c.l.b16 %v1789
      %v1905 = vpack.c.b16 %v1890, %v1889
      %v1906 = vpack.c.b16 %v1892, %v1891
      %v1907 = vpack.c.b16 %v1894, %v1893
      %v1908 = vpack.c.b16 %v1896, %v1895
      %v1909 = vpack.c.b16 %v1898, %v1897
      %v1910 = vpack.c.b16 %v1900, %v1899
      %v1911 = vpack.c.b16 %v1902, %v1901
      %v1912 = vpack.c.b16 %v1904, %v1903
      %1921 = vmatprep.subr.bf16.mxu0 0
      %1922 = vmatpush1.bf16.msra.mxu0 %v1905
      %1923 = vmatprep.subr.bf16.mxu0 0
      %1924 = vmatpush1.bf16.msra.mxu0 %v1906
      %1925 = vmatprep.subr.bf16.mxu0 0
      %1926 = vmatpush1.bf16.msra.mxu0 %v1907
      %1927 = vmatprep.subr.bf16.mxu0 0
      %1928 = vmatpush1.bf16.msra.mxu0 %v1908
      %1929 = vmatprep.subr.bf16.mxu0 0
      %1930 = vmatpush1.bf16.msra.mxu0 %v1909
      %1931 = vmatprep.subr.bf16.mxu0 0
      %1932 = vmatpush1.bf16.msra.mxu0 %v1910
      %1933 = vmatprep.subr.bf16.mxu0 0
      %1934 = vmatpush1.bf16.msra.mxu0 %v1911
      %1935 = vmatprep.subr.bf16.mxu0 0
      %1936 = vmatpush1.bf16.msra.mxu0 %v1912
      %1937 = vmatprep.subr.bf16.mxu0 0
      %1938 = vmatpush1.bf16.msra.mxu0 0
      %1939 = vmatprep.subr.bf16.mxu0 0
      %1940 = vmatpush1.bf16.msra.mxu0 0
      %1941 = vmatprep.subr.bf16.mxu0 0
      %1942 = vmatpush1.bf16.msra.mxu0 0
      %1943 = vmatprep.subr.bf16.mxu0 0
      %1944 = vmatpush1.bf16.msra.mxu0 0
      %1945 = vmatprep.subr.bf16.mxu0 0
      %1946 = vmatpush1.bf16.msra.mxu0 0
      %1947 = vmatprep.subr.bf16.mxu0 0
      %1948 = vmatpush1.bf16.msra.mxu0 0
      %1949 = vmatprep.subr.bf16.mxu0 0
      %1950 = vmatpush1.bf16.msra.mxu0 0
      %1951 = vmatprep.subr.bf16.mxu0 0
      %1952 = vmatpush1.bf16.msra.mxu0 0
      %1953 = vmatprep.mubr.bf16.mxu0 0
      %1954 = vmatmul.mubr.bf16.gmra.mrb[0].mxu0 %v1831
      %v1955 = vpop.f32.mrb[0].mxu0
      %v1956 = vadd.f32 0.0, %v1955
      %v1957 = vpop.f32.mrb[0].mxu0
      %v1958 = vpop.f32.mrb[0].mxu0
      %v1959 = vadd.f32 0.0, %v1958
      %v1960 = vpop.f32.mrb[0].mxu0
      %1961 = vmatprep.mubr.bf16.mxu0 0
      %1962 = vmatmul.mubr.bf16.gmra.mrb[0].mxu0 %v1839
      %v1963 = vpop.f32.mrb[0].mxu0
      %v1964 = vadd.f32 0.0, %v1963
      %v1965 = vpop.f32.mrb[0].mxu0
      %v1966 = vpop.f32.mrb[0].mxu0
      %v1967 = vadd.f32 0.0, %v1966
      %v1968 = vpop.f32.mrb[0].mxu0
      %1969 = vmatprep.mubr.bf16.mxu0 0
      %1970 = vmatmul.mubr.bf16.gmra.mrb[0].mxu0 %v1847
      %v1971 = vpop.f32.mrb[0].mxu0
      %v1972 = vadd.f32 0.0, %v1971
      %v1973 = vpop.f32.mrb[0].mxu0
      %v1974 = vpop.f32.mrb[0].mxu0
      %v1975 = vadd.f32 0.0, %v1974
      %v1976 = vpop.f32.mrb[0].mxu0
      %1977 = vmatprep.mubr.bf16.mxu0 0
      %1978 = vmatmul.mubr.bf16.gmra.mrb[0].mxu0 %v1855
      %v1979 = vpop.f32.mrb[0].mxu0
      %v1980 = vadd.f32 0.0, %v1979
      %v1981 = vpop.f32.mrb[0].mxu0
      %v1982 = vpop.f32.mrb[0].mxu0
      %v1983 = vadd.f32 0.0, %v1982
      %v1984 = vpop.f32.mrb[0].mxu0
      %1985 = vmatprep.mubr.bf16.mxu0 0
      %1986 = vmatmul.mubr.bf16.gmra.mrb[0].mxu0 %v1863
      %v1987 = vpop.f32.mrb[0].mxu0
      %v1988 = vadd.f32 0.0, %v1987
      %v1989 = vpop.f32.mrb[0].mxu0
      %v1990 = vpop.f32.mrb[0].mxu0
      %v1991 = vadd.f32 0.0, %v1990
      %v1992 = vpop.f32.mrb[0].mxu0
      %1993 = vmatprep.mubr.bf16.mxu0 0
      %1994 = vmatmul.mubr.bf16.gmra.mrb[0].mxu0 %v1866
      %v1995 = vpop.f32.mrb[0].mxu0
      %v1996 = vadd.f32 0.0, %v1995
      %v1997 = vpop.f32.mrb[0].mxu0
      %v1998 = vpop.f32.mrb[0].mxu0
      %v1999 = vpop.f32.mrb[0].mxu0
      %2000 = vdwg.mxu0
      %v2001 = vadd.f32 %v1750, %v1956
      %v2002 = vadd.f32 %v1751, %v1959
      %v2003 = vadd.f32 %v1752, %v1964
      %v2004 = vadd.f32 %v1753, %v1967
      %v2005 = vadd.f32 %v1754, %v1972
      %v2006 = vadd.f32 %v1755, %v1975
      %v2007 = vadd.f32 %v1756, %v1980
      %v2008 = vadd.f32 %v1757, %v1983
      %v2009 = vadd.f32 %v1758, %v1988
      %v2010 = vadd.f32 %v1759, %v1991
      %v2011 = vadd.f32 %v1760, %v1996
      %v2012 = vld [vmem:[%s206 + $0x4] sm:$0xe]
      %s2013 = scalar_lea.vmem %s210, 512
      %v2014 = vld [vmem:[%s2013] sm:$0xf]
      %v2015 = vld [vmem:[%s2013 + $0x4] sm:$0xf]
      %v2016 = vld [vmem:[%s2013 + $0x8] sm:$0xf]
      %v2017 = vld [vmem:[%s2013 + $0xc] sm:$0xf]
      %v2018 = vld [vmem:[%s2013 + $0x10] sm:$0xf]
      %v2019 = vld [vmem:[%s2013 + $0x14] sm:$0xf]
      %v2020 = vld [vmem:[%s2013 + $0x18] sm:$0xf]
      %v2021 = vld [vmem:[%s2013 + $0x1c] sm:$0xf]
      %v2022 = vld [vmem:[%s2013 + $0x20] sm:$0xf]
      %v2023 = vld [vmem:[%s2013 + $0x24] sm:$0xf]
      %v2024 = vld [vmem:[%s2013 + $0x28] sm:$0xf]
      %v2025 = vld [vmem:[%s2013 + $0x2c] sm:$0xf]
      %v2026 = vld [vmem:[%s2013 + $0x30] sm:$0xf]
      %v2027 = vld [vmem:[%s2013 + $0x34] sm:$0xf]
      %v2028 = vld [vmem:[%s2013 + $0x38] sm:$0xf]
      %v2029 = vld [vmem:[%s2013 + $0x3c] sm:$0xf]
      %v2031 = vunpack.c.l.b16 %v2012
      %v2032 = vpack.c.b16 %v1552, %v2031
      %vm2033 = vcmask 1046528
      %v2034 = vrot.slane %v2032, 1
      %v2035 = vrot.slane %v1564, 1
      %v2036 = vsel %vm2033, %v2034, %v2035
      %v2037 = vrot.slane %v1565, 1
      %v2038 = vsel %vm2033, %v2035, %v2037
      %v2039 = vrot.slane %v1566, 1
      %v2040 = vsel %vm2033, %v2037, %v2039
      %v2041 = vrot.slane %v1567, 1
      %v2042 = vsel %vm2033, %v2039, %v2041
      %v2043 = vrot.slane %v1568, 1
      %v2044 = vsel %vm2033, %v2041, %v2043
      %v2067 = vunpack.c.l.b16 %v2014
      %v2068 = vunpack.c.l.b16 %v2015
      %v2069 = vunpack.c.l.b16 %v2016
      %v2070 = vunpack.c.l.b16 %v2017
      %v2071 = vunpack.c.l.b16 %v2018
      %v2072 = vunpack.c.l.b16 %v2019
      %v2073 = vunpack.c.l.b16 %v2020
      %v2074 = vunpack.c.l.b16 %v2021
      %v2075 = vunpack.c.l.b16 %v2022
      %v2076 = vunpack.c.l.b16 %v2023
      %v2077 = vunpack.c.l.b16 %v2024
      %v2078 = vunpack.c.l.b16 %v2025
      %v2079 = vunpack.c.l.b16 %v2026
      %v2080 = vunpack.c.l.b16 %v2027
      %v2081 = vunpack.c.l.b16 %v2028
      %v2082 = vunpack.c.l.b16 %v2029
      %v2083 = vpack.c.b16 %v2068, %v2067
      %v2084 = vpack.c.b16 %v2070, %v2069
      %v2085 = vpack.c.b16 %v2072, %v2071
      %v2086 = vpack.c.b16 %v2074, %v2073
      %v2087 = vpack.c.b16 %v2076, %v2075
      %v2088 = vpack.c.b16 %v2078, %v2077
      %v2089 = vpack.c.b16 %v2080, %v2079
      %v2090 = vpack.c.b16 %v2082, %v2081
      %2099 = vmatprep.subr.bf16.mxu0 0
      %2100 = vmatpush1.bf16.msra.mxu0 %v2083
      %2101 = vmatprep.subr.bf16.mxu0 0
      %2102 = vmatpush1.bf16.msra.mxu0 %v2084
      %2103 = vmatprep.subr.bf16.mxu0 0
      %2104 = vmatpush1.bf16.msra.mxu0 %v2085
      %2105 = vmatprep.subr.bf16.mxu0 0
      %2106 = vmatpush1.bf16.msra.mxu0 %v2086
      %2107 = vmatprep.subr.bf16.mxu0 0
      %2108 = vmatpush1.bf16.msra.mxu0 %v2087
      %2109 = vmatprep.subr.bf16.mxu0 0
      %2110 = vmatpush1.bf16.msra.mxu0 %v2088
      %2111 = vmatprep.subr.bf16.mxu0 0
      %2112 = vmatpush1.bf16.msra.mxu0 %v2089
      %2113 = vmatprep.subr.bf16.mxu0 0
      %2114 = vmatpush1.bf16.msra.mxu0 %v2090
      %2115 = vmatprep.subr.bf16.mxu0 0
      %2116 = vmatpush1.bf16.msra.mxu0 0
      %2117 = vmatprep.subr.bf16.mxu0 0
      %2118 = vmatpush1.bf16.msra.mxu0 0
      %2119 = vmatprep.subr.bf16.mxu0 0
      %2120 = vmatpush1.bf16.msra.mxu0 0
      %2121 = vmatprep.subr.bf16.mxu0 0
      %2122 = vmatpush1.bf16.msra.mxu0 0
      %2123 = vmatprep.subr.bf16.mxu0 0
      %2124 = vmatpush1.bf16.msra.mxu0 0
      %2125 = vmatprep.subr.bf16.mxu0 0
      %2126 = vmatpush1.bf16.msra.mxu0 0
      %2127 = vmatprep.subr.bf16.mxu0 0
      %2128 = vmatpush1.bf16.msra.mxu0 0
      %2129 = vmatprep.subr.bf16.mxu0 0
      %2130 = vmatpush1.bf16.msra.mxu0 0
      %2131 = vmatprep.mubr.bf16.mxu0 0
      %2132 = vmatmul.mubr.bf16.gmra.mrb[0].mxu0 %v2036
      %v2133 = vpop.f32.mrb[0].mxu0
      %v2134 = vadd.f32 0.0, %v2133
      %v2135 = vpop.f32.mrb[0].mxu0
      %v2136 = vpop.f32.mrb[0].mxu0
      %v2137 = vadd.f32 0.0, %v2136
      %v2138 = vpop.f32.mrb[0].mxu0
      %2139 = vmatprep.mubr.bf16.mxu0 0
      %2140 = vmatmul.mubr.bf16.gmra.mrb[0].mxu0 %v2038
      %v2141 = vpop.f32.mrb[0].mxu0
      %v2142 = vadd.f32 0.0, %v2141
      %v2143 = vpop.f32.mrb[0].mxu0
      %v2144 = vpop.f32.mrb[0].mxu0
      %v2145 = vadd.f32 0.0, %v2144
      %v2146 = vpop.f32.mrb[0].mxu0
      %2147 = vmatprep.mubr.bf16.mxu0 0
      %2148 = vmatmul.mubr.bf16.gmra.mrb[0].mxu0 %v2040
      %v2149 = vpop.f32.mrb[0].mxu0
      %v2150 = vadd.f32 0.0, %v2149
      %v2151 = vpop.f32.mrb[0].mxu0
      %v2152 = vpop.f32.mrb[0].mxu0
      %v2153 = vadd.f32 0.0, %v2152
      %v2154 = vpop.f32.mrb[0].mxu0
      %2155 = vmatprep.mubr.bf16.mxu0 0
      %2156 = vmatmul.mubr.bf16.gmra.mrb[0].mxu0 %v2042
      %v2157 = vpop.f32.mrb[0].mxu0
      %v2158 = vadd.f32 0.0, %v2157
      %v2159 = vpop.f32.mrb[0].mxu0
      %v2160 = vpop.f32.mrb[0].mxu0
      %v2161 = vadd.f32 0.0, %v2160
      %v2162 = vpop.f32.mrb[0].mxu0
      %2163 = vmatprep.mubr.bf16.mxu0 0
      %2164 = vmatmul.mubr.bf16.gmra.mrb[0].mxu0 %v2044
      %v2165 = vpop.f32.mrb[0].mxu0
      %v2166 = vadd.f32 0.0, %v2165
      %v2167 = vpop.f32.mrb[0].mxu0
      %v2168 = vpop.f32.mrb[0].mxu0
      %v2169 = vadd.f32 0.0, %v2168
      %v2170 = vpop.f32.mrb[0].mxu0
      %2171 = vmatprep.mubr.bf16.mxu0 0
      %2172 = vmatmul.mubr.bf16.gmra.mrb[0].mxu0 %v2043
      %v2173 = vpop.f32.mrb[0].mxu0
      %v2174 = vadd.f32 0.0, %v2173
      %v2175 = vpop.f32.mrb[0].mxu0
      %v2176 = vpop.f32.mrb[0].mxu0
      %v2177 = vpop.f32.mrb[0].mxu0
      %2178 = vdwg.mxu0
      %v2179 = vadd.f32 %v2001, %v2134
      %v2180 = vadd.f32 %v2002, %v2137
      %v2181 = vadd.f32 %v2003, %v2142
      %v2182 = vadd.f32 %v2004, %v2145
      %v2183 = vadd.f32 %v2005, %v2150
      %v2184 = vadd.f32 %v2006, %v2153
      %v2185 = vadd.f32 %v2007, %v2158
      %v2186 = vadd.f32 %v2008, %v2161
      %v2187 = vadd.f32 %v2009, %v2166
      %v2188 = vadd.f32 %v2010, %v2169
      %v2189 = vadd.f32 %v2011, %v2174
      %v2190 = vld [vmem:[%s213] sm:$0x1]
      %v2192 = vlaneseq
      %v2193 = vshrl.u32 %v2192, 7
      %v2194 = vsub.s32 0, %v2193
      %v2195 = vrot.slane %v2190, %v2194
      %v2197 = vadd.f32 %v2179, %v2195
      %v2198 = vadd.f32 %v2180, %v2195
      %v2199 = vadd.f32 %v2181, %v2195
      %v2200 = vadd.f32 %v2182, %v2195
      %v2201 = vadd.f32 %v2183, %v2195
      %v2202 = vadd.f32 %v2184, %v2195
      %v2203 = vadd.f32 %v2185, %v2195
      %v2204 = vadd.f32 %v2186, %v2195
      %v2205 = vadd.f32 %v2187, %v2195
      %v2206 = vadd.f32 %v2188, %v2195
      %v2207 = vadd.f32 %v2189, %v2195
      %v2208 = vmax.f32 %v2197, 0.0
      %v2209 = vmax.f32 %v2198, 0.0
      %v2210 = vmax.f32 %v2199, 0.0
      %v2211 = vmax.f32 %v2200, 0.0
      %v2212 = vmax.f32 %v2201, 0.0
      %v2213 = vmax.f32 %v2202, 0.0
      %v2214 = vmax.f32 %v2203, 0.0
      %v2215 = vmax.f32 %v2204, 0.0
      %v2216 = vmax.f32 %v2205, 0.0
      %v2217 = vmax.f32 %v2206, 0.0
      %v2218 = vmax.f32 %v2207, 0.0
      %v2219 = vpack.c.bf16 %v2209, %v2208
      %v2220 = vpack.c.bf16 %v2211, %v2210
      %v2221 = vpack.c.bf16 %v2213, %v2212
      %v2222 = vpack.c.bf16 %v2215, %v2214
      %v2223 = vpack.c.bf16 %v2217, %v2216
      %v2224 = vpack.c.bf16 %v2218, %v2218
      %v2231 = vunpack.c.l.b16 %v2219
      %v2232 = vunpack.c.h.b16 %v2219
      %v2233 = vunpack.c.l.b16 %v2220
      %v2234 = vunpack.c.h.b16 %v2220
      %v2235 = vunpack.c.l.b16 %v2221
      %v2236 = vunpack.c.h.b16 %v2221
      %v2237 = vunpack.c.l.b16 %v2222
      %v2238 = vunpack.c.h.b16 %v2222
      %v2239 = vunpack.c.l.b16 %v2223
      %v2240 = vunpack.c.h.b16 %v2223
      %v2241 = vunpack.c.l.b16 %v2224
      %v2242 = vpack.c.b16 %v2231, %v2231
      %v2243 = vpack.c.b16 %v2232, %v2232
      %v2244 = vpack.c.b16 %v2233, %v2233
      %v2245 = vpack.c.b16 %v2234, %v2234
      %v2246 = vpack.c.b16 %v2235, %v2235
      %v2247 = vpack.c.b16 %v2236, %v2236
      %v2248 = vpack.c.b16 %v2237, %v2237
      %v2249 = vpack.c.b16 %v2238, %v2238
      %v2250 = vpack.c.b16 %v2239, %v2239
      %v2251 = vpack.c.b16 %v2240, %v2240
      %v2252 = vpack.c.b16 %v2241, %v2241
      %2264 = vst [vmem:[%s221] sm:$0xf] %v2242
      %2265 = vst [vmem:[%s221 + $0x4] sm:$0xf] %v2243
      %2266 = vst [vmem:[%s221 + $0x8] sm:$0xf] %v2244
      %2267 = vst [vmem:[%s221 + $0xc] sm:$0xf] %v2245
      %2268 = vst [vmem:[%s221 + $0x10] sm:$0xf] %v2246
      %2269 = vst [vmem:[%s221 + $0x14] sm:$0xf] %v2247
      %2270 = vst [vmem:[%s221 + $0x18] sm:$0xf] %v2248
      %2271 = vst [vmem:[%s221 + $0x1c] sm:$0xf] %v2249
      %2272 = vst [vmem:[%s221 + $0x20] sm:$0xf] %v2250
      %2273 = vst [vmem:[%s221 + $0x24] sm:$0xf] %v2251
      %2274 = vst [vmem:[%s221 + $0x28] sm:$0xf] %v2252
      %p2275 = scmp.lt.s32.totalorder %s18, 1
      %s2276 = scalar_select %p2275, %s18, 1
      %p2277 = scmp.lt.s32.totalorder %s19, 0
      %s2278 = scalar_select %p2277, %s19, 0
      %s2279 = smul.addr %s2276, 11
      %s2280 = sadd.s32 %s2278, %s2279
      %s2281 = smul.addr %s2280, 4
      %s2282 = scalar_lea.vmem %s3, %s2281
      // Predicated region
      $region33: #{backboned_forward.3} parent=31 // pred_check
        %p2283 = pneg %p124
      $region34: #{backboned_forward.3} parent=31 // pred_check_branch
        %2285 = sbr.rel (%p2283) target = $region36
      $region35: #{backboned_forward.3} parent=31 // pred_region
        _
      $region36: #{backboned_forward.3} parent=31 // pred_fallthru
        _
    $region32: #{backboned_forward.3} parent=5 // pred_fallthru
      _
    %p2286 = scmp.le.s32.totalorder 2, %s9
    // Predicated region
    $region37: #{backboned_forward.3} parent=5 // pred_check
      %p2287 = pneg %p2286
    $region38: #{backboned_forward.3} parent=5 // pred_check_branch
      %2289 = sbr.rel (%p2287) target = $region40
    $region39: #{backboned_forward.3} parent=5 // pred_region
      %s2290 = ssub.s32 %s9, 2
      // Predicated region
      $region41: #{backboned_forward.3} parent=39 // pred_check
        %p2291 = pneg %p130
      $region42: #{backboned_forward.3} parent=39 // pred_check_branch
        %2293 = sbr.rel (%p2291) target = $region44
      $region43: #{backboned_forward.3} parent=39 // pred_region
        %p2294 = scmp.lt.s32.totalorder %s20, 1
        %s2295 = scalar_select %p2294, %s20, 1
        %p2296 = scmp.lt.s32.totalorder %s21, 0
        %s2297 = scalar_select %p2296, %s21, 0
        %s2298 = smul.addr %s2295, 11
        %s2299 = sadd.s32 %s2297, %s2298
        %s2300 = smul.addr %s2299, 4
        %s2301 = scalar_lea.vmem %s3, %s2300
      $region44: #{backboned_forward.3} parent=39 // pred_fallthru
        _
    $region40: #{backboned_forward.3} parent=5 // pred_fallthru
      _
  $region6: #{backboned_forward.3} parent=0 // loop_footer
    %s13 = sadd.s32 1, %s9
  $region7: #{backboned_forward.3} parent=0 // loop_footer_branch
    %8 = sbr.rel target = $region3
  $region8: #{backboned_forward.3} parent=0 // loop_exit
    _

// kernel: backboned_forward.5
$region0: #{backboned_forward.5}
  #allocation0 [shape = 'u32[]', space=smem, size = 0x4, offset = 0x4, fixed_abs, tag = 'smem constant byte address 0x4 - core index']
  #allocation1 [shape = 'u32[144,128]{1,0:T(1,128)}', space=vmem, size = 0x12000, scoped, tag = 'internal scratch']
  %s0 = inlined_call_operand.vmem [shape: bf16[2,4,24,128], index: 0, kind: input, shape index: {}]
  %s1 = inlined_call_operand.vmem [shape: bf16[9,128,128], index: 1, kind: input, shape index: {}]
  %s2 = inlined_call_operand.vmem [shape: f32[1,128], index: 2, kind: input, shape index: {}]
  %s3 = inlined_call_operand.vmem [shape: bf16[2,16,128], index: 3, kind: output, shape index: {}]
  %s4 = sld [smem:[#allocation0]]
  $region45: #{backboned_forward.5} parent=0
    _
  %s6 = ssub.s32 1, %s4
  %s7 = scalar_select 0, %s6, %s4
  loop: start=0, step=1, limit=4
  $region2: #{backboned_forward.5} parent=0 // loop_pre_header
    _
  $region3: #{backboned_forward.5} parent=0 // loop_header
    %s9 = sphi 0, %s13
    %p10 = scmp.ge.s32.totalorder %s9, 4
    %s16 = sphi 0, %s28
    %s17 = sphi 0, %s24
    %s18 = sphi 0, %s16
    %s19 = sphi 0, %s17
    %s20 = sphi 0, %s18
    %s21 = sphi 0, %s19
    %s31 = sphi 0, %s33
    %s34 = sphi 0, %s31
    %s35 = sphi 0, %s34
    %s51 = sphi 0, %s35
    %s57 = sphi 0, %s59
    %s60 = sphi 0, %s57
    %s61 = sphi 0, %s60
    %s77 = sphi 0, %s61
    %s83 = sphi 0, %s85
    %s86 = sphi 0, %s83
    %s87 = sphi 0, %s86
    %s103 = sphi 0, %s87
    %s111 = sphi 0, %s113
    %s114 = sphi 0, %s111
    %s115 = sphi 0, %s114
    %s131 = sphi 0, %s115
  $region4: #{backboned_forward.5} parent=0 // loop_header_branch
    %12 = sbr.rel (%p10) target = $region8
  $region5: #{backboned_forward.5} parent=0 // loop_body
    %s14 = ssub.s32 %s9, 1
    %s15 = ssub.s32 %s9, 2
    %s22 = sadd.s32 1, %s17
    %p23 = scmp.ge.s32.totalorder %s22, 1
    %s24 = scalar_select %p23, 0, %s22
    %s25 = sadd.s32 1, %s16
    %s26 = scalar_select %p23, %s25, %s16
    %p27 = scmp.ge.s32.totalorder %s26, 2
    %s28 = scalar_select %p27, 0, %s26
    %s29 = ssub.s32 %s16, %s28
    %p30 = scmp.eq.s32.totalorder %s29, 0
    %s32 = sadd.s32 %s31, 1
    %s33 = scalar_select %p30, %s31, %s32
    %p36 = pneg %p30
    %p37 = scmp.eq.s32.totalorder %s9, 1
    %p38 = por %p36, %p37
    %p39 = scmp.ne.s32.totalorder %s31, %s34
    %p40 = scmp.eq.s32.totalorder %s9, 0
    %p41 = por %p39, %p40
    %p42 = scmp.ne.s32.totalorder %s31, %s34
    %p43 = scmp.eq.s32.totalorder %s14, 1
    %p44 = por %p42, %p43
    %p45 = scmp.ne.s32.totalorder %s34, %s35
    %p46 = scmp.eq.s32.totalorder %s14, 0
    %p47 = por %p45, %p46
    %p48 = scmp.ne.s32.totalorder %s34, %s35
    %p49 = scmp.eq.s32.totalorder %s15, 1
    %p50 = por %p48, %p49
    %p52 = scmp.ne.s32.totalorder %s35, %s51
    %p53 = scmp.eq.s32.totalorder %s15, 0
    %p54 = por %p52, %p53
    %s55 = ssub.s32 %s17, %s24
    %p56 = scmp.eq.s32.totalorder %s55, 0
    %s58 = sadd.s32 %s57, 1
    %s59 = scalar_select %p56, %s57, %s58
    %p62 = pneg %p56
    %p63 = scmp.eq.s32.totalorder %s9, 1
    %p64 = por %p62, %p63
    %p65 = scmp.ne.s32.totalorder %s57, %s60
    %p66 = scmp.eq.s32.totalorder %s9, 0
    %p67 = por %p65, %p66
    %p68 = scmp.ne.s32.totalorder %s57, %s60
    %p69 = scmp.eq.s32.totalorder %s14, 1
    %p70 = por %p68, %p69
    %p71 = scmp.ne.s32.totalorder %s60, %s61
    %p72 = scmp.eq.s32.totalorder %s14, 0
    %p73 = por %p71, %p72
    %p74 = scmp.ne.s32.totalorder %s60, %s61
    %p75 = scmp.eq.s32.totalorder %s15, 1
    %p76 = por %p74, %p75
    %p78 = scmp.ne.s32.totalorder %s61, %s77
    %p79 = scmp.eq.s32.totalorder %s15, 0
    %p80 = por %p78, %p79
    %s81 = ssub.s32 %s17, %s24
    %p82 = scmp.eq.s32.totalorder %s81, 0
    %s84 = sadd.s32 %s83, 1
    %s85 = scalar_select %p82, %s83, %s84
    %p88 = pneg %p82
    %p89 = scmp.eq.s32.totalorder %s9, 1
    %p90 = por %p88, %p89
    %p91 = scmp.ne.s32.totalorder %s83, %s86
    %p92 = scmp.eq.s32.totalorder %s9, 0
    %p93 = por %p91, %p92
    %p94 = scmp.ne.s32.totalorder %s83, %s86
    %p95 = scmp.eq.s32.totalorder %s14, 1
    %p96 = por %p94, %p95
    %p97 = scmp.ne.s32.totalorder %s86, %s87
    %p98 = scmp.eq.s32.totalorder %s14, 0
    %p99 = por %p97, %p98
    %p100 = scmp.ne.s32.totalorder %s86, %s87
    %p101 = scmp.eq.s32.totalorder %s15, 1
    %p102 = por %p100, %p101
    %p104 = scmp.ne.s32.totalorder %s87, %s103
    %p105 = scmp.eq.s32.totalorder %s15, 0
    %p106 = por %p104, %p105
    %s107 = ssub.s32 %s16, %s28
    %s108 = ssub.s32 %s17, %s24
    %s109 = sor.u32 %s107, %s108
    %p110 = scmp.eq.s32.totalorder %s109, 0
    %s112 = sadd.s32 %s111, 1
    %s113 = scalar_select %p110, %s111, %s112
    %p116 = pneg %p110
    %p117 = scmp.eq.s32.totalorder %s9, 1
    %p118 = por %p116, %p117
    %p119 = scmp.ne.s32.totalorder %s111, %s114
    %p120 = scmp.eq.s32.totalorder %s9, 0
    %p121 = por %p119, %p120
    %p122 = scmp.ne.s32.totalorder %s111, %s114
    %p123 = scmp.eq.s32.totalorder %s14, 1
    %p124 = por %p122, %p123
    %p125 = scmp.ne.s32.totalorder %s114, %s115
    %p126 = scmp.eq.s32.totalorder %s14, 0
    %p127 = por %p125, %p126
    %p128 = scmp.ne.s32.totalorder %s114, %s115
    %p129 = scmp.eq.s32.totalorder %s15, 1
    %p130 = por %p128, %p129
    %p132 = scmp.ne.s32.totalorder %s115, %s131
    %p133 = scmp.eq.s32.totalorder %s15, 0
    %p134 = por %p132, %p133
    %p135 = scmp.le.s32.totalorder 1, %s9
    %p136 = scmp.lt.s32.totalorder %s9, 3
    %p137 = pnand %p135, %p136
    %p138 = pneg %p137
    // Predicated region
    $region9: #{backboned_forward.5} parent=5 // pred_check
      _
    $region10: #{backboned_forward.5} parent=5 // pred_check_branch
      %140 = sbr.rel (%p137) target = $region12
    $region11: #{backboned_forward.5} parent=5 // pred_region
      %s141 = ssub.s32 %s9, 1
      // Predicated region
      $region13: #{backboned_forward.5} parent=11 // pred_check
        %p142 = pneg %p73
      $region14: #{backboned_forward.5} parent=11 // pred_check_branch
        %144 = sbr.rel (%p142) target = $region16
      $region15: #{backboned_forward.5} parent=11 // pred_region
        %p145 = scmp.lt.s32.totalorder %s19, 0
        %s146 = scalar_select %p145, %s19, 0
        %s147 = smul.addr %s146, 4
        %s148 = scalar_lea.vmem %s1, %s147
      $region16: #{backboned_forward.5} parent=11 // pred_fallthru
        _
      // Predicated region
      $region17: #{backboned_forward.5} parent=11 // pred_check
        %p149 = pneg %p99
      $region18: #{backboned_forward.5} parent=11 // pred_check_branch
        %151 = sbr.rel (%p149) target = $region20
      $region19: #{backboned_forward.5} parent=11 // pred_region
        %p152 = scmp.lt.s32.totalorder %s19, 0
        %s153 = scalar_select %p152, %s19, 0
        %s154 = scalar_lea.vmem %s2, %s153
      $region20: #{backboned_forward.5} parent=11 // pred_fallthru
        _
    $region12: #{backboned_forward.5} parent=5 // pred_fallthru
      _
    %p155 = scmp.lt.s32.totalorder %s9, 2
    // Predicated region
    $region21: #{backboned_forward.5} parent=5 // pred_check
      %p156 = pneg %p155
    $region22: #{backboned_forward.5} parent=5 // pred_check_branch
      %158 = sbr.rel (%p156) target = $region24
    $region23: #{backboned_forward.5} parent=5 // pred_region
      // Predicated region
      $region25: #{backboned_forward.5} parent=23 // pred_check
        %p159 = pneg %p41
      $region26: #{backboned_forward.5} parent=23 // pred_check_branch
        %161 = sbr.rel (%p159) target = $region28
      $region27: #{backboned_forward.5} parent=23 // pred_region
        %p162 = scmp.lt.s32.totalorder %s16, 1
        %s163 = scalar_select %p162, %s16, 1
        %s164 = smul.addr %s163, 12
        %s165 = smul.addr %s164, 4
        %s166 = scalar_lea.vmem %s0, %s165
      $region28: #{backboned_forward.5} parent=23 // pred_fallthru
        _
    $region24: #{backboned_forward.5} parent=5 // pred_fallthru
      _
    %p167 = scmp.le.s32.totalorder 1, %s9
    %p168 = scmp.lt.s32.totalorder %s9, 3
    %p169 = pnand %p167, %p168
    %p170 = pneg %p169
    // Predicated region
    $region29: #{backboned_forward.5} parent=5 // pred_check
      _
    $region30: #{backboned_forward.5} parent=5 // pred_check_branch
      %172 = sbr.rel (%p169) target = $region32
    $region31: #{backboned_forward.5} parent=5 // pred_region
      %s173 = ssub.s32 %s9, 1
      %p174 = scmp.lt.s32.totalorder %s18, 1
      %s175 = scalar_select %p174, %s18, 1
      %s176 = smul.addr %s175, 12
      %s177 = smul.addr %s176, 4
      %s178 = scalar_lea.vmem %s0, %s177
      %p179 = pneg %p47
      %p180 = pneg %p44
      %p181 = scmp.lt.s32.totalorder %s19, 0
      %s182 = scalar_select %p181, %s19, 0
      %s183 = smul.addr %s182, 4
      %s184 = scalar_lea.vmem %s1, %s183
      %p185 = pneg %p73
      %p186 = pneg %p70
      %p187 = scmp.lt.s32.totalorder %s19, 0
      %s188 = scalar_select %p187, %s19, 0
      %s189 = scalar_lea.vmem %s2, %s188
      %p190 = pneg %p99
      %p191 = pneg %p96
      %p192 = pneg %p127
      %p193 = pneg %p124
      %p194 = scmp.lt.s32.totalorder %s18, 1
      %s195 = scalar_select %p194, %s18, 1
      %p196 = scmp.lt.s32.totalorder %s19, 0
      %s197 = scalar_select %p196, %s19, 0
      %s198 = smul.addr %s195, 2
      %s199 = sadd.s32 %s197, %s198
      %s200 = smul.addr %s199, 4
      %s201 = scalar_lea.vmem %s3, %s200
      %p202 = scmp.lt.s32.totalorder %s18, 1
      %s203 = scalar_select %p202, %s18, 1
      %s204 = smul.addr %s203, 12
      %s205 = smul.addr %s204, 4
      %s206 = scalar_lea.vmem %s0, %s205
      %p207 = scmp.lt.s32.totalorder %s19, 0
      %s208 = scalar_select %p207, %s19, 0
      %s209 = smul.addr %s208, 4
      %s210 = scalar_lea.vmem %s1, %s209
      %p211 = scmp.lt.s32.totalorder %s19, 0
      %s212 = scalar_select %p211, %s19, 0
      %s213 = scalar_lea.vmem %s2, %s212
      %p214 = scmp.lt.s32.totalorder %s18, 1
      %s215 = scalar_select %p214, %s18, 1
      %p216 = scmp.lt.s32.totalorder %s19, 0
      %s217 = scalar_select %p216, %s19, 0
      %s218 = smul.addr %s215, 2
      %s219 = sadd.s32 %s217, %s218
      %s220 = smul.addr %s219, 4
      %s221 = scalar_lea.vmem %s3, %s220
      %v223 = vld [vmem:[%s206] sm:$0xf]
      %v224 = vld [vmem:[%s206 + $0x4] sm:$0xf]
      %v225 = vld [vmem:[%s210] sm:$0xf]
      %v226 = vld [vmem:[%s210 + $0x4] sm:$0xf]
      %v227 = vld [vmem:[%s210 + $0x8] sm:$0xf]
      %v228 = vld [vmem:[%s210 + $0xc] sm:$0xf]
      %v229 = vld [vmem:[%s210 + $0x10] sm:$0xf]
      %v230 = vld [vmem:[%s210 + $0x14] sm:$0xf]
      %v231 = vld [vmem:[%s210 + $0x18] sm:$0xf]
      %v232 = vld [vmem:[%s210 + $0x1c] sm:$0xf]
      %v233 = vld [vmem:[%s210 + $0x20] sm:$0xf]
      %v234 = vld [vmem:[%s210 + $0x24] sm:$0xf]
      %v235 = vld [vmem:[%s210 + $0x28] sm:$0xf]
      %v236 = vld [vmem:[%s210 + $0x2c] sm:$0xf]
      %v237 = vld [vmem:[%s210 + $0x30] sm:$0xf]
      %v238 = vld [vmem:[%s210 + $0x34] sm:$0xf]
      %v239 = vld [vmem:[%s210 + $0x38] sm:$0xf]
      %v240 = vld [vmem:[%s210 + $0x3c] sm:$0xf]
      %s241 = scalar_lea.vmem %s206, 12
      %v242 = vld [vmem:[%s241] sm:$0xf]
      %v243 = vld [vmem:[%s241 + $0x4] sm:$0xf]
      %s244 = scalar_lea.vmem %s210, 64
      %v245 = vld [vmem:[%s244] sm:$0xf]
      %v246 = vld [vmem:[%s244 + $0x4] sm:$0xf]
      %v247 = vld [vmem:[%s244 + $0x8] sm:$0xf]
      %v248 = vld [vmem:[%s244 + $0xc] sm:$0xf]
      %v249 = vld [vmem:[%s244 + $0x10] sm:$0xf]
      %v250 = vld [vmem:[%s244 + $0x14] sm:$0xf]
      %v251 = vld [vmem:[%s244 + $0x18] sm:$0xf]
      %v252 = vld [vmem:[%s244 + $0x1c] sm:$0xf]
      %v253 = vld [vmem:[%s244 + $0x20] sm:$0xf]
      %v254 = vld [vmem:[%s244 + $0x24] sm:$0xf]
      %v255 = vld [vmem:[%s244 + $0x28] sm:$0xf]
      %v256 = vld [vmem:[%s244 + $0x2c] sm:$0xf]
      %v257 = vld [vmem:[%s244 + $0x30] sm:$0xf]
      %v258 = vld [vmem:[%s244 + $0x34] sm:$0xf]
      %v259 = vld [vmem:[%s244 + $0x38] sm:$0xf]
      %v260 = vld [vmem:[%s244 + $0x3c] sm:$0xf]
      %v263 = vunpack.c.l.b16 %v242
      %v264 = vunpack.c.l.b16 %v243
      %v265 = vpack.c.b16 %v264, %v263
      %v283 = vunpack.c.l.b16 %v245
      %v284 = vunpack.c.l.b16 %v246
      %v285 = vunpack.c.l.b16 %v247
      %v286 = vunpack.c.l.b16 %v248
      %v287 = vunpack.c.l.b16 %v249
      %v288 = vunpack.c.l.b16 %v250
      %v289 = vunpack.c.l.b16 %v251
      %v290 = vunpack.c.l.b16 %v252
      %v291 = vunpack.c.l.b16 %v253
      %v292 = vunpack.c.l.b16 %v254
      %v293 = vunpack.c.l.b16 %v255
      %v294 = vunpack.c.l.b16 %v256
      %v295 = vunpack.c.l.b16 %v257
      %v296 = vunpack.c.l.b16 %v258
      %v297 = vunpack.c.l.b16 %v259
      %v298 = vunpack.c.l.b16 %v260
      %v299 = vpack.c.b16 %v284, %v283
      %v300 = vpack.c.b16 %v286, %v285
      %v301 = vpack.c.b16 %v288, %v287
      %v302 = vpack.c.b16 %v290, %v289
      %v303 = vpack.c.b16 %v292, %v291
      %v304 = vpack.c.b16 %v294, %v293
      %v305 = vpack.c.b16 %v296, %v295
      %v306 = vpack.c.b16 %v298, %v297
      %315 = vmatprep.subr.bf16.mxu0 0
      %316 = vmatpush1.bf16.msra.mxu0 %v299
      %317 = vmatprep.subr.bf16.mxu0 0
      %318 = vmatpush1.bf16.msra.mxu0 %v300
      %319 = vmatprep.subr.bf16.mxu0 0
      %320 = vmatpush1.bf16.msra.mxu0 %v301
      %321 = vmatprep.subr.bf16.mxu0 0
      %322 = vmatpush1.bf16.msra.mxu0 %v302
      %323 = vmatprep.subr.bf16.mxu0 0
      %324 = vmatpush1.bf16.msra.mxu0 %v303
      %325 = vmatprep.subr.bf16.mxu0 0
      %326 = vmatpush1.bf16.msra.mxu0 %v304
      %327 = vmatprep.subr.bf16.mxu0 0
      %328 = vmatpush1.bf16.msra.mxu0 %v305
      %329 = vmatprep.subr.bf16.mxu0 0
      %330 = vmatpush1.bf16.msra.mxu0 %v306
      %331 = vmatprep.subr.bf16.mxu0 0
      %332 = vmatpush1.bf16.msra.mxu0 0
      %333 = vmatprep.subr.bf16.mxu0 0
      %334 = vmatpush1.bf16.msra.mxu0 0
      %335 = vmatprep.subr.bf16.mxu0 0
      %336 = vmatpush1.bf16.msra.mxu0 0
      %337 = vmatprep.subr.bf16.mxu0 0
      %338 = vmatpush1.bf16.msra.mxu0 0
      %339 = vmatprep.subr.bf16.mxu0 0
      %340 = vmatpush1.bf16.msra.mxu0 0
      %341 = vmatprep.subr.bf16.mxu0 0
      %342 = vmatpush1.bf16.msra.mxu0 0
      %343 = vmatprep.subr.bf16.mxu0 0
      %344 = vmatpush1.bf16.msra.mxu0 0
      %345 = vmatprep.subr.bf16.mxu0 0
      %346 = vmatpush1.bf16.msra.mxu0 0
      %347 = vmatprep.mubr.bf16.mxu0 0
      %348 = vmatmul.mubr.bf16.gmra.mrb[0].mxu0 %v265
      %v349 = vpop.f32.mrb[0].mxu0
      %v350 = vadd.f32 0.0, %v349
      %v351 = vpop.f32.mrb[0].mxu0
      %v352 = vpop.f32.mrb[0].mxu0
      %v353 = vadd.f32 0.0, %v352
      %v354 = vpop.f32.mrb[0].mxu0
      %355 = vdwg.mxu0
      %v358 = vunpack.c.l.b16 %v223
      %v359 = vunpack.c.l.b16 %v224
      %v360 = vpack.c.b16 %v359, %v358
      %v378 = vunpack.c.l.b16 %v225
      %v379 = vunpack.c.l.b16 %v226
      %v380 = vunpack.c.l.b16 %v227
      %v381 = vunpack.c.l.b16 %v228
      %v382 = vunpack.c.l.b16 %v229
      %v383 = vunpack.c.l.b16 %v230
      %v384 = vunpack.c.l.b16 %v231
      %v385 = vunpack.c.l.b16 %v232
      %v386 = vunpack.c.l.b16 %v233
      %v387 = vunpack.c.l.b16 %v234
      %v388 = vunpack.c.l.b16 %v235
      %v389 = vunpack.c.l.b16 %v236
      %v390 = vunpack.c.l.b16 %v237
      %v391 = vunpack.c.l.b16 %v238
      %v392 = vunpack.c.l.b16 %v239
      %v393 = vunpack.c.l.b16 %v240
      %v394 = vpack.c.b16 %v379, %v378
      %v395 = vpack.c.b16 %v381, %v380
      %v396 = vpack.c.b16 %v383, %v382
      %v397 = vpack.c.b16 %v385, %v384
      %v398 = vpack.c.b16 %v387, %v386
      %v399 = vpack.c.b16 %v389, %v388
      %v400 = vpack.c.b16 %v391, %v390
      %v401 = vpack.c.b16 %v393, %v392
      %410 = vmatprep.subr.bf16.mxu0 0
      %411 = vmatpush1.bf16.msra.mxu0 %v394
      %412 = vmatprep.subr.bf16.mxu0 0
      %413 = vmatpush1.bf16.msra.mxu0 %v395
      %414 = vmatprep.subr.bf16.mxu0 0
      %415 = vmatpush1.bf16.msra.mxu0 %v396
      %416 = vmatprep.subr.bf16.mxu0 0
      %417 = vmatpush1.bf16.msra.mxu0 %v397
      %418 = vmatprep.subr.bf16.mxu0 0
      %419 = vmatpush1.bf16.msra.mxu0 %v398
      %420 = vmatprep.subr.bf16.mxu0 0
      %421 = vmatpush1.bf16.msra.mxu0 %v399
      %422 = vmatprep.subr.bf16.mxu0 0
      %423 = vmatpush1.bf16.msra.mxu0 %v400
      %424 = vmatprep.subr.bf16.mxu0 0
      %425 = vmatpush1.bf16.msra.mxu0 %v401
      %426 = vmatprep.subr.bf16.mxu0 0
      %427 = vmatpush1.bf16.msra.mxu0 0
      %428 = vmatprep.subr.bf16.mxu0 0
      %429 = vmatpush1.bf16.msra.mxu0 0
      %430 = vmatprep.subr.bf16.mxu0 0
      %431 = vmatpush1.bf16.msra.mxu0 0
      %432 = vmatprep.subr.bf16.mxu0 0
      %433 = vmatpush1.bf16.msra.mxu0 0
      %434 = vmatprep.subr.bf16.mxu0 0
      %435 = vmatpush1.bf16.msra.mxu0 0
      %436 = vmatprep.subr.bf16.mxu0 0
      %437 = vmatpush1.bf16.msra.mxu0 0
      %438 = vmatprep.subr.bf16.mxu0 0
      %439 = vmatpush1.bf16.msra.mxu0 0
      %440 = vmatprep.subr.bf16.mxu0 0
      %441 = vmatpush1.bf16.msra.mxu0 0
      %442 = vmatprep.mubr.bf16.mxu0 0
      %443 = vmatmul.mubr.bf16.gmra.mrb[0].mxu0 %v360
      %v444 = vpop.f32.mrb[0].mxu0
      %v445 = vadd.f32 %v350, %v444
      %v446 = vpop.f32.mrb[0].mxu0
      %v447 = vpop.f32.mrb[0].mxu0
      %v448 = vadd.f32 %v353, %v447
      %v449 = vpop.f32.mrb[0].mxu0
      %450 = vdwg.mxu0
      %v451 = vld [vmem:[%s206] sm:$0xf]
      %v452 = vld [vmem:[%s206 + $0x4] sm:$0xf]
      %v453 = vld [vmem:[%s206 + $0x8] sm:$0x1]
      %s454 = scalar_lea.vmem %s210, 128
      %v455 = vld [vmem:[%s454] sm:$0xf]
      %v456 = vld [vmem:[%s454 + $0x4] sm:$0xf]
      %v457 = vld [vmem:[%s454 + $0x8] sm:$0xf]
      %v458 = vld [vmem:[%s454 + $0xc] sm:$0xf]
      %v459 = vld [vmem:[%s454 + $0x10] sm:$0xf]
      %v460 = vld [vmem:[%s454 + $0x14] sm:$0xf]
      %v461 = vld [vmem:[%s454 + $0x18] sm:$0xf]
      %v462 = vld [vmem:[%s454 + $0x1c] sm:$0xf]
      %v463 = vld [vmem:[%s454 + $0x20] sm:$0xf]
      %v464 = vld [vmem:[%s454 + $0x24] sm:$0xf]
      %v465 = vld [vmem:[%s454 + $0x28] sm:$0xf]
      %v466 = vld [vmem:[%s454 + $0x2c] sm:$0xf]
      %v467 = vld [vmem:[%s454 + $0x30] sm:$0xf]
      %v468 = vld [vmem:[%s454 + $0x34] sm:$0xf]
      %v469 = vld [vmem:[%s454 + $0x38] sm:$0xf]
      %v470 = vld [vmem:[%s454 + $0x3c] sm:$0xf]
      %v474 = vunpack.c.l.b16 %v451
      %v475 = vunpack.c.l.b16 %v452
      %v476 = vunpack.c.l.b16 %v453
      %v477 = vpack.c.b16 %v475, %v474
      %v478 = vpack.c.b16 %v476, %v476
      %vm479 = vsmask.f32 7424
      %v481 = vshrl.u32 %v477, 16
      %v483 = vshll.u32 %v477, 16
      %v485 = vrot.slane %v483, 1
      %v486 = vor.u32 %v481, %v485
      %v488 = vshll.u32 %v478, 16
      %v490 = vrot.slane %v488, 1
      %v491 = vsel %vm479, %v486, %v490
      %v509 = vunpack.c.l.b16 %v455
      %v510 = vunpack.c.l.b16 %v456
      %v511 = vunpack.c.l.b16 %v457
      %v512 = vunpack.c.l.b16 %v458
      %v513 = vunpack.c.l.b16 %v459
      %v514 = vunpack.c.l.b16 %v460
      %v515 = vunpack.c.l.b16 %v461
      %v516 = vunpack.c.l.b16 %v462
      %v517 = vunpack.c.l.b16 %v463
      %v518 = vunpack.c.l.b16 %v464
      %v519 = vunpack.c.l.b16 %v465
      %v520 = vunpack.c.l.b16 %v466
      %v521 = vunpack.c.l.b16 %v467
      %v522 = vunpack.c.l.b16 %v468
      %v523 = vunpack.c.l.b16 %v469
      %v524 = vunpack.c.l.b16 %v470
      %v525 = vpack.c.b16 %v510, %v509
      %v526 = vpack.c.b16 %v512, %v511
      %v527 = vpack.c.b16 %v514, %v513
      %v528 = vpack.c.b16 %v516, %v515
      %v529 = vpack.c.b16 %v518, %v517
      %v530 = vpack.c.b16 %v520, %v519
      %v531 = vpack.c.b16 %v522, %v521
      %v532 = vpack.c.b16 %v524, %v523
      %541 = vmatprep.subr.bf16.mxu0 0
      %542 = vmatpush1.bf16.msra.mxu0 %v525
      %543 = vmatprep.subr.bf16.mxu0 0
      %544 = vmatpush1.bf16.msra.mxu0 %v526
      %545 = vmatprep.subr.bf16.mxu0 0
      %546 = vmatpush1.bf16.msra.mxu0 %v527
      %547 = vmatprep.subr.bf16.mxu0 0
      %548 = vmatpush1.bf16.msra.mxu0 %v528
      %549 = vmatprep.subr.bf16.mxu0 0
      %550 = vmatpush1.bf16.msra.mxu0 %v529
      %551 = vmatprep.subr.bf16.mxu0 0
      %552 = vmatpush1.bf16.msra.mxu0 %v530
      %553 = vmatprep.subr.bf16.mxu0 0
      %554 = vmatpush1.bf16.msra.mxu0 %v531
      %555 = vmatprep.subr.bf16.mxu0 0
      %556 = vmatpush1.bf16.msra.mxu0 %v532
      %557 = vmatprep.subr.bf16.mxu0 0
      %558 = vmatpush1.bf16.msra.mxu0 0
      %559 = vmatprep.subr.bf16.mxu0 0
      %560 = vmatpush1.bf16.msra.mxu0 0
      %561 = vmatprep.subr.bf16.mxu0 0
      %562 = vmatpush1.bf16.msra.mxu0 0
      %563 = vmatprep.subr.bf16.mxu0 0
      %564 = vmatpush1.bf16.msra.mxu0 0
      %565 = vmatprep.subr.bf16.mxu0 0
      %566 = vmatpush1.bf16.msra.mxu0 0
      %567 = vmatprep.subr.bf16.mxu0 0
      %568 = vmatpush1.bf16.msra.mxu0 0
      %569 = vmatprep.subr.bf16.mxu0 0
      %570 = vmatpush1.bf16.msra.mxu0 0
      %571 = vmatprep.subr.bf16.mxu0 0
      %572 = vmatpush1.bf16.msra.mxu0 0
      %573 = vmatprep.mubr.bf16.mxu0 0
      %574 = vmatmul.mubr.bf16.gmra.mrb[0].mxu0 %v491
      %v575 = vpop.f32.mrb[0].mxu0
      %v576 = vadd.f32 0.0, %v575
      %v577 = vpop.f32.mrb[0].mxu0
      %v578 = vpop.f32.mrb[0].mxu0
      %v579 = vadd.f32 0.0, %v578
      %v580 = vpop.f32.mrb[0].mxu0
      %581 = vdwg.mxu0
      %v582 = vadd.f32 %v445, %v576
      %v583 = vadd.f32 %v448, %v579
      %s584 = scalar_lea.vmem %s206, 24
      %v585 = vld [vmem:[%s584] sm:$0xf]
      %v586 = vld [vmem:[%s584 + $0x4] sm:$0xf]
      %s587 = scalar_lea.vmem %s210, 192
      %v588 = vld [vmem:[%s587] sm:$0xf]
      %v589 = vld [vmem:[%s587 + $0x4] sm:$0xf]
      %v590 = vld [vmem:[%s587 + $0x8] sm:$0xf]
      %v591 = vld [vmem:[%s587 + $0xc] sm:$0xf]
      %v592 = vld [vmem:[%s587 + $0x10] sm:$0xf]
      %v593 = vld [vmem:[%s587 + $0x14] sm:$0xf]
      %v594 = vld [vmem:[%s587 + $0x18] sm:$0xf]
      %v595 = vld [vmem:[%s587 + $0x1c] sm:$0xf]
      %v596 = vld [vmem:[%s587 + $0x20] sm:$0xf]
      %v597 = vld [vmem:[%s587 + $0x24] sm:$0xf]
      %v598 = vld [vmem:[%s587 + $0x28] sm:$0xf]
      %v599 = vld [vmem:[%s587 + $0x2c] sm:$0xf]
      %v600 = vld [vmem:[%s587 + $0x30] sm:$0xf]
      %v601 = vld [vmem:[%s587 + $0x34] sm:$0xf]
      %v602 = vld [vmem:[%s587 + $0x38] sm:$0xf]
      %v603 = vld [vmem:[%s587 + $0x3c] sm:$0xf]
      %v606 = vunpack.c.l.b16 %v585
      %v607 = vunpack.c.l.b16 %v586
      %v608 = vpack.c.b16 %v607, %v606
      %v626 = vunpack.c.l.b16 %v588
      %v627 = vunpack.c.l.b16 %v589
      %v628 = vunpack.c.l.b16 %v590
      %v629 = vunpack.c.l.b16 %v591
      %v630 = vunpack.c.l.b16 %v592
      %v631 = vunpack.c.l.b16 %v593
      %v632 = vunpack.c.l.b16 %v594
      %v633 = vunpack.c.l.b16 %v595
      %v634 = vunpack.c.l.b16 %v596
      %v635 = vunpack.c.l.b16 %v597
      %v636 = vunpack.c.l.b16 %v598
      %v637 = vunpack.c.l.b16 %v599
      %v638 = vunpack.c.l.b16 %v600
      %v639 = vunpack.c.l.b16 %v601
      %v640 = vunpack.c.l.b16 %v602
      %v641 = vunpack.c.l.b16 %v603
      %v642 = vpack.c.b16 %v627, %v626
      %v643 = vpack.c.b16 %v629, %v628
      %v644 = vpack.c.b16 %v631, %v630
      %v645 = vpack.c.b16 %v633, %v632
      %v646 = vpack.c.b16 %v635, %v634
      %v647 = vpack.c.b16 %v637, %v636
      %v648 = vpack.c.b16 %v639, %v638
      %v649 = vpack.c.b16 %v641, %v640
      %658 = vmatprep.subr.bf16.mxu0 0
      %659 = vmatpush1.bf16.msra.mxu0 %v642
      %660 = vmatprep.subr.bf16.mxu0 0
      %661 = vmatpush1.bf16.msra.mxu0 %v643
      %662 = vmatprep.subr.bf16.mxu0 0
      %663 = vmatpush1.bf16.msra.mxu0 %v644
      %664 = vmatprep.subr.bf16.mxu0 0
      %665 = vmatpush1.bf16.msra.mxu0 %v645
      %666 = vmatprep.subr.bf16.mxu0 0
      %667 = vmatpush1.bf16.msra.mxu0 %v646
      %668 = vmatprep.subr.bf16.mxu0 0
      %669 = vmatpush1.bf16.msra.mxu0 %v647
      %670 = vmatprep.subr.bf16.mxu0 0
      %671 = vmatpush1.bf16.msra.mxu0 %v648
      %672 = vmatprep.subr.bf16.mxu0 0
      %673 = vmatpush1.bf16.msra.mxu0 %v649
      %674 = vmatprep.subr.bf16.mxu0 0
      %675 = vmatpush1.bf16.msra.mxu0 0
      %676 = vmatprep.subr.bf16.mxu0 0
      %677 = vmatpush1.bf16.msra.mxu0 0
      %678 = vmatprep.subr.bf16.mxu0 0
      %679 = vmatpush1.bf16.msra.mxu0 0
      %680 = vmatprep.subr.bf16.mxu0 0
      %681 = vmatpush1.bf16.msra.mxu0 0
      %682 = vmatprep.subr.bf16.mxu0 0
      %683 = vmatpush1.bf16.msra.mxu0 0
      %684 = vmatprep.subr.bf16.mxu0 0
      %685 = vmatpush1.bf16.msra.mxu0 0
      %686 = vmatprep.subr.bf16.mxu0 0
      %687 = vmatpush1.bf16.msra.mxu0 0
      %688 = vmatprep.subr.bf16.mxu0 0
      %689 = vmatpush1.bf16.msra.mxu0 0
      %690 = vmatprep.mubr.bf16.mxu0 0
      %691 = vmatmul.mubr.bf16.gmra.mrb[0].mxu0 %v608
      %v692 = vpop.f32.mrb[0].mxu0
      %v693 = vadd.f32 0.0, %v692
      %v694 = vpop.f32.mrb[0].mxu0
      %v695 = vpop.f32.mrb[0].mxu0
      %v696 = vadd.f32 0.0, %v695
      %v697 = vpop.f32.mrb[0].mxu0
      %698 = vdwg.mxu0
      %v699 = vadd.f32 %v582, %v693
      %v700 = vadd.f32 %v583, %v696
      %s701 = scalar_lea.vmem %s206, 36
      %v702 = vld [vmem:[%s701] sm:$0xf]
      %v703 = vld [vmem:[%s701 + $0x4] sm:$0xf]
      %s704 = scalar_lea.vmem %s210, 256
      %v705 = vld [vmem:[%s704] sm:$0xf]
      %v706 = vld [vmem:[%s704 + $0x4] sm:$0xf]
      %v707 = vld [vmem:[%s704 + $0x8] sm:$0xf]
      %v708 = vld [vmem:[%s704 + $0xc] sm:$0xf]
      %v709 = vld [vmem:[%s704 + $0x10] sm:$0xf]
      %v710 = vld [vmem:[%s704 + $0x14] sm:$0xf]
      %v711 = vld [vmem:[%s704 + $0x18] sm:$0xf]
      %v712 = vld [vmem:[%s704 + $0x1c] sm:$0xf]
      %v713 = vld [vmem:[%s704 + $0x20] sm:$0xf]
      %v714 = vld [vmem:[%s704 + $0x24] sm:$0xf]
      %v715 = vld [vmem:[%s704 + $0x28] sm:$0xf]
      %v716 = vld [vmem:[%s704 + $0x2c] sm:$0xf]
      %v717 = vld [vmem:[%s704 + $0x30] sm:$0xf]
      %v718 = vld [vmem:[%s704 + $0x34] sm:$0xf]
      %v719 = vld [vmem:[%s704 + $0x38] sm:$0xf]
      %v720 = vld [vmem:[%s704 + $0x3c] sm:$0xf]
      %v723 = vunpack.c.l.b16 %v702
      %v724 = vunpack.c.l.b16 %v703
      %v725 = vpack.c.b16 %v724, %v723
      %v743 = vunpack.c.l.b16 %v705
      %v744 = vunpack.c.l.b16 %v706
      %v745 = vunpack.c.l.b16 %v707
      %v746 = vunpack.c.l.b16 %v708
      %v747 = vunpack.c.l.b16 %v709
      %v748 = vunpack.c.l.b16 %v710
      %v749 = vunpack.c.l.b16 %v711
      %v750 = vunpack.c.l.b16 %v712
      %v751 = vunpack.c.l.b16 %v713
      %v752 = vunpack.c.l.b16 %v714
      %v753 = vunpack.c.l.b16 %v715
      %v754 = vunpack.c.l.b16 %v716
      %v755 = vunpack.c.l.b16 %v717
      %v756 = vunpack.c.l.b16 %v718
      %v757 = vunpack.c.l.b16 %v719
      %v758 = vunpack.c.l.b16 %v720
      %v759 = vpack.c.b16 %v744, %v743
      %v760 = vpack.c.b16 %v746, %v745
      %v761 = vpack.c.b16 %v748, %v747
      %v762 = vpack.c.b16 %v750, %v749
      %v763 = vpack.c.b16 %v752, %v751
      %v764 = vpack.c.b16 %v754, %v753
      %v765 = vpack.c.b16 %v756, %v755
      %v766 = vpack.c.b16 %v758, %v757
      %775 = vmatprep.subr.bf16.mxu0 0
      %776 = vmatpush1.bf16.msra.mxu0 %v759
      %777 = vmatprep.subr.bf16.mxu0 0
      %778 = vmatpush1.bf16.msra.mxu0 %v760
      %779 = vmatprep.subr.bf16.mxu0 0
      %780 = vmatpush1.bf16.msra.mxu0 %v761
      %781 = vmatprep.subr.bf16.mxu0 0
      %782 = vmatpush1.bf16.msra.mxu0 %v762
      %783 = vmatprep.subr.bf16.mxu0 0
      %784 = vmatpush1.bf16.msra.mxu0 %v763
      %785 = vmatprep.subr.bf16.mxu0 0
      %786 = vmatpush1.bf16.msra.mxu0 %v764
      %787 = vmatprep.subr.bf16.mxu0 0
      %788 = vmatpush1.bf16.msra.mxu0 %v765
      %789 = vmatprep.subr.bf16.mxu0 0
      %790 = vmatpush1.bf16.msra.mxu0 %v766
      %791 = vmatprep.subr.bf16.mxu0 0
      %792 = vmatpush1.bf16.msra.mxu0 0
      %793 = vmatprep.subr.bf16.mxu0 0
      %794 = vmatpush1.bf16.msra.mxu0 0
      %795 = vmatprep.subr.bf16.mxu0 0
      %796 = vmatpush1.bf16.msra.mxu0 0
      %797 = vmatprep.subr.bf16.mxu0 0
      %798 = vmatpush1.bf16.msra.mxu0 0
      %799 = vmatprep.subr.bf16.mxu0 0
      %800 = vmatpush1.bf16.msra.mxu0 0
      %801 = vmatprep.subr.bf16.mxu0 0
      %802 = vmatpush1.bf16.msra.mxu0 0
      %803 = vmatprep.subr.bf16.mxu0 0
      %804 = vmatpush1.bf16.msra.mxu0 0
      %805 = vmatprep.subr.bf16.mxu0 0
      %806 = vmatpush1.bf16.msra.mxu0 0
      %807 = vmatprep.mubr.bf16.mxu0 0
      %808 = vmatmul.mubr.bf16.gmra.mrb[0].mxu0 %v725
      %v809 = vpop.f32.mrb[0].mxu0
      %v810 = vadd.f32 0.0, %v809
      %v811 = vpop.f32.mrb[0].mxu0
      %v812 = vpop.f32.mrb[0].mxu0
      %v813 = vadd.f32 0.0, %v812
      %v814 = vpop.f32.mrb[0].mxu0
      %815 = vdwg.mxu0
      %v816 = vadd.f32 %v699, %v810
      %v817 = vadd.f32 %v700, %v813
      %v818 = vld [vmem:[%s584] sm:$0xf]
      %v819 = vld [vmem:[%s584 + $0x4] sm:$0xf]
      %v820 = vld [vmem:[%s584 + $0x8] sm:$0x1]
      %s821 = scalar_lea.vmem %s210, 320
      %v822 = vld [vmem:[%s821] sm:$0xf]
      %v823 = vld [vmem:[%s821 + $0x4] sm:$0xf]
      %v824 = vld [vmem:[%s821 + $0x8] sm:$0xf]
      %v825 = vld [vmem:[%s821 + $0xc] sm:$0xf]
      %v826 = vld [vmem:[%s821 + $0x10] sm:$0xf]
      %v827 = vld [vmem:[%s821 + $0x14] sm:$0xf]
      %v828 = vld [vmem:[%s821 + $0x18] sm:$0xf]
      %v829 = vld [vmem:[%s821 + $0x1c] sm:$0xf]
      %v830 = vld [vmem:[%s821 + $0x20] sm:$0xf]
      %v831 = vld [vmem:[%s821 + $0x24] sm:$0xf]
      %v832 = vld [vmem:[%s821 + $0x28] sm:$0xf]
      %v833 = vld [vmem:[%s821 + $0x2c] sm:$0xf]
      %v834 = vld [vmem:[%s821 + $0x30] sm:$0xf]
      %v835 = vld [vmem:[%s821 + $0x34] sm:$0xf]
      %v836 = vld [vmem:[%s821 + $0x38] sm:$0xf]
      %v837 = vld [vmem:[%s821 + $0x3c] sm:$0xf]
      %v841 = vunpack.c.l.b16 %v818
      %v842 = vunpack.c.l.b16 %v819
      %v843 = vunpack.c.l.b16 %v820
      %v844 = vpack.c.b16 %v842, %v841
      %v845 = vpack.c.b16 %v843, %v843
      %v847 = vshrl.u32 %v844, 16
      %v849 = vshll.u32 %v844, 16
      %v851 = vrot.slane %v849, 1
      %v852 = vor.u32 %v847, %v851
      %v854 = vshll.u32 %v845, 16
      %v856 = vrot.slane %v854, 1
      %v857 = vsel %vm479, %v852, %v856
      %v875 = vunpack.c.l.b16 %v822
      %v876 = vunpack.c.l.b16 %v823
      %v877 = vunpack.c.l.b16 %v824
      %v878 = vunpack.c.l.b16 %v825
      %v879 = vunpack.c.l.b16 %v826
      %v880 = vunpack.c.l.b16 %v827
      %v881 = vunpack.c.l.b16 %v828
      %v882 = vunpack.c.l.b16 %v829
      %v883 = vunpack.c.l.b16 %v830
      %v884 = vunpack.c.l.b16 %v831
      %v885 = vunpack.c.l.b16 %v832
      %v886 = vunpack.c.l.b16 %v833
      %v887 = vunpack.c.l.b16 %v834
      %v888 = vunpack.c.l.b16 %v835
      %v889 = vunpack.c.l.b16 %v836
      %v890 = vunpack.c.l.b16 %v837
      %v891 = vpack.c.b16 %v876, %v875
      %v892 = vpack.c.b16 %v878, %v877
      %v893 = vpack.c.b16 %v880, %v879
      %v894 = vpack.c.b16 %v882, %v881
      %v895 = vpack.c.b16 %v884, %v883
      %v896 = vpack.c.b16 %v886, %v885
      %v897 = vpack.c.b16 %v888, %v887
      %v898 = vpack.c.b16 %v890, %v889
      %907 = vmatprep.subr.bf16.mxu0 0
      %908 = vmatpush1.bf16.msra.mxu0 %v891
      %909 = vmatprep.subr.bf16.mxu0 0
      %910 = vmatpush1.bf16.msra.mxu0 %v892
      %911 = vmatprep.subr.bf16.mxu0 0
      %912 = vmatpush1.bf16.msra.mxu0 %v893
      %913 = vmatprep.subr.bf16.mxu0 0
      %914 = vmatpush1.bf16.msra.mxu0 %v894
      %915 = vmatprep.subr.bf16.mxu0 0
      %916 = vmatpush1.bf16.msra.mxu0 %v895
      %917 = vmatprep.subr.bf16.mxu0 0
      %918 = vmatpush1.bf16.msra.mxu0 %v896
      %919 = vmatprep.subr.bf16.mxu0 0
      %920 = vmatpush1.bf16.msra.mxu0 %v897
      %921 = vmatprep.subr.bf16.mxu0 0
      %922 = vmatpush1.bf16.msra.mxu0 %v898
      %923 = vmatprep.subr.bf16.mxu0 0
      %924 = vmatpush1.bf16.msra.mxu0 0
      %925 = vmatprep.subr.bf16.mxu0 0
      %926 = vmatpush1.bf16.msra.mxu0 0
      %927 = vmatprep.subr.bf16.mxu0 0
      %928 = vmatpush1.bf16.msra.mxu0 0
      %929 = vmatprep.subr.bf16.mxu0 0
      %930 = vmatpush1.bf16.msra.mxu0 0
      %931 = vmatprep.subr.bf16.mxu0 0
      %932 = vmatpush1.bf16.msra.mxu0 0
      %933 = vmatprep.subr.bf16.mxu0 0
      %934 = vmatpush1.bf16.msra.mxu0 0
      %935 = vmatprep.subr.bf16.mxu0 0
      %936 = vmatpush1.bf16.msra.mxu0 0
      %937 = vmatprep.subr.bf16.mxu0 0
      %938 = vmatpush1.bf16.msra.mxu0 0
      %939 = vmatprep.mubr.bf16.mxu0 0
      %940 = vmatmul.mubr.bf16.gmra.mrb[0].mxu0 %v857
      %v941 = vpop.f32.mrb[0].mxu0
      %v942 = vadd.f32 0.0, %v941
      %v943 = vpop.f32.mrb[0].mxu0
      %v944 = vpop.f32.mrb[0].mxu0
      %v945 = vadd.f32 0.0, %v944
      %v946 = vpop.f32.mrb[0].mxu0
      %947 = vdwg.mxu0
      %v948 = vadd.f32 %v816, %v942
      %v949 = vadd.f32 %v817, %v945
      %v950 = vld [vmem:[%s206] sm:$0xe]
      %v951 = vld [vmem:[%s206 + $0x8] sm:$0x3]
      %s952 = scalar_lea.vmem %s210, 384
      %v953 = vld [vmem:[%s952] sm:$0xf]
      %v954 = vld [vmem:[%s952 + $0x4] sm:$0xf]
      %v955 = vld [vmem:[%s952 + $0x8] sm:$0xf]
      %v956 = vld [vmem:[%s952 + $0xc] sm:$0xf]
      %v957 = vld [vmem:[%s952 + $0x10] sm:$0xf]
      %v958 = vld [vmem:[%s952 + $0x14] sm:$0xf]
      %v959 = vld [vmem:[%s952 + $0x18] sm:$0xf]
      %v960 = vld [vmem:[%s952 + $0x1c] sm:$0xf]
      %v961 = vld [vmem:[%s952 + $0x20] sm:$0xf]
      %v962 = vld [vmem:[%s952 + $0x24] sm:$0xf]
      %v963 = vld [vmem:[%s952 + $0x28] sm:$0xf]
      %v964 = vld [vmem:[%s952 + $0x2c] sm:$0xf]
      %v965 = vld [vmem:[%s952 + $0x30] sm:$0xf]
      %v966 = vld [vmem:[%s952 + $0x34] sm:$0xf]
      %v967 = vld [vmem:[%s952 + $0x38] sm:$0xf]
      %v968 = vld [vmem:[%s952 + $0x3c] sm:$0xf]
      %v971 = vunpack.c.l.b16 %v950
      %v972 = vunpack.c.l.b16 %v951
      %v973 = vpack.c.b16 %v475, %v971
      %v974 = vpack.c.b16 %v972, %v972
      %vm975 = vsmask.f32 6400
      %v977 = vshrl.u32 %v973, 16
      %v979 = vrot.slane %v977, 1
      %v980 = vshll.u32 %v973, 16
      %v982 = vrot.slane %v980, 2
      %v983 = vor.u32 %v979, %v982
      %v985 = vshrl.u32 %v974, 16
      %v987 = vrot.slane %v985, 1
      %v988 = vshll.u32 %v974, 16
      %v990 = vrot.slane %v988, 2
      %v991 = vor.u32 %v987, %v990
      %v992 = vsel %vm975, %v983, %v991
      %v1010 = vunpack.c.l.b16 %v953
      %v1011 = vunpack.c.l.b16 %v954
      %v1012 = vunpack.c.l.b16 %v955
      %v1013 = vunpack.c.l.b16 %v956
      %v1014 = vunpack.c.l.b16 %v957
      %v1015 = vunpack.c.l.b16 %v958
      %v1016 = vunpack.c.l.b16 %v959
      %v1017 = vunpack.c.l.b16 %v960
      %v1018 = vunpack.c.l.b16 %v961
      %v1019 = vunpack.c.l.b16 %v962
      %v1020 = vunpack.c.l.b16 %v963
      %v1021 = vunpack.c.l.b16 %v964
      %v1022 = vunpack.c.l.b16 %v965
      %v1023 = vunpack.c.l.b16 %v966
      %v1024 = vunpack.c.l.b16 %v967
      %v1025 = vunpack.c.l.b16 %v968
      %v1026 = vpack.c.b16 %v1011, %v1010
      %v1027 = vpack.c.b16 %v1013, %v1012
      %v1028 = vpack.c.b16 %v1015, %v1014
      %v1029 = vpack.c.b16 %v1017, %v1016
      %v1030 = vpack.c.b16 %v1019, %v1018
      %v1031 = vpack.c.b16 %v1021, %v1020
      %v1032 = vpack.c.b16 %v1023, %v1022
      %v1033 = vpack.c.b16 %v1025, %v1024
      %1042 = vmatprep.subr.bf16.mxu0 0
      %1043 = vmatpush1.bf16.msra.mxu0 %v1026
      %1044 = vmatprep.subr.bf16.mxu0 0
      %1045 = vmatpush1.bf16.msra.mxu0 %v1027
      %1046 = vmatprep.subr.bf16.mxu0 0
      %1047 = vmatpush1.bf16.msra.mxu0 %v1028
      %1048 = vmatprep.subr.bf16.mxu0 0
      %1049 = vmatpush1.bf16.msra.mxu0 %v1029
      %1050 = vmatprep.subr.bf16.mxu0 0
      %1051 = vmatpush1.bf16.msra.mxu0 %v1030
      %1052 = vmatprep.subr.bf16.mxu0 0
      %1053 = vmatpush1.bf16.msra.mxu0 %v1031
      %1054 = vmatprep.subr.bf16.mxu0 0
      %1055 = vmatpush1.bf16.msra.mxu0 %v1032
      %1056 = vmatprep.subr.bf16.mxu0 0
      %1057 = vmatpush1.bf16.msra.mxu0 %v1033
      %1058 = vmatprep.subr.bf16.mxu0 0
      %1059 = vmatpush1.bf16.msra.mxu0 0
      %1060 = vmatprep.subr.bf16.mxu0 0
      %1061 = vmatpush1.bf16.msra.mxu0 0
      %1062 = vmatprep.subr.bf16.mxu0 0
      %1063 = vmatpush1.bf16.msra.mxu0 0
      %1064 = vmatprep.subr.bf16.mxu0 0
      %1065 = vmatpush1.bf16.msra.mxu0 0
      %1066 = vmatprep.subr.bf16.mxu0 0
      %1067 = vmatpush1.bf16.msra.mxu0 0
      %1068 = vmatprep.subr.bf16.mxu0 0
      %1069 = vmatpush1.bf16.msra.mxu0 0
      %1070 = vmatprep.subr.bf16.mxu0 0
      %1071 = vmatpush1.bf16.msra.mxu0 0
      %1072 = vmatprep.subr.bf16.mxu0 0
      %1073 = vmatpush1.bf16.msra.mxu0 0
      %1074 = vmatprep.mubr.bf16.mxu0 0
      %1075 = vmatmul.mubr.bf16.gmra.mrb[0].mxu0 %v992
      %v1076 = vpop.f32.mrb[0].mxu0
      %v1077 = vadd.f32 0.0, %v1076
      %v1078 = vpop.f32.mrb[0].mxu0
      %v1079 = vpop.f32.mrb[0].mxu0
      %v1080 = vadd.f32 0.0, %v1079
      %v1081 = vpop.f32.mrb[0].mxu0
      %1082 = vdwg.mxu0
      %v1083 = vadd.f32 %v948, %v1077
      %v1084 = vadd.f32 %v949, %v1080
      %v1085 = vld [vmem:[%s241] sm:$0xe]
      %v1086 = vld [vmem:[%s241 + $0x4] sm:$0xf]
      %v1087 = vld [vmem:[%s241 + $0x8] sm:$0x3]
      %s1088 = scalar_lea.vmem %s210, 448
      %v1089 = vld [vmem:[%s1088] sm:$0xf]
      %v1090 = vld [vmem:[%s1088 + $0x4] sm:$0xf]
      %v1091 = vld [vmem:[%s1088 + $0x8] sm:$0xf]
      %v1092 = vld [vmem:[%s1088 + $0xc] sm:$0xf]
      %v1093 = vld [vmem:[%s1088 + $0x10] sm:$0xf]
      %v1094 = vld [vmem:[%s1088 + $0x14] sm:$0xf]
      %v1095 = vld [vmem:[%s1088 + $0x18] sm:$0xf]
      %v1096 = vld [vmem:[%s1088 + $0x1c] sm:$0xf]
      %v1097 = vld [vmem:[%s1088 + $0x20] sm:$0xf]
      %v1098 = vld [vmem:[%s1088 + $0x24] sm:$0xf]
      %v1099 = vld [vmem:[%s1088 + $0x28] sm:$0xf]
      %v1100 = vld [vmem:[%s1088 + $0x2c] sm:$0xf]
      %v1101 = vld [vmem:[%s1088 + $0x30] sm:$0xf]
      %v1102 = vld [vmem:[%s1088 + $0x34] sm:$0xf]
      %v1103 = vld [vmem:[%s1088 + $0x38] sm:$0xf]
      %v1104 = vld [vmem:[%s1088 + $0x3c] sm:$0xf]
      %v1108 = vunpack.c.l.b16 %v1085
      %v1109 = vunpack.c.l.b16 %v1086
      %v1110 = vunpack.c.l.b16 %v1087
      %v1111 = vpack.c.b16 %v1109, %v1108
      %v1112 = vpack.c.b16 %v1110, %v1110
      %v1114 = vshrl.u32 %v1111, 16
      %v1116 = vrot.slane %v1114, 1
      %v1117 = vshll.u32 %v1111, 16
      %v1119 = vrot.slane %v1117, 2
      %v1120 = vor.u32 %v1116, %v1119
      %v1122 = vshrl.u32 %v1112, 16
      %v1124 = vrot.slane %v1122, 1
      %v1125 = vshll.u32 %v1112, 16
      %v1127 = vrot.slane %v1125, 2
      %v1128 = vor.u32 %v1124, %v1127
      %v1129 = vsel %vm975, %v1120, %v1128
      %v1147 = vunpack.c.l.b16 %v1089
      %v1148 = vunpack.c.l.b16 %v1090
      %v1149 = vunpack.c.l.b16 %v1091
      %v1150 = vunpack.c.l.b16 %v1092
      %v1151 = vunpack.c.l.b16 %v1093
      %v1152 = vunpack.c.l.b16 %v1094
      %v1153 = vunpack.c.l.b16 %v1095
      %v1154 = vunpack.c.l.b16 %v1096
      %v1155 = vunpack.c.l.b16 %v1097
      %v1156 = vunpack.c.l.b16 %v1098
      %v1157 = vunpack.c.l.b16 %v1099
      %v1158 = vunpack.c.l.b16 %v1100
      %v1159 = vunpack.c.l.b16 %v1101
      %v1160 = vunpack.c.l.b16 %v1102
      %v1161 = vunpack.c.l.b16 %v1103
      %v1162 = vunpack.c.l.b16 %v1104
      %v1163 = vpack.c.b16 %v1148, %v1147
      %v1164 = vpack.c.b16 %v1150, %v1149
      %v1165 = vpack.c.b16 %v1152, %v1151
      %v1166 = vpack.c.b16 %v1154, %v1153
      %v1167 = vpack.c.b16 %v1156, %v1155
      %v1168 = vpack.c.b16 %v1158, %v1157
      %v1169 = vpack.c.b16 %v1160, %v1159
      %v1170 = vpack.c.b16 %v1162, %v1161
      %1179 = vmatprep.subr.bf16.mxu0 0
      %1180 = vmatpush1.bf16.msra.mxu0 %v1163
      %1181 = vmatprep.subr.bf16.mxu0 0
      %1182 = vmatpush1.bf16.msra.mxu0 %v1164
      %1183 = vmatprep.subr.bf16.mxu0 0
      %1184 = vmatpush1.bf16.msra.mxu0 %v1165
      %1185 = vmatprep.subr.bf16.mxu0 0
      %1186 = vmatpush1.bf16.msra.mxu0 %v1166
      %1187 = vmatprep.subr.bf16.mxu0 0
      %1188 = vmatpush1.bf16.msra.mxu0 %v1167
      %1189 = vmatprep.subr.bf16.mxu0 0
      %1190 = vmatpush1.bf16.msra.mxu0 %v1168
      %1191 = vmatprep.subr.bf16.mxu0 0
      %1192 = vmatpush1.bf16.msra.mxu0 %v1169
      %1193 = vmatprep.subr.bf16.mxu0 0
      %1194 = vmatpush1.bf16.msra.mxu0 %v1170
      %1195 = vmatprep.subr.bf16.mxu0 0
      %1196 = vmatpush1.bf16.msra.mxu0 0
      %1197 = vmatprep.subr.bf16.mxu0 0
      %1198 = vmatpush1.bf16.msra.mxu0 0
      %1199 = vmatprep.subr.bf16.mxu0 0
      %1200 = vmatpush1.bf16.msra.mxu0 0
      %1201 = vmatprep.subr.bf16.mxu0 0
      %1202 = vmatpush1.bf16.msra.mxu0 0
      %1203 = vmatprep.subr.bf16.mxu0 0
      %1204 = vmatpush1.bf16.msra.mxu0 0
      %1205 = vmatprep.subr.bf16.mxu0 0
      %1206 = vmatpush1.bf16.msra.mxu0 0
      %1207 = vmatprep.subr.bf16.mxu0 0
      %1208 = vmatpush1.bf16.msra.mxu0 0
      %1209 = vmatprep.subr.bf16.mxu0 0
      %1210 = vmatpush1.bf16.msra.mxu0 0
      %1211 = vmatprep.mubr.bf16.mxu0 0
      %1212 = vmatmul.mubr.bf16.gmra.mrb[0].mxu0 %v1129
      %v1213 = vpop.f32.mrb[0].mxu0
      %v1214 = vadd.f32 0.0, %v1213
      %v1215 = vpop.f32.mrb[0].mxu0
      %v1216 = vpop.f32.mrb[0].mxu0
      %v1217 = vadd.f32 0.0, %v1216
      %v1218 = vpop.f32.mrb[0].mxu0
      %1219 = vdwg.mxu0
      %v1220 = vadd.f32 %v1083, %v1214
      %v1221 = vadd.f32 %v1084, %v1217
      %v1222 = vld [vmem:[%s206] sm:$0xc]
      %s1223 = scalar_lea.vmem %s210, 512
      %v1224 = vld [vmem:[%s1223] sm:$0xf]
      %v1225 = vld [vmem:[%s1223 + $0x4] sm:$0xf]
      %v1226 = vld [vmem:[%s1223 + $0x8] sm:$0xf]
      %v1227 = vld [vmem:[%s1223 + $0xc] sm:$0xf]
      %v1228 = vld [vmem:[%s1223 + $0x10] sm:$0xf]
      %v1229 = vld [vmem:[%s1223 + $0x14] sm:$0xf]
      %v1230 = vld [vmem:[%s1223 + $0x18] sm:$0xf]
      %v1231 = vld [vmem:[%s1223 + $0x1c] sm:$0xf]
      %v1232 = vld [vmem:[%s1223 + $0x20] sm:$0xf]
      %v1233 = vld [vmem:[%s1223 + $0x24] sm:$0xf]
      %v1234 = vld [vmem:[%s1223 + $0x28] sm:$0xf]
      %v1235 = vld [vmem:[%s1223 + $0x2c] sm:$0xf]
      %v1236 = vld [vmem:[%s1223 + $0x30] sm:$0xf]
      %v1237 = vld [vmem:[%s1223 + $0x34] sm:$0xf]
      %v1238 = vld [vmem:[%s1223 + $0x38] sm:$0xf]
      %v1239 = vld [vmem:[%s1223 + $0x3c] sm:$0xf]
      %v1241 = vunpack.c.l.b16 %v1222
      %v1242 = vpack.c.b16 %v475, %v1241
      %vm1243 = vcmask 1045504
      %v1244 = vrot.slane %v1242, 2
      %v1245 = vrot.slane %v974, 2
      %v1246 = vsel %vm1243, %v1244, %v1245
      %v1264 = vunpack.c.l.b16 %v1224
      %v1265 = vunpack.c.l.b16 %v1225
      %v1266 = vunpack.c.l.b16 %v1226
      %v1267 = vunpack.c.l.b16 %v1227
      %v1268 = vunpack.c.l.b16 %v1228
      %v1269 = vunpack.c.l.b16 %v1229
      %v1270 = vunpack.c.l.b16 %v1230
      %v1271 = vunpack.c.l.b16 %v1231
      %v1272 = vunpack.c.l.b16 %v1232
      %v1273 = vunpack.c.l.b16 %v1233
      %v1274 = vunpack.c.l.b16 %v1234
      %v1275 = vunpack.c.l.b16 %v1235
      %v1276 = vunpack.c.l.b16 %v1236
      %v1277 = vunpack.c.l.b16 %v1237
      %v1278 = vunpack.c.l.b16 %v1238
      %v1279 = vunpack.c.l.b16 %v1239
      %v1280 = vpack.c.b16 %v1265, %v1264
      %v1281 = vpack.c.b16 %v1267, %v1266
      %v1282 = vpack.c.b16 %v1269, %v1268
      %v1283 = vpack.c.b16 %v1271, %v1270
      %v1284 = vpack.c.b16 %v1273, %v1272
      %v1285 = vpack.c.b16 %v1275, %v1274
      %v1286 = vpack.c.b16 %v1277, %v1276
      %v1287 = vpack.c.b16 %v1279, %v1278
      %1296 = vmatprep.subr.bf16.mxu0 0
      %1297 = vmatpush1.bf16.msra.mxu0 %v1280
      %1298 = vmatprep.subr.bf16.mxu0 0
      %1299 = vmatpush1.bf16.msra.mxu0 %v1281
      %1300 = vmatprep.subr.bf16.mxu0 0
      %1301 = vmatpush1.bf16.msra.mxu0 %v1282
      %1302 = vmatprep.subr.bf16.mxu0 0
      %1303 = vmatpush1.bf16.msra.mxu0 %v1283
      %1304 = vmatprep.subr.bf16.mxu0 0
      %1305 = vmatpush1.bf16.msra.mxu0 %v1284
      %1306 = vmatprep.subr.bf16.mxu0 0
      %1307 = vmatpush1.bf16.msra.mxu0 %v1285
      %1308 = vmatprep.subr.bf16.mxu0 0
      %1309 = vmatpush1.bf16.msra.mxu0 %v1286
      %1310 = vmatprep.subr.bf16.mxu0 0
      %1311 = vmatpush1.bf16.msra.mxu0 %v1287
      %1312 = vmatprep.subr.bf16.mxu0 0
      %1313 = vmatpush1.bf16.msra.mxu0 0
      %1314 = vmatprep.subr.bf16.mxu0 0
      %1315 = vmatpush1.bf16.msra.mxu0 0
      %1316 = vmatprep.subr.bf16.mxu0 0
      %1317 = vmatpush1.bf16.msra.mxu0 0
      %1318 = vmatprep.subr.bf16.mxu0 0
      %1319 = vmatpush1.bf16.msra.mxu0 0
      %1320 = vmatprep.subr.bf16.mxu0 0
      %1321 = vmatpush1.bf16.msra.mxu0 0
      %1322 = vmatprep.subr.bf16.mxu0 0
      %1323 = vmatpush1.bf16.msra.mxu0 0
      %1324 = vmatprep.subr.bf16.mxu0 0
      %1325 = vmatpush1.bf16.msra.mxu0 0
      %1326 = vmatprep.subr.bf16.mxu0 0
      %1327 = vmatpush1.bf16.msra.mxu0 0
      %1328 = vmatprep.mubr.bf16.mxu0 0
      %1329 = vmatmul.mubr.bf16.gmra.mrb[0].mxu0 %v1246
      %v1330 = vpop.f32.mrb[0].mxu0
      %v1331 = vadd.f32 0.0, %v1330
      %v1332 = vpop.f32.mrb[0].mxu0
      %v1333 = vpop.f32.mrb[0].mxu0
      %v1334 = vadd.f32 0.0, %v1333
      %v1335 = vpop.f32.mrb[0].mxu0
      %1336 = vdwg.mxu0
      %v1337 = vadd.f32 %v1220, %v1331
      %v1338 = vadd.f32 %v1221, %v1334
      %v1339 = vld [vmem:[%s213] sm:$0x1]
      %v1341 = vlaneseq
      %v1342 = vshrl.u32 %v1341, 7
      %v1343 = vsub.s32 0, %v1342
      %v1344 = vrot.slane %v1339, %v1343
      %v1346 = vadd.f32 %v1337, %v1344
      %v1347 = vadd.f32 %v1338, %v1344
      %v1348 = vmax.f32 %v1346, 0.0
      %v1349 = vmax.f32 %v1347, 0.0
      %v1350 = vpack.c.bf16 %v1349, %v1348
      %v1352 = vunpack.c.l.b16 %v1350
      %v1353 = vunpack.c.h.b16 %v1350
      %v1354 = vpack.c.b16 %v1352, %v1352
      %v1355 = vpack.c.b16 %v1353, %v1353
      %1358 = vst [vmem:[%s221] sm:$0xf] %v1354
      %1359 = vst [vmem:[%s221 + $0x4] sm:$0xf] %v1355
      %p1360 = scmp.lt.s32.totalorder %s18, 1
      %s1361 = scalar_select %p1360, %s18, 1
      %p1362 = scmp.lt.s32.totalorder %s19, 0
      %s1363 = scalar_select %p1362, %s19, 0
      %s1364 = smul.addr %s1361, 2
      %s1365 = sadd.s32 %s1363, %s1364
      %s1366 = smul.addr %s1365, 4
      %s1367 = scalar_lea.vmem %s3, %s1366
      // Predicated region
      $region33: #{backboned_forward.5} parent=31 // pred_check
        %p1368 = pneg %p124
      $region34: #{backboned_forward.5} parent=31 // pred_check_branch
        %1370 = sbr.rel (%p1368) target = $region36
      $region35: #{backboned_forward.5} parent=31 // pred_region
        _
      $region36: #{backboned_forward.5} parent=31 // pred_fallthru
        _
    $region32: #{backboned_forward.5} parent=5 // pred_fallthru
      _
    %p1371 = scmp.le.s32.totalorder 2, %s9
    // Predicated region
    $region37: #{backboned_forward.5} parent=5 // pred_check
      %p1372 = pneg %p1371
    $region38: #{backboned_forward.5} parent=5 // pred_check_branch
      %1374 = sbr.rel (%p1372) target = $region40
    $region39: #{backboned_forward.5} parent=5 // pred_region
      %s1375 = ssub.s32 %s9, 2
      // Predicated region
      $region41: #{backboned_forward.5} parent=39 // pred_check
        %p1376 = pneg %p130
      $region42: #{backboned_forward.5} parent=39 // pred_check_branch
        %1378 = sbr.rel (%p1376) target = $region44
      $region43: #{backboned_forward.5} parent=39 // pred_region
        %p1379 = scmp.lt.s32.totalorder %s20, 1
        %s1380 = scalar_select %p1379, %s20, 1
        %p1381 = scmp.lt.s32.totalorder %s21, 0
        %s1382 = scalar_select %p1381, %s21, 0
        %s1383 = smul.addr %s1380, 2
        %s1384 = sadd.s32 %s1382, %s1383
        %s1385 = smul.addr %s1384, 4
        %s1386 = scalar_lea.vmem %s3, %s1385
      $region44: #{backboned_forward.5} parent=39 // pred_fallthru
        _
    $region40: #{backboned_forward.5} parent=5 // pred_fallthru
      _
  $region6: #{backboned_forward.5} parent=0 // loop_footer
    %s13 = sadd.s32 1, %s9
  $region7: #{backboned_forward.5} parent=0 // loop_footer_branch
    %8 = sbr.rel target = $region3
  $region8: #{backboned_forward.5} parent=0 // loop_exit
    _

</llo_original>
